<compile_context>
chip_gen: v7x
topology: tpu7x:2x2x1
jax: 0.10.0
libtpu: 0.0.40
codegen_flags: <defaults>
</compile_context>

<pallas_src>
import jax
import jax.numpy as jnp
from jax.experimental import pallas as pl
from jax.experimental.pallas import tpu as pltpu


def decoder_decode_kernel(ids_ref,                     # SMEM (T,)  int32   (scalar prefetch)
                          emb_ref,                     # VMEM (O,H) f32     resident embedding table
                          h0_ref,                      # VMEM (1,H) f32     initial hidden
                          w_ih_ref, w_hh_ref,          # VMEM (H,3H) bf16   resident GRU weights (pre-T)
                          b_ih_ref, b_hh_ref,          # VMEM (1,3H) f32
                          w_out_ref,                   # VMEM (H,O) bf16    resident W_out^T
                          b_out_ref,                   # VMEM (1,O) f32
                          logp_ref,                    # VMEM (T,O) f32     out: log-probs
                          h_out_ref,                   # VMEM (1,H) f32     out: final hidden
                          hs_ref):                     # VMEM (T,H) f32     scratch: per-step hidden
    H = h0_ref.shape[-1]
    T = logp_ref.shape[0]

    b_ih = b_ih_ref[...]
    b_hh = b_hh_ref[...]

    h = h0_ref[...]                                    # (1, H) f32 carry, lives in vregs

    # Recurrence: statically unrolled (T is a trace-time constant).  Only the 128-element hidden
    # carry is serial; everything else (embedding gather, two MXU pushes, gate math) is per-step.
    # TODO(synk): for long decodes (T >> 32) switch this static unroll to lax.fori_loop to bound
    #             compile time / live ranges.
    for t in range(T):
        tok = ids_ref[t]                                                   # scalar from SMEM
        # x = relu(embedding(token_t)) — in-VMEM dynamic row gather, no DMA.
        x = jnp.maximum(emb_ref[pl.ds(tok, 1), :], 0.0).astype(jnp.bfloat16)   # (1,H) bf16
        # Two independent MXU dots (no [x;h] concat, no discarded half-products).
        gi = jnp.dot(x, w_ih_ref[...], preferred_element_type=jnp.float32) + b_ih        # (1,3H) f32
        gh = jnp.dot(h.astype(jnp.bfloat16), w_hh_ref[...],
                     preferred_element_type=jnp.float32) + b_hh                          # (1,3H) f32
        # PyTorch GRU gate order (r, z, n); n = tanh(i_n + r * (h@W_hn^T + b_hn)).
        r = jax.nn.sigmoid(gi[:, :H] + gh[:, :H])
        z = jax.nn.sigmoid(gi[:, H:2 * H] + gh[:, H:2 * H])
        n = jnp.tanh(gi[:, 2 * H:] + r * gh[:, 2 * H:])
        h = (1.0 - z) * n + z * h
        hs_ref[t:t + 1, :] = h                          # static single-row store into scratch

    h_out_ref[...] = h

    # Deferred, batched output projection + numerically-stable log-softmax: M = T sublanes of
    # useful MXU work, one XLU reduction pass, one dense (T, O) store (O multiple of 128).
    hs = hs_ref[...]                                    # (T, H) f32
    logits = jnp.dot(hs.astype(jnp.bfloat16), w_out_ref[...],
                     preferred_element_type=jnp.float32) + b_out_ref[...]                # (T, O) f32
    m = jnp.max(logits, axis=-1, keepdims=True)
    lse = jnp.log(jnp.sum(jnp.exp(logits - m), axis=-1, keepdims=True)) + m
    logp_ref[...] = logits - lse


def decoder_rnn_decode(token_ids, hidden, params):
    """Run T chained DecoderRNN steps in one fused Pallas kernel.

    token_ids: (T,) int32; hidden: (1,1,H) f32.
    Returns (log_probs (T,O) f32, hidden (1,1,H) f32). Step t is exactly the PyTorch module's
    forward(token_ids[t], h_t) (weights stored in bf16, f32 accumulation -> ~5e-3 of f32 PyTorch).
    """
    T = int(token_ids.shape[0])
    H = params["w_out_t"].shape[0]
    O = params["w_out_t"].shape[1]
    if T == 0:                                          # grid would never run -> guard here
        return jnp.zeros((0, O), jnp.float32), hidden.astype(jnp.float32)

    h0 = hidden.reshape(1, H).astype(jnp.float32)

    # All blocks are the full arrays with a constant index_map -> DMA'd once, VMEM-resident.
    const = lambda shape: pl.BlockSpec(shape, lambda i, ids: (0,) * len(shape))

    grid_spec = pltpu.PrefetchScalarGridSpec(
        num_scalar_prefetch=1,                          # token_ids -> SMEM
        grid=(1,),                                      # whole decode = one grid step
        in_specs=[
            const((O, H)),                              # embedding table (f32, resident)
            const((1, H)),                              # h0
            const((H, 3 * H)),                          # W_ih^T bf16
            const((H, 3 * H)),                          # W_hh^T bf16
            const((1, 3 * H)),                          # b_ih
            const((1, 3 * H)),                          # b_hh
            const((H, O)),                              # W_out^T bf16
            const((1, O)),                              # b_out
        ],
        out_specs=[
            const((T, O)),                              # all log-probs, one dense store
            const((1, H)),                              # final hidden
        ],
        scratch_shapes=[pltpu.VMEM((T, H), jnp.float32)],
    )

    # Right-sized VMEM limit (resident weights are not meaningfully double-buffered at grid=(1,)).
    footprint = (O * H * 4 + 2 * H * 3 * H * 2 + H * O * 2          # emb + GRU + out weights
                 + (2 * 3 * H + O + 2 * H) * 4                      # biases + h0 + h_out
                 + T * O * 4 + T * H * 4)                           # log-probs + hidden scratch
    vmem_limit = max(2 * 1024 * 1024, 3 * footprint)

    cost = pl.CostEstimate(
        flops=T * (2 * 2 * H * 3 * H + 2 * H * O),
        transcendentals=T * (3 * H + O),
        bytes_accessed=footprint + T * 4,
    )

    log_probs, h_new = pl.pallas_call(
        decoder_decode_kernel,
        out_shape=(
            jax.ShapeDtypeStruct((T, O), jnp.float32),
            jax.ShapeDtypeStruct((1, H), jnp.float32),
        ),
        grid_spec=grid_spec,
        compiler_params=pltpu.CompilerParams(
            dimension_semantics=("arbitrary",),
            vmem_limit_bytes=int(vmem_limit),
        ),
        cost_estimate=cost,
    )(token_ids.astype(jnp.int32), params["emb"], h0,
      params["w_ih_t"], params["w_hh_t"], params["b_ih"], params["b_hh"],
      params["w_out_t"], params["b_out"])

    return log_probs, h_new.reshape(1, 1, H)


def decoder_rnn_forward(input_idx, hidden, params):
    """Single-step forward matching the PyTorch DecoderRNN.forward signature."""
    token_ids = jnp.reshape(input_idx, (1,)).astype(jnp.int32)
    log_probs, h_new = decoder_rnn_decode(token_ids, hidden, params)
    return log_probs, h_new                             # (1,O), (1,1,H)


def init_params(key, hidden_size, output_size):
    ks = jax.random.split(key, 7)
    scale = 1.0 / jnp.sqrt(hidden_size)
    u = lambda k, shape: jax.random.uniform(k, shape, jnp.float32, -scale, scale)
    return {
        "emb": jax.random.normal(ks[0], (output_size, hidden_size), jnp.float32),
        "w_ih_t": u(ks[1], (hidden_size, 3 * hidden_size)).astype(jnp.bfloat16),
        "w_hh_t": u(ks[2], (hidden_size, 3 * hidden_size)).astype(jnp.bfloat16),
        "b_ih": u(ks[3], (1, 3 * hidden_size)),
        "b_hh": u(ks[4], (1, 3 * hidden_size)),
        "w_out_t": u(ks[5], (hidden_size, output_size)).astype(jnp.bfloat16),
        "b_out": u(ks[6], (1, output_size)),
    }


def reference_decode(token_ids, hidden, p):
    """Pure-JAX reference mirroring PyTorch semantics (same bf16 weights, f32 accumulation)."""
    H = p["w_out_t"].shape[0]
    h = hidden.reshape(1, H).astype(jnp.float32)
    outs = []
    for t in range(token_ids.shape[0]):
        x = jnp.maximum(p["emb"][token_ids[t]][None, :], 0.0).astype(jnp.bfloat16)
        gi = jnp.dot(x, p["w_ih_t"], preferred_element_type=jnp.float32) + p["b_ih"]
        gh = jnp.dot(h.astype(jnp.bfloat16), p["w_hh_t"],
                     preferred_element_type=jnp.float32) + p["b_hh"]
        r = jax.nn.sigmoid(gi[:, :H] + gh[:, :H])
        z = jax.nn.sigmoid(gi[:, H:2 * H] + gh[:, H:2 * H])
        n = jnp.tanh(gi[:, 2 * H:] + r * gh[:, 2 * H:])
        h = (1.0 - z) * n + z * h
        logits = jnp.dot(h.astype(jnp.bfloat16), p["w_out_t"],
                         preferred_element_type=jnp.float32) + p["b_out"]
        outs.append(jax.nn.log_softmax(logits, axis=1))
    return jnp.concatenate(outs, axis=0), h.reshape(1, 1, H)


if __name__ == "__main__":
    hidden_size = 128
    output_size = 256
    seq_len = 8

    key = jax.random.PRNGKey(0)
    kp, kh, kt = jax.random.split(key, 3)
    params = init_params(kp, hidden_size, output_size)
    hidden = jax.random.normal(kh, (1, 1, hidden_size), jnp.float32)   # initHidden-like state
    token_ids = jax.random.randint(kt, (seq_len,), 0, output_size, dtype=jnp.int32)

    # Fused multi-step decode: the whole loop is ONE pallas_call / one grid step.
    log_probs, new_hidden = jax.jit(decoder_rnn_decode)(token_ids, hidden, params)
    jax.block_until_ready((log_probs, new_hidden))

    # Single-step forward with the PyTorch module's interface.
    lp1, h1 = jax.jit(decoder_rnn_forward)(token_ids[0], hidden, params)
    jax.block_until_ready((lp1, h1))

    ref_lp, ref_h = reference_decode(token_ids, hidden, params)
    ref_lp1, ref_h1 = reference_decode(token_ids[:1], hidden, params)

    assert log_probs.shape == (seq_len, output_size)
    assert new_hidden.shape == (1, 1, hidden_size)
    assert lp1.shape == (1, output_size) and h1.shape == (1, 1, hidden_size)
    assert jnp.allclose(log_probs, ref_lp, atol=5e-3, rtol=5e-3)
    assert jnp.allclose(new_hidden, ref_h, atol=5e-3, rtol=5e-3)
    assert jnp.allclose(lp1, ref_lp1, atol=5e-3, rtol=5e-3)
    assert jnp.allclose(h1, ref_h1, atol=5e-3, rtol=5e-3)

    print("KERNEL_OK")
</pallas_src>

<mosaic_0001>
module attributes {stable_mosaic.version = 11 : i64} {
  func.func @decoder_decode_kernel(%arg0: i32, %arg1: memref<8xi32, #tpu.memory_space<smem>>, %arg2: memref<256x128xf32, #tpu.memory_space<vmem>>, %arg3: memref<1x128xf32, #tpu.memory_space<vmem>>, %arg4: memref<128x384xbf16, #tpu.memory_space<vmem>>, %arg5: memref<128x384xbf16, #tpu.memory_space<vmem>>, %arg6: memref<1x384xf32, #tpu.memory_space<vmem>>, %arg7: memref<1x384xf32, #tpu.memory_space<vmem>>, %arg8: memref<128x256xbf16, #tpu.memory_space<vmem>>, %arg9: memref<1x256xf32, #tpu.memory_space<vmem>>, %arg10: memref<8x256xf32, #tpu.memory_space<vmem>>, %arg11: memref<1x128xf32, #tpu.memory_space<vmem>>, %arg12: memref<8x128xf32, #tpu.memory_space<vmem>>) attributes {dimension_semantics = [#tpu.dimension_semantics<arbitrary>], iteration_bounds = array<i64: 1>, scalar_prefetch = 1 : i64, scratch_operands = 1 : i64, tpu.core_type = #tpu.core_type<tc>, window_params = [{pipeline_mode = #tpu.pipeline_mode<synchronous>, transform_indices = @transform_0, window_bounds = array<i64: 256, 128>}, {pipeline_mode = #tpu.pipeline_mode<synchronous>, transform_indices = @transform_1, window_bounds = array<i64: 1, 128>}, {pipeline_mode = #tpu.pipeline_mode<synchronous>, transform_indices = @transform_2, window_bounds = array<i64: 128, 384>}, {pipeline_mode = #tpu.pipeline_mode<synchronous>, transform_indices = @transform_3, window_bounds = array<i64: 128, 384>}, {pipeline_mode = #tpu.pipeline_mode<synchronous>, transform_indices = @transform_4, window_bounds = array<i64: 1, 384>}, {pipeline_mode = #tpu.pipeline_mode<synchronous>, transform_indices = @transform_5, window_bounds = array<i64: 1, 384>}, {pipeline_mode = #tpu.pipeline_mode<synchronous>, transform_indices = @transform_6, window_bounds = array<i64: 128, 256>}, {pipeline_mode = #tpu.pipeline_mode<synchronous>, transform_indices = @transform_7, window_bounds = array<i64: 1, 256>}, {pipeline_mode = #tpu.pipeline_mode<synchronous>, transform_indices = @transform_8, window_bounds = array<i64: 8, 256>}, {pipeline_mode = #tpu.pipeline_mode<synchronous>, transform_indices = @transform_9, window_bounds = array<i64: 1, 128>}]} {
    %c0 = arith.constant 0 : index
    %c0_0 = arith.constant 0 : index
    %0 = vector.load %arg6[%c0, %c0_0] : memref<1x384xf32, #tpu.memory_space<vmem>>, vector<1x384xf32>
    %c0_1 = arith.constant 0 : index
    %c0_2 = arith.constant 0 : index
    %1 = vector.load %arg7[%c0_1, %c0_2] : memref<1x384xf32, #tpu.memory_space<vmem>>, vector<1x384xf32>
    %c0_3 = arith.constant 0 : index
    %c0_4 = arith.constant 0 : index
    %2 = vector.load %arg3[%c0_3, %c0_4] : memref<1x128xf32, #tpu.memory_space<vmem>>, vector<1x128xf32>
    %c0_5 = arith.constant 0 : index
    %3 = memref.load %arg1[%c0_5] : memref<8xi32, #tpu.memory_space<smem>>
    %4 = arith.index_cast %3 : i32 to index
    %c0_6 = arith.constant 0 : index
    %5 = vector.load %arg2[%4, %c0_6] : memref<256x128xf32, #tpu.memory_space<vmem>>, vector<1x128xf32>
    %cst = arith.constant 0.000000e+00 : f32
    %6 = vector.broadcast %cst : f32 to vector<1x128xf32>
    %7 = arith.maximumf %5, %6 : vector<1x128xf32>
    %8 = arith.truncf %7 : vector<1x128xf32> to vector<1x128xbf16>
    %c0_7 = arith.constant 0 : index
    %c0_8 = arith.constant 0 : index
    %9 = vector.load %arg4[%c0_7, %c0_8] : memref<128x384xbf16, #tpu.memory_space<vmem>>, vector<128x384xbf16>
    %cst_9 = arith.constant dense<0.000000e+00> : vector<1x384xf32>
    %10 = tpu.matmul %8, %9, %cst_9 {dimension_numbers = #tpu.dot_dimension_numbers<[1], [0], [0], [1], [0, 0, 1, 1], [], []>} : vector<1x128xbf16>, vector<128x384xbf16>, vector<1x384xf32> -> vector<1x384xf32>
    %11 = arith.addf %10, %0 : vector<1x384xf32>
    %12 = arith.truncf %2 : vector<1x128xf32> to vector<1x128xbf16>
    %c0_10 = arith.constant 0 : index
    %c0_11 = arith.constant 0 : index
    %13 = vector.load %arg5[%c0_10, %c0_11] : memref<128x384xbf16, #tpu.memory_space<vmem>>, vector<128x384xbf16>
    %cst_12 = arith.constant dense<0.000000e+00> : vector<1x384xf32>
    %14 = tpu.matmul %12, %13, %cst_12 {dimension_numbers = #tpu.dot_dimension_numbers<[1], [0], [0], [1], [0, 0, 1, 1], [], []>} : vector<1x128xbf16>, vector<128x384xbf16>, vector<1x384xf32> -> vector<1x384xf32>
    %15 = arith.addf %14, %1 : vector<1x384xf32>
    %16 = vector.extract_strided_slice %11 {offsets = [0, 0], sizes = [1, 128], strides = [1, 1]} : vector<1x384xf32> to vector<1x128xf32>
    %17 = vector.extract_strided_slice %15 {offsets = [0, 0], sizes = [1, 128], strides = [1, 1]} : vector<1x384xf32> to vector<1x128xf32>
    %18 = arith.addf %16, %17 : vector<1x128xf32>
    %19 = arith.negf %18 : vector<1x128xf32>
    %20 = math.exp %19 : vector<1x128xf32>
    %cst_13 = arith.constant 1.000000e+00 : f32
    %21 = vector.broadcast %cst_13 : f32 to vector<1x128xf32>
    %22 = arith.addf %21, %20 : vector<1x128xf32>
    %23 = arith.divf %21, %22 : vector<1x128xf32>
    %24 = vector.extract_strided_slice %11 {offsets = [0, 128], sizes = [1, 128], strides = [1, 1]} : vector<1x384xf32> to vector<1x128xf32>
    %25 = vector.extract_strided_slice %15 {offsets = [0, 128], sizes = [1, 128], strides = [1, 1]} : vector<1x384xf32> to vector<1x128xf32>
    %26 = arith.addf %24, %25 : vector<1x128xf32>
    %27 = arith.negf %26 : vector<1x128xf32>
    %28 = math.exp %27 : vector<1x128xf32>
    %cst_14 = arith.constant 1.000000e+00 : f32
    %29 = vector.broadcast %cst_14 : f32 to vector<1x128xf32>
    %30 = arith.addf %29, %28 : vector<1x128xf32>
    %31 = arith.divf %29, %30 : vector<1x128xf32>
    %32 = vector.extract_strided_slice %11 {offsets = [0, 256], sizes = [1, 128], strides = [1, 1]} : vector<1x384xf32> to vector<1x128xf32>
    %33 = vector.extract_strided_slice %15 {offsets = [0, 256], sizes = [1, 128], strides = [1, 1]} : vector<1x384xf32> to vector<1x128xf32>
    %34 = arith.mulf %23, %33 : vector<1x128xf32>
    %35 = arith.addf %32, %34 : vector<1x128xf32>
    %36 = math.tanh %35 : vector<1x128xf32>
    %cst_15 = arith.constant 1.000000e+00 : f32
    %37 = vector.broadcast %cst_15 : f32 to vector<1x128xf32>
    %38 = arith.subf %37, %31 : vector<1x128xf32>
    %39 = arith.mulf %38, %36 : vector<1x128xf32>
    %40 = arith.mulf %31, %2 : vector<1x128xf32>
    %41 = arith.addf %39, %40 : vector<1x128xf32>
    %c0_16 = arith.constant 0 : index
    %c0_17 = arith.constant 0 : index
    %42 = vector.load %arg12[%c0_16, %c0_17] : memref<8x128xf32, #tpu.memory_space<vmem>>, vector<1x128xf32>
    tpu.vector_store %arg12[%c0_16, %c0_17], %41 {strides = array<i32>} : memref<8x128xf32, #tpu.memory_space<vmem>>, vector<1x128xf32>,
    %c1 = arith.constant 1 : index
    %43 = memref.load %arg1[%c1] : memref<8xi32, #tpu.memory_space<smem>>
    %44 = arith.index_cast %43 : i32 to index
    %c0_18 = arith.constant 0 : index
    %45 = vector.load %arg2[%44, %c0_18] : memref<256x128xf32, #tpu.memory_space<vmem>>, vector<1x128xf32>
    %cst_19 = arith.constant 0.000000e+00 : f32
    %46 = vector.broadcast %cst_19 : f32 to vector<1x128xf32>
    %47 = arith.maximumf %45, %46 : vector<1x128xf32>
    %48 = arith.truncf %47 : vector<1x128xf32> to vector<1x128xbf16>
    %c0_20 = arith.constant 0 : index
    %c0_21 = arith.constant 0 : index
    %49 = vector.load %arg4[%c0_20, %c0_21] : memref<128x384xbf16, #tpu.memory_space<vmem>>, vector<128x384xbf16>
    %cst_22 = arith.constant dense<0.000000e+00> : vector<1x384xf32>
    %50 = tpu.matmul %48, %49, %cst_22 {dimension_numbers = #tpu.dot_dimension_numbers<[1], [0], [0], [1], [0, 0, 1, 1], [], []>} : vector<1x128xbf16>, vector<128x384xbf16>, vector<1x384xf32> -> vector<1x384xf32>
    %51 = arith.addf %50, %0 : vector<1x384xf32>
    %52 = arith.truncf %41 : vector<1x128xf32> to vector<1x128xbf16>
    %c0_23 = arith.constant 0 : index
    %c0_24 = arith.constant 0 : index
    %53 = vector.load %arg5[%c0_23, %c0_24] : memref<128x384xbf16, #tpu.memory_space<vmem>>, vector<128x384xbf16>
    %cst_25 = arith.constant dense<0.000000e+00> : vector<1x384xf32>
    %54 = tpu.matmul %52, %53, %cst_25 {dimension_numbers = #tpu.dot_dimension_numbers<[1], [0], [0], [1], [0, 0, 1, 1], [], []>} : vector<1x128xbf16>, vector<128x384xbf16>, vector<1x384xf32> -> vector<1x384xf32>
    %55 = arith.addf %54, %1 : vector<1x384xf32>
    %56 = vector.extract_strided_slice %51 {offsets = [0, 0], sizes = [1, 128], strides = [1, 1]} : vector<1x384xf32> to vector<1x128xf32>
    %57 = vector.extract_strided_slice %55 {offsets = [0, 0], sizes = [1, 128], strides = [1, 1]} : vector<1x384xf32> to vector<1x128xf32>
    %58 = arith.addf %56, %57 : vector<1x128xf32>
    %59 = arith.negf %58 : vector<1x128xf32>
    %60 = math.exp %59 : vector<1x128xf32>
    %cst_26 = arith.constant 1.000000e+00 : f32
    %61 = vector.broadcast %cst_26 : f32 to vector<1x128xf32>
    %62 = arith.addf %61, %60 : vector<1x128xf32>
    %63 = arith.divf %61, %62 : vector<1x128xf32>
    %64 = vector.extract_strided_slice %51 {offsets = [0, 128], sizes = [1, 128], strides = [1, 1]} : vector<1x384xf32> to vector<1x128xf32>
    %65 = vector.extract_strided_slice %55 {offsets = [0, 128], sizes = [1, 128], strides = [1, 1]} : vector<1x384xf32> to vector<1x128xf32>
    %66 = arith.addf %64, %65 : vector<1x128xf32>
    %67 = arith.negf %66 : vector<1x128xf32>
    %68 = math.exp %67 : vector<1x128xf32>
    %cst_27 = arith.constant 1.000000e+00 : f32
    %69 = vector.broadcast %cst_27 : f32 to vector<1x128xf32>
    %70 = arith.addf %69, %68 : vector<1x128xf32>
    %71 = arith.divf %69, %70 : vector<1x128xf32>
    %72 = vector.extract_strided_slice %51 {offsets = [0, 256], sizes = [1, 128], strides = [1, 1]} : vector<1x384xf32> to vector<1x128xf32>
    %73 = vector.extract_strided_slice %55 {offsets = [0, 256], sizes = [1, 128], strides = [1, 1]} : vector<1x384xf32> to vector<1x128xf32>
    %74 = arith.mulf %63, %73 : vector<1x128xf32>
    %75 = arith.addf %72, %74 : vector<1x128xf32>
    %76 = math.tanh %75 : vector<1x128xf32>
    %cst_28 = arith.constant 1.000000e+00 : f32
    %77 = vector.broadcast %cst_28 : f32 to vector<1x128xf32>
    %78 = arith.subf %77, %71 : vector<1x128xf32>
    %79 = arith.mulf %78, %76 : vector<1x128xf32>
    %80 = arith.mulf %71, %41 : vector<1x128xf32>
    %81 = arith.addf %79, %80 : vector<1x128xf32>
    %c1_29 = arith.constant 1 : index
    %c0_30 = arith.constant 0 : index
    %82 = vector.load %arg12[%c1_29, %c0_30] : memref<8x128xf32, #tpu.memory_space<vmem>>, vector<1x128xf32>
    tpu.vector_store %arg12[%c1_29, %c0_30], %81 {strides = array<i32>} : memref<8x128xf32, #tpu.memory_space<vmem>>, vector<1x128xf32>,
    %c2 = arith.constant 2 : index
    %83 = memref.load %arg1[%c2] : memref<8xi32, #tpu.memory_space<smem>>
    %84 = arith.index_cast %83 : i32 to index
    %c0_31 = arith.constant 0 : index
    %85 = vector.load %arg2[%84, %c0_31] : memref<256x128xf32, #tpu.memory_space<vmem>>, vector<1x128xf32>
    %cst_32 = arith.constant 0.000000e+00 : f32
    %86 = vector.broadcast %cst_32 : f32 to vector<1x128xf32>
    %87 = arith.maximumf %85, %86 : vector<1x128xf32>
    %88 = arith.truncf %87 : vector<1x128xf32> to vector<1x128xbf16>
    %c0_33 = arith.constant 0 : index
    %c0_34 = arith.constant 0 : index
    %89 = vector.load %arg4[%c0_33, %c0_34] : memref<128x384xbf16, #tpu.memory_space<vmem>>, vector<128x384xbf16>
    %cst_35 = arith.constant dense<0.000000e+00> : vector<1x384xf32>
    %90 = tpu.matmul %88, %89, %cst_35 {dimension_numbers = #tpu.dot_dimension_numbers<[1], [0], [0], [1], [0, 0, 1, 1], [], []>} : vector<1x128xbf16>, vector<128x384xbf16>, vector<1x384xf32> -> vector<1x384xf32>
    %91 = arith.addf %90, %0 : vector<1x384xf32>
    %92 = arith.truncf %81 : vector<1x128xf32> to vector<1x128xbf16>
    %c0_36 = arith.constant 0 : index
    %c0_37 = arith.constant 0 : index
    %93 = vector.load %arg5[%c0_36, %c0_37] : memref<128x384xbf16, #tpu.memory_space<vmem>>, vector<128x384xbf16>
    %cst_38 = arith.constant dense<0.000000e+00> : vector<1x384xf32>
    %94 = tpu.matmul %92, %93, %cst_38 {dimension_numbers = #tpu.dot_dimension_numbers<[1], [0], [0], [1], [0, 0, 1, 1], [], []>} : vector<1x128xbf16>, vector<128x384xbf16>, vector<1x384xf32> -> vector<1x384xf32>
    %95 = arith.addf %94, %1 : vector<1x384xf32>
    %96 = vector.extract_strided_slice %91 {offsets = [0, 0], sizes = [1, 128], strides = [1, 1]} : vector<1x384xf32> to vector<1x128xf32>
    %97 = vector.extract_strided_slice %95 {offsets = [0, 0], sizes = [1, 128], strides = [1, 1]} : vector<1x384xf32> to vector<1x128xf32>
    %98 = arith.addf %96, %97 : vector<1x128xf32>
    %99 = arith.negf %98 : vector<1x128xf32>
    %100 = math.exp %99 : vector<1x128xf32>
    %cst_39 = arith.constant 1.000000e+00 : f32
    %101 = vector.broadcast %cst_39 : f32 to vector<1x128xf32>
    %102 = arith.addf %101, %100 : vector<1x128xf32>
    %103 = arith.divf %101, %102 : vector<1x128xf32>
    %104 = vector.extract_strided_slice %91 {offsets = [0, 128], sizes = [1, 128], strides = [1, 1]} : vector<1x384xf32> to vector<1x128xf32>
    %105 = vector.extract_strided_slice %95 {offsets = [0, 128], sizes = [1, 128], strides = [1, 1]} : vector<1x384xf32> to vector<1x128xf32>
    %106 = arith.addf %104, %105 : vector<1x128xf32>
    %107 = arith.negf %106 : vector<1x128xf32>
    %108 = math.exp %107 : vector<1x128xf32>
    %cst_40 = arith.constant 1.000000e+00 : f32
    %109 = vector.broadcast %cst_40 : f32 to vector<1x128xf32>
    %110 = arith.addf %109, %108 : vector<1x128xf32>
    %111 = arith.divf %109, %110 : vector<1x128xf32>
    %112 = vector.extract_strided_slice %91 {offsets = [0, 256], sizes = [1, 128], strides = [1, 1]} : vector<1x384xf32> to vector<1x128xf32>
    %113 = vector.extract_strided_slice %95 {offsets = [0, 256], sizes = [1, 128], strides = [1, 1]} : vector<1x384xf32> to vector<1x128xf32>
    %114 = arith.mulf %103, %113 : vector<1x128xf32>
    %115 = arith.addf %112, %114 : vector<1x128xf32>
    %116 = math.tanh %115 : vector<1x128xf32>
    %cst_41 = arith.constant 1.000000e+00 : f32
    %117 = vector.broadcast %cst_41 : f32 to vector<1x128xf32>
    %118 = arith.subf %117, %111 : vector<1x128xf32>
    %119 = arith.mulf %118, %116 : vector<1x128xf32>
    %120 = arith.mulf %111, %81 : vector<1x128xf32>
    %121 = arith.addf %119, %120 : vector<1x128xf32>
    %c2_42 = arith.constant 2 : index
    %c0_43 = arith.constant 0 : index
    %122 = vector.load %arg12[%c2_42, %c0_43] : memref<8x128xf32, #tpu.memory_space<vmem>>, vector<1x128xf32>
    tpu.vector_store %arg12[%c2_42, %c0_43], %121 {strides = array<i32>} : memref<8x128xf32, #tpu.memory_space<vmem>>, vector<1x128xf32>,
    %c3 = arith.constant 3 : index
    %123 = memref.load %arg1[%c3] : memref<8xi32, #tpu.memory_space<smem>>
    %124 = arith.index_cast %123 : i32 to index
    %c0_44 = arith.constant 0 : index
    %125 = vector.load %arg2[%124, %c0_44] : memref<256x128xf32, #tpu.memory_space<vmem>>, vector<1x128xf32>
    %cst_45 = arith.constant 0.000000e+00 : f32
    %126 = vector.broadcast %cst_45 : f32 to vector<1x128xf32>
    %127 = arith.maximumf %125, %126 : vector<1x128xf32>
    %128 = arith.truncf %127 : vector<1x128xf32> to vector<1x128xbf16>
    %c0_46 = arith.constant 0 : index
    %c0_47 = arith.constant 0 : index
    %129 = vector.load %arg4[%c0_46, %c0_47] : memref<128x384xbf16, #tpu.memory_space<vmem>>, vector<128x384xbf16>
    %cst_48 = arith.constant dense<0.000000e+00> : vector<1x384xf32>
    %130 = tpu.matmul %128, %129, %cst_48 {dimension_numbers = #tpu.dot_dimension_numbers<[1], [0], [0], [1], [0, 0, 1, 1], [], []>} : vector<1x128xbf16>, vector<128x384xbf16>, vector<1x384xf32> -> vector<1x384xf32>
    %131 = arith.addf %130, %0 : vector<1x384xf32>
    %132 = arith.truncf %121 : vector<1x128xf32> to vector<1x128xbf16>
    %c0_49 = arith.constant 0 : index
    %c0_50 = arith.constant 0 : index
    %133 = vector.load %arg5[%c0_49, %c0_50] : memref<128x384xbf16, #tpu.memory_space<vmem>>, vector<128x384xbf16>
    %cst_51 = arith.constant dense<0.000000e+00> : vector<1x384xf32>
    %134 = tpu.matmul %132, %133, %cst_51 {dimension_numbers = #tpu.dot_dimension_numbers<[1], [0], [0], [1], [0, 0, 1, 1], [], []>} : vector<1x128xbf16>, vector<128x384xbf16>, vector<1x384xf32> -> vector<1x384xf32>
    %135 = arith.addf %134, %1 : vector<1x384xf32>
    %136 = vector.extract_strided_slice %131 {offsets = [0, 0], sizes = [1, 128], strides = [1, 1]} : vector<1x384xf32> to vector<1x128xf32>
    %137 = vector.extract_strided_slice %135 {offsets = [0, 0], sizes = [1, 128], strides = [1, 1]} : vector<1x384xf32> to vector<1x128xf32>
    %138 = arith.addf %136, %137 : vector<1x128xf32>
    %139 = arith.negf %138 : vector<1x128xf32>
    %140 = math.exp %139 : vector<1x128xf32>
    %cst_52 = arith.constant 1.000000e+00 : f32
    %141 = vector.broadcast %cst_52 : f32 to vector<1x128xf32>
    %142 = arith.addf %141, %140 : vector<1x128xf32>
    %143 = arith.divf %141, %142 : vector<1x128xf32>
    %144 = vector.extract_strided_slice %131 {offsets = [0, 128], sizes = [1, 128], strides = [1, 1]} : vector<1x384xf32> to vector<1x128xf32>
    %145 = vector.extract_strided_slice %135 {offsets = [0, 128], sizes = [1, 128], strides = [1, 1]} : vector<1x384xf32> to vector<1x128xf32>
    %146 = arith.addf %144, %145 : vector<1x128xf32>
    %147 = arith.negf %146 : vector<1x128xf32>
    %148 = math.exp %147 : vector<1x128xf32>
    %cst_53 = arith.constant 1.000000e+00 : f32
    %149 = vector.broadcast %cst_53 : f32 to vector<1x128xf32>
    %150 = arith.addf %149, %148 : vector<1x128xf32>
    %151 = arith.divf %149, %150 : vector<1x128xf32>
    %152 = vector.extract_strided_slice %131 {offsets = [0, 256], sizes = [1, 128], strides = [1, 1]} : vector<1x384xf32> to vector<1x128xf32>
    %153 = vector.extract_strided_slice %135 {offsets = [0, 256], sizes = [1, 128], strides = [1, 1]} : vector<1x384xf32> to vector<1x128xf32>
    %154 = arith.mulf %143, %153 : vector<1x128xf32>
    %155 = arith.addf %152, %154 : vector<1x128xf32>
    %156 = math.tanh %155 : vector<1x128xf32>
    %cst_54 = arith.constant 1.000000e+00 : f32
    %157 = vector.broadcast %cst_54 : f32 to vector<1x128xf32>
    %158 = arith.subf %157, %151 : vector<1x128xf32>
    %159 = arith.mulf %158, %156 : vector<1x128xf32>
    %160 = arith.mulf %151, %121 : vector<1x128xf32>
    %161 = arith.addf %159, %160 : vector<1x128xf32>
    %c3_55 = arith.constant 3 : index
    %c0_56 = arith.constant 0 : index
    %162 = vector.load %arg12[%c3_55, %c0_56] : memref<8x128xf32, #tpu.memory_space<vmem>>, vector<1x128xf32>
    tpu.vector_store %arg12[%c3_55, %c0_56], %161 {strides = array<i32>} : memref<8x128xf32, #tpu.memory_space<vmem>>, vector<1x128xf32>,
    %c4 = arith.constant 4 : index
    %163 = memref.load %arg1[%c4] : memref<8xi32, #tpu.memory_space<smem>>
    %164 = arith.index_cast %163 : i32 to index
    %c0_57 = arith.constant 0 : index
    %165 = vector.load %arg2[%164, %c0_57] : memref<256x128xf32, #tpu.memory_space<vmem>>, vector<1x128xf32>
    %cst_58 = arith.constant 0.000000e+00 : f32
    %166 = vector.broadcast %cst_58 : f32 to vector<1x128xf32>
    %167 = arith.maximumf %165, %166 : vector<1x128xf32>
    %168 = arith.truncf %167 : vector<1x128xf32> to vector<1x128xbf16>
    %c0_59 = arith.constant 0 : index
    %c0_60 = arith.constant 0 : index
    %169 = vector.load %arg4[%c0_59, %c0_60] : memref<128x384xbf16, #tpu.memory_space<vmem>>, vector<128x384xbf16>
    %cst_61 = arith.constant dense<0.000000e+00> : vector<1x384xf32>
    %170 = tpu.matmul %168, %169, %cst_61 {dimension_numbers = #tpu.dot_dimension_numbers<[1], [0], [0], [1], [0, 0, 1, 1], [], []>} : vector<1x128xbf16>, vector<128x384xbf16>, vector<1x384xf32> -> vector<1x384xf32>
    %171 = arith.addf %170, %0 : vector<1x384xf32>
    %172 = arith.truncf %161 : vector<1x128xf32> to vector<1x128xbf16>
    %c0_62 = arith.constant 0 : index
    %c0_63 = arith.constant 0 : index
    %173 = vector.load %arg5[%c0_62, %c0_63] : memref<128x384xbf16, #tpu.memory_space<vmem>>, vector<128x384xbf16>
    %cst_64 = arith.constant dense<0.000000e+00> : vector<1x384xf32>
    %174 = tpu.matmul %172, %173, %cst_64 {dimension_numbers = #tpu.dot_dimension_numbers<[1], [0], [0], [1], [0, 0, 1, 1], [], []>} : vector<1x128xbf16>, vector<128x384xbf16>, vector<1x384xf32> -> vector<1x384xf32>
    %175 = arith.addf %174, %1 : vector<1x384xf32>
    %176 = vector.extract_strided_slice %171 {offsets = [0, 0], sizes = [1, 128], strides = [1, 1]} : vector<1x384xf32> to vector<1x128xf32>
    %177 = vector.extract_strided_slice %175 {offsets = [0, 0], sizes = [1, 128], strides = [1, 1]} : vector<1x384xf32> to vector<1x128xf32>
    %178 = arith.addf %176, %177 : vector<1x128xf32>
    %179 = arith.negf %178 : vector<1x128xf32>
    %180 = math.exp %179 : vector<1x128xf32>
    %cst_65 = arith.constant 1.000000e+00 : f32
    %181 = vector.broadcast %cst_65 : f32 to vector<1x128xf32>
    %182 = arith.addf %181, %180 : vector<1x128xf32>
    %183 = arith.divf %181, %182 : vector<1x128xf32>
    %184 = vector.extract_strided_slice %171 {offsets = [0, 128], sizes = [1, 128], strides = [1, 1]} : vector<1x384xf32> to vector<1x128xf32>
    %185 = vector.extract_strided_slice %175 {offsets = [0, 128], sizes = [1, 128], strides = [1, 1]} : vector<1x384xf32> to vector<1x128xf32>
    %186 = arith.addf %184, %185 : vector<1x128xf32>
    %187 = arith.negf %186 : vector<1x128xf32>
    %188 = math.exp %187 : vector<1x128xf32>
    %cst_66 = arith.constant 1.000000e+00 : f32
    %189 = vector.broadcast %cst_66 : f32 to vector<1x128xf32>
    %190 = arith.addf %189, %188 : vector<1x128xf32>
    %191 = arith.divf %189, %190 : vector<1x128xf32>
    %192 = vector.extract_strided_slice %171 {offsets = [0, 256], sizes = [1, 128], strides = [1, 1]} : vector<1x384xf32> to vector<1x128xf32>
    %193 = vector.extract_strided_slice %175 {offsets = [0, 256], sizes = [1, 128], strides = [1, 1]} : vector<1x384xf32> to vector<1x128xf32>
    %194 = arith.mulf %183, %193 : vector<1x128xf32>
    %195 = arith.addf %192, %194 : vector<1x128xf32>
    %196 = math.tanh %195 : vector<1x128xf32>
    %cst_67 = arith.constant 1.000000e+00 : f32
    %197 = vector.broadcast %cst_67 : f32 to vector<1x128xf32>
    %198 = arith.subf %197, %191 : vector<1x128xf32>
    %199 = arith.mulf %198, %196 : vector<1x128xf32>
    %200 = arith.mulf %191, %161 : vector<1x128xf32>
    %201 = arith.addf %199, %200 : vector<1x128xf32>
    %c4_68 = arith.constant 4 : index
    %c0_69 = arith.constant 0 : index
    %202 = vector.load %arg12[%c4_68, %c0_69] : memref<8x128xf32, #tpu.memory_space<vmem>>, vector<1x128xf32>
    tpu.vector_store %arg12[%c4_68, %c0_69], %201 {strides = array<i32>} : memref<8x128xf32, #tpu.memory_space<vmem>>, vector<1x128xf32>,
    %c5 = arith.constant 5 : index
    %203 = memref.load %arg1[%c5] : memref<8xi32, #tpu.memory_space<smem>>
    %204 = arith.index_cast %203 : i32 to index
    %c0_70 = arith.constant 0 : index
    %205 = vector.load %arg2[%204, %c0_70] : memref<256x128xf32, #tpu.memory_space<vmem>>, vector<1x128xf32>
    %cst_71 = arith.constant 0.000000e+00 : f32
    %206 = vector.broadcast %cst_71 : f32 to vector<1x128xf32>
    %207 = arith.maximumf %205, %206 : vector<1x128xf32>
    %208 = arith.truncf %207 : vector<1x128xf32> to vector<1x128xbf16>
    %c0_72 = arith.constant 0 : index
    %c0_73 = arith.constant 0 : index
    %209 = vector.load %arg4[%c0_72, %c0_73] : memref<128x384xbf16, #tpu.memory_space<vmem>>, vector<128x384xbf16>
    %cst_74 = arith.constant dense<0.000000e+00> : vector<1x384xf32>
    %210 = tpu.matmul %208, %209, %cst_74 {dimension_numbers = #tpu.dot_dimension_numbers<[1], [0], [0], [1], [0, 0, 1, 1], [], []>} : vector<1x128xbf16>, vector<128x384xbf16>, vector<1x384xf32> -> vector<1x384xf32>
    %211 = arith.addf %210, %0 : vector<1x384xf32>
    %212 = arith.truncf %201 : vector<1x128xf32> to vector<1x128xbf16>
    %c0_75 = arith.constant 0 : index
    %c0_76 = arith.constant 0 : index
    %213 = vector.load %arg5[%c0_75, %c0_76] : memref<128x384xbf16, #tpu.memory_space<vmem>>, vector<128x384xbf16>
    %cst_77 = arith.constant dense<0.000000e+00> : vector<1x384xf32>
    %214 = tpu.matmul %212, %213, %cst_77 {dimension_numbers = #tpu.dot_dimension_numbers<[1], [0], [0], [1], [0, 0, 1, 1], [], []>} : vector<1x128xbf16>, vector<128x384xbf16>, vector<1x384xf32> -> vector<1x384xf32>
    %215 = arith.addf %214, %1 : vector<1x384xf32>
    %216 = vector.extract_strided_slice %211 {offsets = [0, 0], sizes = [1, 128], strides = [1, 1]} : vector<1x384xf32> to vector<1x128xf32>
    %217 = vector.extract_strided_slice %215 {offsets = [0, 0], sizes = [1, 128], strides = [1, 1]} : vector<1x384xf32> to vector<1x128xf32>
    %218 = arith.addf %216, %217 : vector<1x128xf32>
    %219 = arith.negf %218 : vector<1x128xf32>
    %220 = math.exp %219 : vector<1x128xf32>
    %cst_78 = arith.constant 1.000000e+00 : f32
    %221 = vector.broadcast %cst_78 : f32 to vector<1x128xf32>
    %222 = arith.addf %221, %220 : vector<1x128xf32>
    %223 = arith.divf %221, %222 : vector<1x128xf32>
    %224 = vector.extract_strided_slice %211 {offsets = [0, 128], sizes = [1, 128], strides = [1, 1]} : vector<1x384xf32> to vector<1x128xf32>
    %225 = vector.extract_strided_slice %215 {offsets = [0, 128], sizes = [1, 128], strides = [1, 1]} : vector<1x384xf32> to vector<1x128xf32>
    %226 = arith.addf %224, %225 : vector<1x128xf32>
    %227 = arith.negf %226 : vector<1x128xf32>
    %228 = math.exp %227 : vector<1x128xf32>
    %cst_79 = arith.constant 1.000000e+00 : f32
    %229 = vector.broadcast %cst_79 : f32 to vector<1x128xf32>
    %230 = arith.addf %229, %228 : vector<1x128xf32>
    %231 = arith.divf %229, %230 : vector<1x128xf32>
    %232 = vector.extract_strided_slice %211 {offsets = [0, 256], sizes = [1, 128], strides = [1, 1]} : vector<1x384xf32> to vector<1x128xf32>
    %233 = vector.extract_strided_slice %215 {offsets = [0, 256], sizes = [1, 128], strides = [1, 1]} : vector<1x384xf32> to vector<1x128xf32>
    %234 = arith.mulf %223, %233 : vector<1x128xf32>
    %235 = arith.addf %232, %234 : vector<1x128xf32>
    %236 = math.tanh %235 : vector<1x128xf32>
    %cst_80 = arith.constant 1.000000e+00 : f32
    %237 = vector.broadcast %cst_80 : f32 to vector<1x128xf32>
    %238 = arith.subf %237, %231 : vector<1x128xf32>
    %239 = arith.mulf %238, %236 : vector<1x128xf32>
    %240 = arith.mulf %231, %201 : vector<1x128xf32>
    %241 = arith.addf %239, %240 : vector<1x128xf32>
    %c5_81 = arith.constant 5 : index
    %c0_82 = arith.constant 0 : index
    %242 = vector.load %arg12[%c5_81, %c0_82] : memref<8x128xf32, #tpu.memory_space<vmem>>, vector<1x128xf32>
    tpu.vector_store %arg12[%c5_81, %c0_82], %241 {strides = array<i32>} : memref<8x128xf32, #tpu.memory_space<vmem>>, vector<1x128xf32>,
    %c6 = arith.constant 6 : index
    %243 = memref.load %arg1[%c6] : memref<8xi32, #tpu.memory_space<smem>>
    %244 = arith.index_cast %243 : i32 to index
    %c0_83 = arith.constant 0 : index
    %245 = vector.load %arg2[%244, %c0_83] : memref<256x128xf32, #tpu.memory_space<vmem>>, vector<1x128xf32>
    %cst_84 = arith.constant 0.000000e+00 : f32
    %246 = vector.broadcast %cst_84 : f32 to vector<1x128xf32>
    %247 = arith.maximumf %245, %246 : vector<1x128xf32>
    %248 = arith.truncf %247 : vector<1x128xf32> to vector<1x128xbf16>
    %c0_85 = arith.constant 0 : index
    %c0_86 = arith.constant 0 : index
    %249 = vector.load %arg4[%c0_85, %c0_86] : memref<128x384xbf16, #tpu.memory_space<vmem>>, vector<128x384xbf16>
    %cst_87 = arith.constant dense<0.000000e+00> : vector<1x384xf32>
    %250 = tpu.matmul %248, %249, %cst_87 {dimension_numbers = #tpu.dot_dimension_numbers<[1], [0], [0], [1], [0, 0, 1, 1], [], []>} : vector<1x128xbf16>, vector<128x384xbf16>, vector<1x384xf32> -> vector<1x384xf32>
    %251 = arith.addf %250, %0 : vector<1x384xf32>
    %252 = arith.truncf %241 : vector<1x128xf32> to vector<1x128xbf16>
    %c0_88 = arith.constant 0 : index
    %c0_89 = arith.constant 0 : index
    %253 = vector.load %arg5[%c0_88, %c0_89] : memref<128x384xbf16, #tpu.memory_space<vmem>>, vector<128x384xbf16>
    %cst_90 = arith.constant dense<0.000000e+00> : vector<1x384xf32>
    %254 = tpu.matmul %252, %253, %cst_90 {dimension_numbers = #tpu.dot_dimension_numbers<[1], [0], [0], [1], [0, 0, 1, 1], [], []>} : vector<1x128xbf16>, vector<128x384xbf16>, vector<1x384xf32> -> vector<1x384xf32>
    %255 = arith.addf %254, %1 : vector<1x384xf32>
    %256 = vector.extract_strided_slice %251 {offsets = [0, 0], sizes = [1, 128], strides = [1, 1]} : vector<1x384xf32> to vector<1x128xf32>
    %257 = vector.extract_strided_slice %255 {offsets = [0, 0], sizes = [1, 128], strides = [1, 1]} : vector<1x384xf32> to vector<1x128xf32>
    %258 = arith.addf %256, %257 : vector<1x128xf32>
    %259 = arith.negf %258 : vector<1x128xf32>
    %260 = math.exp %259 : vector<1x128xf32>
    %cst_91 = arith.constant 1.000000e+00 : f32
    %261 = vector.broadcast %cst_91 : f32 to vector<1x128xf32>
    %262 = arith.addf %261, %260 : vector<1x128xf32>
    %263 = arith.divf %261, %262 : vector<1x128xf32>
    %264 = vector.extract_strided_slice %251 {offsets = [0, 128], sizes = [1, 128], strides = [1, 1]} : vector<1x384xf32> to vector<1x128xf32>
    %265 = vector.extract_strided_slice %255 {offsets = [0, 128], sizes = [1, 128], strides = [1, 1]} : vector<1x384xf32> to vector<1x128xf32>
    %266 = arith.addf %264, %265 : vector<1x128xf32>
    %267 = arith.negf %266 : vector<1x128xf32>
    %268 = math.exp %267 : vector<1x128xf32>
    %cst_92 = arith.constant 1.000000e+00 : f32
    %269 = vector.broadcast %cst_92 : f32 to vector<1x128xf32>
    %270 = arith.addf %269, %268 : vector<1x128xf32>
    %271 = arith.divf %269, %270 : vector<1x128xf32>
    %272 = vector.extract_strided_slice %251 {offsets = [0, 256], sizes = [1, 128], strides = [1, 1]} : vector<1x384xf32> to vector<1x128xf32>
    %273 = vector.extract_strided_slice %255 {offsets = [0, 256], sizes = [1, 128], strides = [1, 1]} : vector<1x384xf32> to vector<1x128xf32>
    %274 = arith.mulf %263, %273 : vector<1x128xf32>
    %275 = arith.addf %272, %274 : vector<1x128xf32>
    %276 = math.tanh %275 : vector<1x128xf32>
    %cst_93 = arith.constant 1.000000e+00 : f32
    %277 = vector.broadcast %cst_93 : f32 to vector<1x128xf32>
    %278 = arith.subf %277, %271 : vector<1x128xf32>
    %279 = arith.mulf %278, %276 : vector<1x128xf32>
    %280 = arith.mulf %271, %241 : vector<1x128xf32>
    %281 = arith.addf %279, %280 : vector<1x128xf32>
    %c6_94 = arith.constant 6 : index
    %c0_95 = arith.constant 0 : index
    %282 = vector.load %arg12[%c6_94, %c0_95] : memref<8x128xf32, #tpu.memory_space<vmem>>, vector<1x128xf32>
    tpu.vector_store %arg12[%c6_94, %c0_95], %281 {strides = array<i32>} : memref<8x128xf32, #tpu.memory_space<vmem>>, vector<1x128xf32>,
    %c7 = arith.constant 7 : index
    %283 = memref.load %arg1[%c7] : memref<8xi32, #tpu.memory_space<smem>>
    %284 = arith.index_cast %283 : i32 to index
    %c0_96 = arith.constant 0 : index
    %285 = vector.load %arg2[%284, %c0_96] : memref<256x128xf32, #tpu.memory_space<vmem>>, vector<1x128xf32>
    %cst_97 = arith.constant 0.000000e+00 : f32
    %286 = vector.broadcast %cst_97 : f32 to vector<1x128xf32>
    %287 = arith.maximumf %285, %286 : vector<1x128xf32>
    %288 = arith.truncf %287 : vector<1x128xf32> to vector<1x128xbf16>
    %c0_98 = arith.constant 0 : index
    %c0_99 = arith.constant 0 : index
    %289 = vector.load %arg4[%c0_98, %c0_99] : memref<128x384xbf16, #tpu.memory_space<vmem>>, vector<128x384xbf16>
    %cst_100 = arith.constant dense<0.000000e+00> : vector<1x384xf32>
    %290 = tpu.matmul %288, %289, %cst_100 {dimension_numbers = #tpu.dot_dimension_numbers<[1], [0], [0], [1], [0, 0, 1, 1], [], []>} : vector<1x128xbf16>, vector<128x384xbf16>, vector<1x384xf32> -> vector<1x384xf32>
    %291 = arith.addf %290, %0 : vector<1x384xf32>
    %292 = arith.truncf %281 : vector<1x128xf32> to vector<1x128xbf16>
    %c0_101 = arith.constant 0 : index
    %c0_102 = arith.constant 0 : index
    %293 = vector.load %arg5[%c0_101, %c0_102] : memref<128x384xbf16, #tpu.memory_space<vmem>>, vector<128x384xbf16>
    %cst_103 = arith.constant dense<0.000000e+00> : vector<1x384xf32>
    %294 = tpu.matmul %292, %293, %cst_103 {dimension_numbers = #tpu.dot_dimension_numbers<[1], [0], [0], [1], [0, 0, 1, 1], [], []>} : vector<1x128xbf16>, vector<128x384xbf16>, vector<1x384xf32> -> vector<1x384xf32>
    %295 = arith.addf %294, %1 : vector<1x384xf32>
    %296 = vector.extract_strided_slice %291 {offsets = [0, 0], sizes = [1, 128], strides = [1, 1]} : vector<1x384xf32> to vector<1x128xf32>
    %297 = vector.extract_strided_slice %295 {offsets = [0, 0], sizes = [1, 128], strides = [1, 1]} : vector<1x384xf32> to vector<1x128xf32>
    %298 = arith.addf %296, %297 : vector<1x128xf32>
    %299 = arith.negf %298 : vector<1x128xf32>
    %300 = math.exp %299 : vector<1x128xf32>
    %cst_104 = arith.constant 1.000000e+00 : f32
    %301 = vector.broadcast %cst_104 : f32 to vector<1x128xf32>
    %302 = arith.addf %301, %300 : vector<1x128xf32>
    %303 = arith.divf %301, %302 : vector<1x128xf32>
    %304 = vector.extract_strided_slice %291 {offsets = [0, 128], sizes = [1, 128], strides = [1, 1]} : vector<1x384xf32> to vector<1x128xf32>
    %305 = vector.extract_strided_slice %295 {offsets = [0, 128], sizes = [1, 128], strides = [1, 1]} : vector<1x384xf32> to vector<1x128xf32>
    %306 = arith.addf %304, %305 : vector<1x128xf32>
    %307 = arith.negf %306 : vector<1x128xf32>
    %308 = math.exp %307 : vector<1x128xf32>
    %cst_105 = arith.constant 1.000000e+00 : f32
    %309 = vector.broadcast %cst_105 : f32 to vector<1x128xf32>
    %310 = arith.addf %309, %308 : vector<1x128xf32>
    %311 = arith.divf %309, %310 : vector<1x128xf32>
    %312 = vector.extract_strided_slice %291 {offsets = [0, 256], sizes = [1, 128], strides = [1, 1]} : vector<1x384xf32> to vector<1x128xf32>
    %313 = vector.extract_strided_slice %295 {offsets = [0, 256], sizes = [1, 128], strides = [1, 1]} : vector<1x384xf32> to vector<1x128xf32>
    %314 = arith.mulf %303, %313 : vector<1x128xf32>
    %315 = arith.addf %312, %314 : vector<1x128xf32>
    %316 = math.tanh %315 : vector<1x128xf32>
    %cst_106 = arith.constant 1.000000e+00 : f32
    %317 = vector.broadcast %cst_106 : f32 to vector<1x128xf32>
    %318 = arith.subf %317, %311 : vector<1x128xf32>
    %319 = arith.mulf %318, %316 : vector<1x128xf32>
    %320 = arith.mulf %311, %281 : vector<1x128xf32>
    %321 = arith.addf %319, %320 : vector<1x128xf32>
    %c7_107 = arith.constant 7 : index
    %c0_108 = arith.constant 0 : index
    %322 = vector.load %arg12[%c7_107, %c0_108] : memref<8x128xf32, #tpu.memory_space<vmem>>, vector<1x128xf32>
    tpu.vector_store %arg12[%c7_107, %c0_108], %321 {strides = array<i32>} : memref<8x128xf32, #tpu.memory_space<vmem>>, vector<1x128xf32>,
    %c0_109 = arith.constant 0 : index
    %c0_110 = arith.constant 0 : index
    %323 = vector.load %arg11[%c0_109, %c0_110] : memref<1x128xf32, #tpu.memory_space<vmem>>, vector<1x128xf32>
    tpu.vector_store %arg11[%c0_109, %c0_110], %321 {strides = array<i32>} : memref<1x128xf32, #tpu.memory_space<vmem>>, vector<1x128xf32>,
    %c0_111 = arith.constant 0 : index
    %c0_112 = arith.constant 0 : index
    %324 = vector.load %arg12[%c0_111, %c0_112] : memref<8x128xf32, #tpu.memory_space<vmem>>, vector<8x128xf32>
    %325 = arith.truncf %324 : vector<8x128xf32> to vector<8x128xbf16>
    %c0_113 = arith.constant 0 : index
    %c0_114 = arith.constant 0 : index
    %326 = vector.load %arg8[%c0_113, %c0_114] : memref<128x256xbf16, #tpu.memory_space<vmem>>, vector<128x256xbf16>
    %cst_115 = arith.constant dense<0.000000e+00> : vector<8x256xf32>
    %327 = tpu.matmul %325, %326, %cst_115 {dimension_numbers = #tpu.dot_dimension_numbers<[1], [0], [0], [1], [0, 0, 1, 1], [], []>} : vector<8x128xbf16>, vector<128x256xbf16>, vector<8x256xf32> -> vector<8x256xf32>
    %c0_116 = arith.constant 0 : index
    %c0_117 = arith.constant 0 : index
    %328 = vector.load %arg9[%c0_116, %c0_117] : memref<1x256xf32, #tpu.memory_space<vmem>>, vector<1x256xf32>
    %329 = vector.broadcast %328 : vector<1x256xf32> to vector<8x256xf32>
    %330 = arith.addf %327, %329 : vector<8x256xf32>
    %cst_118 = arith.constant dense<0xFF800000> : vector<8xf32>
    %331 = vector.multi_reduction <maximumf>, %330, %cst_118 [1] : vector<8x256xf32> to vector<8xf32>
    %332 = vector.shape_cast %331 : vector<8xf32> to vector<8x1xf32>
    %333 = vector.broadcast %332 : vector<8x1xf32> to vector<8x256xf32>
    %334 = arith.subf %330, %333 : vector<8x256xf32>
    %335 = math.exp %334 : vector<8x256xf32>
    %cst_119 = arith.constant dense<0.000000e+00> : vector<8xf32>
    %336 = vector.multi_reduction <add>, %335, %cst_119 [1] : vector<8x256xf32> to vector<8xf32>
    %337 = vector.shape_cast %336 : vector<8xf32> to vector<8x1xf32>
    %338 = math.log %337 : vector<8x1xf32>
    %339 = arith.addf %338, %332 : vector<8x1xf32>
    %340 = vector.broadcast %339 : vector<8x1xf32> to vector<8x256xf32>
    %341 = arith.subf %330, %340 : vector<8x256xf32>
    %c0_120 = arith.constant 0 : index
    %c0_121 = arith.constant 0 : index
    %342 = vector.load %arg10[%c0_120, %c0_121] : memref<8x256xf32, #tpu.memory_space<vmem>>, vector<8x256xf32>
    tpu.vector_store %arg10[%c0_120, %c0_121], %341 {strides = array<i32>} : memref<8x256xf32, #tpu.memory_space<vmem>>, vector<8x256xf32>,
    return
  }
  func.func @transform_0(%arg0: i32, %arg1: memref<8xi32, #tpu.memory_space<smem>>) -> (i32, i32) {
    %c0_i32 = arith.constant 0 : i32
    %c0_i32_0 = arith.constant 0 : i32
    %c0_i32_1 = arith.constant 0 : i32
    return %c0_i32, %c0_i32_0 : i32, i32
  }
  func.func @transform_1(%arg0: i32, %arg1: memref<8xi32, #tpu.memory_space<smem>>) -> (i32, i32) {
    %c0_i32 = arith.constant 0 : i32
    %c0_i32_0 = arith.constant 0 : i32
    %c0_i32_1 = arith.constant 0 : i32
    return %c0_i32, %c0_i32_0 : i32, i32
  }
  func.func @transform_2(%arg0: i32, %arg1: memref<8xi32, #tpu.memory_space<smem>>) -> (i32, i32) {
    %c0_i32 = arith.constant 0 : i32
    %c0_i32_0 = arith.constant 0 : i32
    %c0_i32_1 = arith.constant 0 : i32
    return %c0_i32, %c0_i32_0 : i32, i32
  }
  func.func @transform_3(%arg0: i32, %arg1: memref<8xi32, #tpu.memory_space<smem>>) -> (i32, i32) {
    %c0_i32 = arith.constant 0 : i32
    %c0_i32_0 = arith.constant 0 : i32
    %c0_i32_1 = arith.constant 0 : i32
    return %c0_i32, %c0_i32_0 : i32, i32
  }
  func.func @transform_4(%arg0: i32, %arg1: memref<8xi32, #tpu.memory_space<smem>>) -> (i32, i32) {
    %c0_i32 = arith.constant 0 : i32
    %c0_i32_0 = arith.constant 0 : i32
    %c0_i32_1 = arith.constant 0 : i32
    return %c0_i32, %c0_i32_0 : i32, i32
  }
  func.func @transform_5(%arg0: i32, %arg1: memref<8xi32, #tpu.memory_space<smem>>) -> (i32, i32) {
    %c0_i32 = arith.constant 0 : i32
    %c0_i32_0 = arith.constant 0 : i32
    %c0_i32_1 = arith.constant 0 : i32
    return %c0_i32, %c0_i32_0 : i32, i32
  }
  func.func @transform_6(%arg0: i32, %arg1: memref<8xi32, #tpu.memory_space<smem>>) -> (i32, i32) {
    %c0_i32 = arith.constant 0 : i32
    %c0_i32_0 = arith.constant 0 : i32
    %c0_i32_1 = arith.constant 0 : i32
    return %c0_i32, %c0_i32_0 : i32, i32
  }
  func.func @transform_7(%arg0: i32, %arg1: memref<8xi32, #tpu.memory_space<smem>>) -> (i32, i32) {
    %c0_i32 = arith.constant 0 : i32
    %c0_i32_0 = arith.constant 0 : i32
    %c0_i32_1 = arith.constant 0 : i32
    return %c0_i32, %c0_i32_0 : i32, i32
  }
  func.func @transform_8(%arg0: i32, %arg1: memref<8xi32, #tpu.memory_space<smem>>) -> (i32, i32) {
    %c0_i32 = arith.constant 0 : i32
    %c0_i32_0 = arith.constant 0 : i32
    %c0_i32_1 = arith.constant 0 : i32
    return %c0_i32, %c0_i32_0 : i32, i32
  }
  func.func @transform_9(%arg0: i32, %arg1: memref<8xi32, #tpu.memory_space<smem>>) -> (i32, i32) {
    %c0_i32 = arith.constant 0 : i32
    %c0_i32_0 = arith.constant 0 : i32
    %c0_i32_1 = arith.constant 0 : i32
    return %c0_i32, %c0_i32_0 : i32, i32
  }
}

</mosaic_0001>

<llo_original>
// kernel: decoder_rnn_decode.1
$region0: #{decoder_rnn_decode.1}
  #allocation0 [shape = 'u32[]', space=smem, size = 0x4, offset = 0x4, fixed_abs, tag = 'smem constant byte address 0x4 - core index']
  #allocation1 [shape = 'u32[144,128]{1,0:T(1,128)}', space=vmem, size = 0x12000, scoped, tag = 'internal scratch']
  #allocation2 [shape = 'f32[8,128]{1,0:T(8,128)}', space=vmem, size = 0x1000, scoped, tag = 'scratch operand']
  #allocation3 [shape = 's32[1]{0}', space=sflag, size = 0x4, scoped, tag = 'scoped memory for decoder_rnn_decode.1']
  #allocation4 [shape = 'u8[512]{0}', space=smem, size = 0x200, scoped, tag = 'prefetched SMEM operand 0']
  %s0 = inlined_call_operand.vmem [shape: s32[8], index: 0, kind: input, shape index: {}]
  %s1 = inlined_call_operand.hbm [shape: f32[256,128], index: 1, kind: input, shape index: {}]
  %s2 = inlined_call_operand.hbm [shape: f32[1,128], index: 2, kind: input, shape index: {}]
  %s3 = inlined_call_operand.hbm [shape: bf16[128,384], index: 3, kind: input, shape index: {}]
  %s4 = inlined_call_operand.hbm [shape: bf16[128,384], index: 4, kind: input, shape index: {}]
  %s5 = inlined_call_operand.vmem [shape: f32[1,384], index: 5, kind: input, shape index: {}]
  %s6 = inlined_call_operand.vmem [shape: f32[1,384], index: 6, kind: input, shape index: {}]
  %s7 = inlined_call_operand.hbm [shape: bf16[128,256], index: 7, kind: input, shape index: {}]
  %s8 = inlined_call_operand.vmem [shape: f32[1,256], index: 8, kind: input, shape index: {}]
  %s9 = inlined_call_operand.hbm [shape: f32[8,256], index: 9, kind: output, shape index: {0}]
  %s10 = inlined_call_operand.hbm [shape: f32[1,128], index: 10, kind: output, shape index: {1}]
  %11 = xla_tuple %s9, %s10
  %s12 = sld [smem:[#allocation0]]
  $region70: #{decoder_rnn_decode.1} parent=0
    _
  %s14 = ssub.s32 1, %s12
  %s15 = scalar_select 0, %s14, %s12
  %s16 = sshll.u32 %s0, 4
  %s17 = int_to_ptr.vmem [resolvable:$true] %s16
  %19 = dma.vmem_to_smem %s17, 16, [#allocation4], [#allocation3]
  %20 = dma.done [#allocation3], 16
  %21 = sfence
  $region1: #{decoder_rnn_decode.1} parent=0
    #allocation5 [shape = 'u8[131072]{0}', space=vmem, size = 0x20000, scoped, tag = 'input window, operand 1, single buffered']
    #allocation6 [shape = 's32[1]{0}', space=sflag, size = 0x4, scoped, tag = 'scoped memory for decoder_rnn_decode.1']
    #allocation7 [shape = 's32[1]{0}', space=sflag, size = 0x4, scoped, tag = 'scoped memory for decoder_rnn_decode.1']
    #allocation8 [shape = 'u8[512]{0}', space=vmem, size = 0x400, scoped, tag = 'input window, operand 2, single buffered']
    #allocation9 [shape = 's32[1]{0}', space=sflag, size = 0x4, scoped, tag = 'scoped memory for decoder_rnn_decode.1']
    #allocation10 [shape = 'u8[98304]{0}', space=vmem, size = 0x18000, scoped, tag = 'input window, operand 3, single buffered']
    #allocation11 [shape = 'u8[98304]{0}', space=vmem, size = 0x18000, scoped, tag = 'input window, operand 4, single buffered']
    #allocation12 [shape = 's32[1]{0}', space=sflag, size = 0x4, scoped, tag = 'scoped memory for decoder_rnn_decode.1']
    #allocation13 [shape = 'u8[65536]{0}', space=vmem, size = 0x10000, scoped, tag = 'input window, operand 7, single buffered']
    #allocation14 [shape = 'u8[8192]{0}', space=vmem, size = 0x2000, scoped, tag = 'output window, operand 0, single buffered']
    #allocation15 [shape = 'u8[512]{0}', space=vmem, size = 0x400, scoped, tag = 'output window, operand 1, single buffered']
    #allocation16 [shape = 's32[1]{0}', space=sflag, size = 0x4, scoped, tag = 'scoped memory for decoder_rnn_decode.1']
    %22 = vsyncpa [#allocation6], 0
    %23 = vsyncpa [#allocation9], 0
    %24 = vsyncpa [#allocation12], 0
    %25 = vsyncpa [#allocation7], 0
    %26 = vsyncpa [#allocation16], 0
    // Predicated region
    $region2: #{decoder_rnn_decode.1} parent=1 // pred_check
      _
    $region3: #{decoder_rnn_decode.1} parent=1 // pred_check_branch
      %28 = sbr.rel (0) target = $region5
    $region4: #{decoder_rnn_decode.1} parent=1 // pred_region
      %s30 = ssub.s32 4096, 4096
      %31 = vsyncadd [#allocation6], %s30
      %s32 = sshll.u32 [#allocation5], 4
      %s33 = int_to_ptr.vmem [resolvable:$true] %s32
      %38 = dma.hbm_to_vmem [thread:$0]  %s1, 4096, %s33, [#allocation6], 128, 128, 8
    $region5: #{decoder_rnn_decode.1} parent=1 // pred_fallthru
      _
    // Predicated region
    $region6: #{decoder_rnn_decode.1} parent=1 // pred_check
      _
    $region7: #{decoder_rnn_decode.1} parent=1 // pred_check_branch
      %40 = sbr.rel (0) target = $region9
    $region8: #{decoder_rnn_decode.1} parent=1 // pred_region
      %s42 = ssub.s32 16, 16
      %43 = vsyncadd [#allocation9], %s42
      %s45 = sshll.u32 [#allocation8], 4
      %s46 = int_to_ptr.vmem [resolvable:$true] %s45
      %48 = dma.hbm_to_vmem [thread:$0]  %s2, 16, %s46, [#allocation9]
    $region9: #{decoder_rnn_decode.1} parent=1 // pred_fallthru
      _
    // Predicated region
    $region10: #{decoder_rnn_decode.1} parent=1 // pred_check
      _
    $region11: #{decoder_rnn_decode.1} parent=1 // pred_check_branch
      %50 = sbr.rel (0) target = $region13
    $region12: #{decoder_rnn_decode.1} parent=1 // pred_region
      %s52 = ssub.s32 3072, 3072
      %53 = vsyncadd [#allocation9], %s52
      %s54 = sshll.u32 [#allocation10], 4
      %s55 = int_to_ptr.vmem [resolvable:$true] %s54
      %60 = dma.hbm_to_vmem [thread:$0]  %s3, 3072, %s55, [#allocation9], 192, 192, 12
    $region13: #{decoder_rnn_decode.1} parent=1 // pred_fallthru
      _
    // Predicated region
    $region14: #{decoder_rnn_decode.1} parent=1 // pred_check
      _
    $region15: #{decoder_rnn_decode.1} parent=1 // pred_check_branch
      %62 = sbr.rel (0) target = $region17
    $region16: #{decoder_rnn_decode.1} parent=1 // pred_region
      %s64 = ssub.s32 3072, 3072
      %65 = vsyncadd [#allocation12], %s64
      %s66 = sshll.u32 [#allocation11], 4
      %s67 = int_to_ptr.vmem [resolvable:$true] %s66
      %72 = dma.hbm_to_vmem [thread:$0]  %s4, 3072, %s67, [#allocation12], 192, 192, 12
    $region17: #{decoder_rnn_decode.1} parent=1 // pred_fallthru
      _
    // Predicated region
    $region18: #{decoder_rnn_decode.1} parent=1 // pred_check
      _
    $region19: #{decoder_rnn_decode.1} parent=1 // pred_check_branch
      %74 = sbr.rel (0) target = $region21
    $region20: #{decoder_rnn_decode.1} parent=1 // pred_region
      _
    $region21: #{decoder_rnn_decode.1} parent=1 // pred_fallthru
      _
    // Predicated region
    $region22: #{decoder_rnn_decode.1} parent=1 // pred_check
      _
    $region23: #{decoder_rnn_decode.1} parent=1 // pred_check_branch
      %76 = sbr.rel (0) target = $region25
    $region24: #{decoder_rnn_decode.1} parent=1 // pred_region
      _
    $region25: #{decoder_rnn_decode.1} parent=1 // pred_fallthru
      _
    // Predicated region
    $region26: #{decoder_rnn_decode.1} parent=1 // pred_check
      _
    $region27: #{decoder_rnn_decode.1} parent=1 // pred_check_branch
      %78 = sbr.rel (0) target = $region29
    $region28: #{decoder_rnn_decode.1} parent=1 // pred_region
      %s80 = ssub.s32 2048, 2048
      %81 = vsyncadd [#allocation12], %s80
      %s82 = sshll.u32 [#allocation13], 4
      %s83 = int_to_ptr.vmem [resolvable:$true] %s82
      %88 = dma.hbm_to_vmem [thread:$0]  %s7, 2048, %s83, [#allocation12], 128, 128, 8
    $region29: #{decoder_rnn_decode.1} parent=1 // pred_fallthru
      _
    // Predicated region
    $region30: #{decoder_rnn_decode.1} parent=1 // pred_check
      _
    $region31: #{decoder_rnn_decode.1} parent=1 // pred_check_branch
      %90 = sbr.rel (0) target = $region33
    $region32: #{decoder_rnn_decode.1} parent=1 // pred_region
      _
    $region33: #{decoder_rnn_decode.1} parent=1 // pred_fallthru
      _
    // Predicated region
    $region34: #{decoder_rnn_decode.1} parent=1 // pred_check
      _
    $region35: #{decoder_rnn_decode.1} parent=1 // pred_check_branch
      %92 = sbr.rel (0) target = $region37
    $region36: #{decoder_rnn_decode.1} parent=1 // pred_region
      %93 = dma.done [#allocation6], 4096
    $region37: #{decoder_rnn_decode.1} parent=1 // pred_fallthru
      _
    // Predicated region
    $region38: #{decoder_rnn_decode.1} parent=1 // pred_check
      _
    $region39: #{decoder_rnn_decode.1} parent=1 // pred_check_branch
      %95 = sbr.rel (0) target = $region41
    $region40: #{decoder_rnn_decode.1} parent=1 // pred_region
      %96 = dma.done [#allocation9], 16
    $region41: #{decoder_rnn_decode.1} parent=1 // pred_fallthru
      _
    // Predicated region
    $region42: #{decoder_rnn_decode.1} parent=1 // pred_check
      _
    $region43: #{decoder_rnn_decode.1} parent=1 // pred_check_branch
      %98 = sbr.rel (0) target = $region45
    $region44: #{decoder_rnn_decode.1} parent=1 // pred_region
      %99 = dma.done [#allocation9], 3072
    $region45: #{decoder_rnn_decode.1} parent=1 // pred_fallthru
      _
    // Predicated region
    $region46: #{decoder_rnn_decode.1} parent=1 // pred_check
      _
    $region47: #{decoder_rnn_decode.1} parent=1 // pred_check_branch
      %101 = sbr.rel (0) target = $region49
    $region48: #{decoder_rnn_decode.1} parent=1 // pred_region
      %102 = dma.done [#allocation12], 3072
    $region49: #{decoder_rnn_decode.1} parent=1 // pred_fallthru
      _
    // Predicated region
    $region50: #{decoder_rnn_decode.1} parent=1 // pred_check
      _
    $region51: #{decoder_rnn_decode.1} parent=1 // pred_check_branch
      %104 = sbr.rel (0) target = $region53
    $region52: #{decoder_rnn_decode.1} parent=1 // pred_region
      %105 = dma.done [#allocation12], 2048
    $region53: #{decoder_rnn_decode.1} parent=1 // pred_fallthru
      _
    %v107 = vld [vmem:[%s5] sm:$0x7]
    %v108 = vld [vmem:[%s6] sm:$0x7]
    %v109 = vld [vmem:[#allocation8] sm:$0x1]
    %s110 = sld [smem:[#allocation4]]
    %s111 = scalar_lea.vmem [#allocation5], %s110
    %v112 = vld [vmem:[%s111] sm:$0x1]
    %v113 = vmax.f32 %v112, 0.0
    %v114 = vpack.c.bf16 %v113, %v113
    %v115 = vld [vmem:[#allocation10] sm:$0xff]
    %v116 = vld [vmem:[#allocation10 + $0x8] sm:$0xf]
    %v117 = vld [vmem:[#allocation10 + $0xc] sm:$0xff]
    %v118 = vld [vmem:[#allocation10 + $0x14] sm:$0xf]
    %v119 = vld [vmem:[#allocation10 + $0x18] sm:$0xff]
    %v120 = vld [vmem:[#allocation10 + $0x20] sm:$0xf]
    %v121 = vld [vmem:[#allocation10 + $0x24] sm:$0xff]
    %v122 = vld [vmem:[#allocation10 + $0x2c] sm:$0xf]
    %v123 = vld [vmem:[#allocation10 + $0x30] sm:$0xff]
    %v124 = vld [vmem:[#allocation10 + $0x38] sm:$0xf]
    %v125 = vld [vmem:[#allocation10 + $0x3c] sm:$0xff]
    %v126 = vld [vmem:[#allocation10 + $0x44] sm:$0xf]
    %v127 = vld [vmem:[#allocation10 + $0x48] sm:$0xff]
    %v128 = vld [vmem:[#allocation10 + $0x50] sm:$0xf]
    %v129 = vld [vmem:[#allocation10 + $0x54] sm:$0xff]
    %v130 = vld [vmem:[#allocation10 + $0x5c] sm:$0xf]
    %v131 = vld [vmem:[#allocation10 + $0x60] sm:$0xff]
    %v132 = vld [vmem:[#allocation10 + $0x68] sm:$0xf]
    %v133 = vld [vmem:[#allocation10 + $0x6c] sm:$0xff]
    %v134 = vld [vmem:[#allocation10 + $0x74] sm:$0xf]
    %v135 = vld [vmem:[#allocation10 + $0x78] sm:$0xff]
    %v136 = vld [vmem:[#allocation10 + $0x80] sm:$0xf]
    %v137 = vld [vmem:[#allocation10 + $0x84] sm:$0xff]
    %v138 = vld [vmem:[#allocation10 + $0x8c] sm:$0xf]
    %v139 = vld [vmem:[#allocation10 + $0x90] sm:$0xff]
    %v140 = vld [vmem:[#allocation10 + $0x98] sm:$0xf]
    %v141 = vld [vmem:[#allocation10 + $0x9c] sm:$0xff]
    %v142 = vld [vmem:[#allocation10 + $0xa4] sm:$0xf]
    %v143 = vld [vmem:[#allocation10 + $0xa8] sm:$0xff]
    %v144 = vld [vmem:[#allocation10 + $0xb0] sm:$0xf]
    %v145 = vld [vmem:[#allocation10 + $0xb4] sm:$0xff]
    %v146 = vld [vmem:[#allocation10 + $0xbc] sm:$0xf]
    %v179 = vunpack.c.l.b16 %v115
    %v180 = vunpack.c.h.b16 %v115
    %v181 = vunpack.c.l.b16 %v116
    %v182 = vunpack.c.l.b16 %v117
    %v183 = vunpack.c.h.b16 %v117
    %v184 = vunpack.c.l.b16 %v118
    %v185 = vunpack.c.l.b16 %v119
    %v186 = vunpack.c.h.b16 %v119
    %v187 = vunpack.c.l.b16 %v120
    %v188 = vunpack.c.l.b16 %v121
    %v189 = vunpack.c.h.b16 %v121
    %v190 = vunpack.c.l.b16 %v122
    %v191 = vunpack.c.l.b16 %v123
    %v192 = vunpack.c.h.b16 %v123
    %v193 = vunpack.c.l.b16 %v124
    %v194 = vunpack.c.l.b16 %v125
    %v195 = vunpack.c.h.b16 %v125
    %v196 = vunpack.c.l.b16 %v126
    %v197 = vunpack.c.l.b16 %v127
    %v198 = vunpack.c.h.b16 %v127
    %v199 = vunpack.c.l.b16 %v128
    %v200 = vunpack.c.l.b16 %v129
    %v201 = vunpack.c.h.b16 %v129
    %v202 = vunpack.c.l.b16 %v130
    %v203 = vunpack.c.l.b16 %v131
    %v204 = vunpack.c.h.b16 %v131
    %v205 = vunpack.c.l.b16 %v132
    %v206 = vunpack.c.l.b16 %v133
    %v207 = vunpack.c.h.b16 %v133
    %v208 = vunpack.c.l.b16 %v134
    %v209 = vunpack.c.l.b16 %v135
    %v210 = vunpack.c.h.b16 %v135
    %v211 = vunpack.c.l.b16 %v136
    %v212 = vunpack.c.l.b16 %v137
    %v213 = vunpack.c.h.b16 %v137
    %v214 = vunpack.c.l.b16 %v138
    %v215 = vunpack.c.l.b16 %v139
    %v216 = vunpack.c.h.b16 %v139
    %v217 = vunpack.c.l.b16 %v140
    %v218 = vunpack.c.l.b16 %v141
    %v219 = vunpack.c.h.b16 %v141
    %v220 = vunpack.c.l.b16 %v142
    %v221 = vunpack.c.l.b16 %v143
    %v222 = vunpack.c.h.b16 %v143
    %v223 = vunpack.c.l.b16 %v144
    %v224 = vunpack.c.l.b16 %v145
    %v225 = vunpack.c.h.b16 %v145
    %v226 = vunpack.c.l.b16 %v146
    %v227 = vpack.c.b16 %v182, %v179
    %v228 = vpack.c.b16 %v183, %v180
    %v229 = vpack.c.b16 %v184, %v181
    %v230 = vpack.c.b16 %v188, %v185
    %v231 = vpack.c.b16 %v189, %v186
    %v232 = vpack.c.b16 %v190, %v187
    %v233 = vpack.c.b16 %v194, %v191
    %v234 = vpack.c.b16 %v195, %v192
    %v235 = vpack.c.b16 %v196, %v193
    %v236 = vpack.c.b16 %v200, %v197
    %v237 = vpack.c.b16 %v201, %v198
    %v238 = vpack.c.b16 %v202, %v199
    %v239 = vpack.c.b16 %v206, %v203
    %v240 = vpack.c.b16 %v207, %v204
    %v241 = vpack.c.b16 %v208, %v205
    %v242 = vpack.c.b16 %v212, %v209
    %v243 = vpack.c.b16 %v213, %v210
    %v244 = vpack.c.b16 %v214, %v211
    %v245 = vpack.c.b16 %v218, %v215
    %v246 = vpack.c.b16 %v219, %v216
    %v247 = vpack.c.b16 %v220, %v217
    %v248 = vpack.c.b16 %v224, %v221
    %v249 = vpack.c.b16 %v225, %v222
    %v250 = vpack.c.b16 %v226, %v223
    %v276 = vlaneseq
    %v277 = vshrl.u32 %v276, 7
    %v278 = vsub.s32 0, %v277
    %v279 = vrot.slane %v107, %v278
    %v280 = vlaneseq
    %v281 = vshrl.u32 %v280, 7
    %v282 = vsub.s32 1, %v281
    %v283 = vrot.slane %v107, %v282
    %v284 = vlaneseq
    %v285 = vshrl.u32 %v284, 7
    %v286 = vsub.s32 2, %v285
    %v287 = vrot.slane %v107, %v286
    %291 = vmatprep.subr.bf16.mxu0 %v228
    %292 = vmatpush1.bf16.msra.mxu0 %v227
    %293 = vmatprep.subr.bf16.mxu0 %v231
    %294 = vmatpush1.bf16.msra.mxu0 %v230
    %295 = vmatprep.subr.bf16.mxu0 %v234
    %296 = vmatpush1.bf16.msra.mxu0 %v233
    %297 = vmatprep.subr.bf16.mxu0 %v237
    %298 = vmatpush1.bf16.msra.mxu0 %v236
    %299 = vmatprep.subr.bf16.mxu0 %v240
    %300 = vmatpush1.bf16.msra.mxu0 %v239
    %301 = vmatprep.subr.bf16.mxu0 %v243
    %302 = vmatpush1.bf16.msra.mxu0 %v242
    %303 = vmatprep.subr.bf16.mxu0 %v246
    %304 = vmatpush1.bf16.msra.mxu0 %v245
    %305 = vmatprep.subr.bf16.mxu0 %v249
    %306 = vmatpush1.bf16.msra.mxu0 %v248
    %307 = vmatprep.subr.bf16.mxu0 0
    %308 = vmatpush1.bf16.msra.mxu0 0
    %309 = vmatprep.subr.bf16.mxu0 0
    %310 = vmatpush1.bf16.msra.mxu0 0
    %311 = vmatprep.subr.bf16.mxu0 0
    %312 = vmatpush1.bf16.msra.mxu0 0
    %313 = vmatprep.subr.bf16.mxu0 0
    %314 = vmatpush1.bf16.msra.mxu0 0
    %315 = vmatprep.subr.bf16.mxu0 0
    %316 = vmatpush1.bf16.msra.mxu0 0
    %317 = vmatprep.subr.bf16.mxu0 0
    %318 = vmatpush1.bf16.msra.mxu0 0
    %319 = vmatprep.subr.bf16.mxu0 0
    %320 = vmatpush1.bf16.msra.mxu0 0
    %321 = vmatprep.subr.bf16.mxu0 0
    %322 = vmatpush1.bf16.msra.mxu0 0
    %323 = vmatprep.mubr.bf16.mxu0 0
    %324 = vmatmul.mubr.bf16.gmra.mrb[0].mxu0 %v114
    %v325 = vpop.f32.mrb[0].mxu0
    %v326 = vadd.f32 %v279, %v325
    %v327 = vpop.f32.mrb[0].mxu0
    %v328 = vadd.f32 %v283, %v327
    %v329 = vpop.f32.mrb[0].mxu0
    %v330 = vpop.f32.mrb[0].mxu0
    %331 = vdwg.mxu0
    %332 = vmatprep.subr.bf16.mxu0 0
    %333 = vmatpush1.bf16.msra.mxu0 %v229
    %334 = vmatprep.subr.bf16.mxu0 0
    %335 = vmatpush1.bf16.msra.mxu0 %v232
    %336 = vmatprep.subr.bf16.mxu0 0
    %337 = vmatpush1.bf16.msra.mxu0 %v235
    %338 = vmatprep.subr.bf16.mxu0 0
    %339 = vmatpush1.bf16.msra.mxu0 %v238
    %340 = vmatprep.subr.bf16.mxu0 0
    %341 = vmatpush1.bf16.msra.mxu0 %v241
    %342 = vmatprep.subr.bf16.mxu0 0
    %343 = vmatpush1.bf16.msra.mxu0 %v244
    %344 = vmatprep.subr.bf16.mxu0 0
    %345 = vmatpush1.bf16.msra.mxu0 %v247
    %346 = vmatprep.subr.bf16.mxu0 0
    %347 = vmatpush1.bf16.msra.mxu0 %v250
    %348 = vmatprep.subr.bf16.mxu0 0
    %349 = vmatpush1.bf16.msra.mxu0 0
    %350 = vmatprep.subr.bf16.mxu0 0
    %351 = vmatpush1.bf16.msra.mxu0 0
    %352 = vmatprep.subr.bf16.mxu0 0
    %353 = vmatpush1.bf16.msra.mxu0 0
    %354 = vmatprep.subr.bf16.mxu0 0
    %355 = vmatpush1.bf16.msra.mxu0 0
    %356 = vmatprep.subr.bf16.mxu0 0
    %357 = vmatpush1.bf16.msra.mxu0 0
    %358 = vmatprep.subr.bf16.mxu0 0
    %359 = vmatpush1.bf16.msra.mxu0 0
    %360 = vmatprep.subr.bf16.mxu0 0
    %361 = vmatpush1.bf16.msra.mxu0 0
    %362 = vmatprep.subr.bf16.mxu0 0
    %363 = vmatpush1.bf16.msra.mxu0 0
    %364 = vmatprep.mubr.bf16.mxu0 0
    %365 = vmatmul.mubr.bf16.gmra.mrb[0].mxu0 %v114
    %v366 = vpop.f32.mrb[0].mxu0
    %v367 = vadd.f32 %v287, %v366
    %v368 = vpop.f32.mrb[0].mxu0
    %v369 = vpop.f32.mrb[0].mxu0
    %v370 = vpop.f32.mrb[0].mxu0
    %371 = vdwg.mxu0
    %v372 = vpack.c.bf16 %v109, %v109
    %v373 = vld [vmem:[#allocation11] sm:$0xff]
    %v374 = vld [vmem:[#allocation11 + $0x8] sm:$0xf]
    %v375 = vld [vmem:[#allocation11 + $0xc] sm:$0xff]
    %v376 = vld [vmem:[#allocation11 + $0x14] sm:$0xf]
    %v377 = vld [vmem:[#allocation11 + $0x18] sm:$0xff]
    %v378 = vld [vmem:[#allocation11 + $0x20] sm:$0xf]
    %v379 = vld [vmem:[#allocation11 + $0x24] sm:$0xff]
    %v380 = vld [vmem:[#allocation11 + $0x2c] sm:$0xf]
    %v381 = vld [vmem:[#allocation11 + $0x30] sm:$0xff]
    %v382 = vld [vmem:[#allocation11 + $0x38] sm:$0xf]
    %v383 = vld [vmem:[#allocation11 + $0x3c] sm:$0xff]
    %v384 = vld [vmem:[#allocation11 + $0x44] sm:$0xf]
    %v385 = vld [vmem:[#allocation11 + $0x48] sm:$0xff]
    %v386 = vld [vmem:[#allocation11 + $0x50] sm:$0xf]
    %v387 = vld [vmem:[#allocation11 + $0x54] sm:$0xff]
    %v388 = vld [vmem:[#allocation11 + $0x5c] sm:$0xf]
    %v389 = vld [vmem:[#allocation11 + $0x60] sm:$0xff]
    %v390 = vld [vmem:[#allocation11 + $0x68] sm:$0xf]
    %v391 = vld [vmem:[#allocation11 + $0x6c] sm:$0xff]
    %v392 = vld [vmem:[#allocation11 + $0x74] sm:$0xf]
    %v393 = vld [vmem:[#allocation11 + $0x78] sm:$0xff]
    %v394 = vld [vmem:[#allocation11 + $0x80] sm:$0xf]
    %v395 = vld [vmem:[#allocation11 + $0x84] sm:$0xff]
    %v396 = vld [vmem:[#allocation11 + $0x8c] sm:$0xf]
    %v397 = vld [vmem:[#allocation11 + $0x90] sm:$0xff]
    %v398 = vld [vmem:[#allocation11 + $0x98] sm:$0xf]
    %v399 = vld [vmem:[#allocation11 + $0x9c] sm:$0xff]
    %v400 = vld [vmem:[#allocation11 + $0xa4] sm:$0xf]
    %v401 = vld [vmem:[#allocation11 + $0xa8] sm:$0xff]
    %v402 = vld [vmem:[#allocation11 + $0xb0] sm:$0xf]
    %v403 = vld [vmem:[#allocation11 + $0xb4] sm:$0xff]
    %v404 = vld [vmem:[#allocation11 + $0xbc] sm:$0xf]
    %v437 = vunpack.c.l.b16 %v373
    %v438 = vunpack.c.h.b16 %v373
    %v439 = vunpack.c.l.b16 %v374
    %v440 = vunpack.c.l.b16 %v375
    %v441 = vunpack.c.h.b16 %v375
    %v442 = vunpack.c.l.b16 %v376
    %v443 = vunpack.c.l.b16 %v377
    %v444 = vunpack.c.h.b16 %v377
    %v445 = vunpack.c.l.b16 %v378
    %v446 = vunpack.c.l.b16 %v379
    %v447 = vunpack.c.h.b16 %v379
    %v448 = vunpack.c.l.b16 %v380
    %v449 = vunpack.c.l.b16 %v381
    %v450 = vunpack.c.h.b16 %v381
    %v451 = vunpack.c.l.b16 %v382
    %v452 = vunpack.c.l.b16 %v383
    %v453 = vunpack.c.h.b16 %v383
    %v454 = vunpack.c.l.b16 %v384
    %v455 = vunpack.c.l.b16 %v385
    %v456 = vunpack.c.h.b16 %v385
    %v457 = vunpack.c.l.b16 %v386
    %v458 = vunpack.c.l.b16 %v387
    %v459 = vunpack.c.h.b16 %v387
    %v460 = vunpack.c.l.b16 %v388
    %v461 = vunpack.c.l.b16 %v389
    %v462 = vunpack.c.h.b16 %v389
    %v463 = vunpack.c.l.b16 %v390
    %v464 = vunpack.c.l.b16 %v391
    %v465 = vunpack.c.h.b16 %v391
    %v466 = vunpack.c.l.b16 %v392
    %v467 = vunpack.c.l.b16 %v393
    %v468 = vunpack.c.h.b16 %v393
    %v469 = vunpack.c.l.b16 %v394
    %v470 = vunpack.c.l.b16 %v395
    %v471 = vunpack.c.h.b16 %v395
    %v472 = vunpack.c.l.b16 %v396
    %v473 = vunpack.c.l.b16 %v397
    %v474 = vunpack.c.h.b16 %v397
    %v475 = vunpack.c.l.b16 %v398
    %v476 = vunpack.c.l.b16 %v399
    %v477 = vunpack.c.h.b16 %v399
    %v478 = vunpack.c.l.b16 %v400
    %v479 = vunpack.c.l.b16 %v401
    %v480 = vunpack.c.h.b16 %v401
    %v481 = vunpack.c.l.b16 %v402
    %v482 = vunpack.c.l.b16 %v403
    %v483 = vunpack.c.h.b16 %v403
    %v484 = vunpack.c.l.b16 %v404
    %v485 = vpack.c.b16 %v440, %v437
    %v486 = vpack.c.b16 %v441, %v438
    %v487 = vpack.c.b16 %v442, %v439
    %v488 = vpack.c.b16 %v446, %v443
    %v489 = vpack.c.b16 %v447, %v444
    %v490 = vpack.c.b16 %v448, %v445
    %v491 = vpack.c.b16 %v452, %v449
    %v492 = vpack.c.b16 %v453, %v450
    %v493 = vpack.c.b16 %v454, %v451
    %v494 = vpack.c.b16 %v458, %v455
    %v495 = vpack.c.b16 %v459, %v456
    %v496 = vpack.c.b16 %v460, %v457
    %v497 = vpack.c.b16 %v464, %v461
    %v498 = vpack.c.b16 %v465, %v462
    %v499 = vpack.c.b16 %v466, %v463
    %v500 = vpack.c.b16 %v470, %v467
    %v501 = vpack.c.b16 %v471, %v468
    %v502 = vpack.c.b16 %v472, %v469
    %v503 = vpack.c.b16 %v476, %v473
    %v504 = vpack.c.b16 %v477, %v474
    %v505 = vpack.c.b16 %v478, %v475
    %v506 = vpack.c.b16 %v482, %v479
    %v507 = vpack.c.b16 %v483, %v480
    %v508 = vpack.c.b16 %v484, %v481
    %v534 = vlaneseq
    %v535 = vshrl.u32 %v534, 7
    %v536 = vsub.s32 0, %v535
    %v537 = vrot.slane %v108, %v536
    %v538 = vlaneseq
    %v539 = vshrl.u32 %v538, 7
    %v540 = vsub.s32 1, %v539
    %v541 = vrot.slane %v108, %v540
    %v542 = vlaneseq
    %v543 = vshrl.u32 %v542, 7
    %v544 = vsub.s32 2, %v543
    %v545 = vrot.slane %v108, %v544
    %549 = vmatprep.subr.bf16.mxu0 %v486
    %550 = vmatpush1.bf16.msra.mxu0 %v485
    %551 = vmatprep.subr.bf16.mxu0 %v489
    %552 = vmatpush1.bf16.msra.mxu0 %v488
    %553 = vmatprep.subr.bf16.mxu0 %v492
    %554 = vmatpush1.bf16.msra.mxu0 %v491
    %555 = vmatprep.subr.bf16.mxu0 %v495
    %556 = vmatpush1.bf16.msra.mxu0 %v494
    %557 = vmatprep.subr.bf16.mxu0 %v498
    %558 = vmatpush1.bf16.msra.mxu0 %v497
    %559 = vmatprep.subr.bf16.mxu0 %v501
    %560 = vmatpush1.bf16.msra.mxu0 %v500
    %561 = vmatprep.subr.bf16.mxu0 %v504
    %562 = vmatpush1.bf16.msra.mxu0 %v503
    %563 = vmatprep.subr.bf16.mxu0 %v507
    %564 = vmatpush1.bf16.msra.mxu0 %v506
    %565 = vmatprep.subr.bf16.mxu0 0
    %566 = vmatpush1.bf16.msra.mxu0 0
    %567 = vmatprep.subr.bf16.mxu0 0
    %568 = vmatpush1.bf16.msra.mxu0 0
    %569 = vmatprep.subr.bf16.mxu0 0
    %570 = vmatpush1.bf16.msra.mxu0 0
    %571 = vmatprep.subr.bf16.mxu0 0
    %572 = vmatpush1.bf16.msra.mxu0 0
    %573 = vmatprep.subr.bf16.mxu0 0
    %574 = vmatpush1.bf16.msra.mxu0 0
    %575 = vmatprep.subr.bf16.mxu0 0
    %576 = vmatpush1.bf16.msra.mxu0 0
    %577 = vmatprep.subr.bf16.mxu0 0
    %578 = vmatpush1.bf16.msra.mxu0 0
    %579 = vmatprep.subr.bf16.mxu0 0
    %580 = vmatpush1.bf16.msra.mxu0 0
    %581 = vmatprep.mubr.bf16.mxu0 0
    %582 = vmatmul.mubr.bf16.gmra.mrb[0].mxu0 %v372
    %v583 = vpop.f32.mrb[0].mxu0
    %v584 = vadd.f32 %v537, %v583
    %v585 = vpop.f32.mrb[0].mxu0
    %v586 = vadd.f32 %v541, %v585
    %v587 = vpop.f32.mrb[0].mxu0
    %v588 = vpop.f32.mrb[0].mxu0
    %589 = vdwg.mxu0
    %590 = vmatprep.subr.bf16.mxu0 0
    %591 = vmatpush1.bf16.msra.mxu0 %v487
    %592 = vmatprep.subr.bf16.mxu0 0
    %593 = vmatpush1.bf16.msra.mxu0 %v490
    %594 = vmatprep.subr.bf16.mxu0 0
    %595 = vmatpush1.bf16.msra.mxu0 %v493
    %596 = vmatprep.subr.bf16.mxu0 0
    %597 = vmatpush1.bf16.msra.mxu0 %v496
    %598 = vmatprep.subr.bf16.mxu0 0
    %599 = vmatpush1.bf16.msra.mxu0 %v499
    %600 = vmatprep.subr.bf16.mxu0 0
    %601 = vmatpush1.bf16.msra.mxu0 %v502
    %602 = vmatprep.subr.bf16.mxu0 0
    %603 = vmatpush1.bf16.msra.mxu0 %v505
    %604 = vmatprep.subr.bf16.mxu0 0
    %605 = vmatpush1.bf16.msra.mxu0 %v508
    %606 = vmatprep.subr.bf16.mxu0 0
    %607 = vmatpush1.bf16.msra.mxu0 0
    %608 = vmatprep.subr.bf16.mxu0 0
    %609 = vmatpush1.bf16.msra.mxu0 0
    %610 = vmatprep.subr.bf16.mxu0 0
    %611 = vmatpush1.bf16.msra.mxu0 0
    %612 = vmatprep.subr.bf16.mxu0 0
    %613 = vmatpush1.bf16.msra.mxu0 0
    %614 = vmatprep.subr.bf16.mxu0 0
    %615 = vmatpush1.bf16.msra.mxu0 0
    %616 = vmatprep.subr.bf16.mxu0 0
    %617 = vmatpush1.bf16.msra.mxu0 0
    %618 = vmatprep.subr.bf16.mxu0 0
    %619 = vmatpush1.bf16.msra.mxu0 0
    %620 = vmatprep.subr.bf16.mxu0 0
    %621 = vmatpush1.bf16.msra.mxu0 0
    %622 = vmatprep.mubr.bf16.mxu0 0
    %623 = vmatmul.mubr.bf16.gmra.mrb[0].mxu0 %v372
    %v624 = vpop.f32.mrb[0].mxu0
    %v625 = vadd.f32 %v545, %v624
    %v626 = vpop.f32.mrb[0].mxu0
    %v627 = vpop.f32.mrb[0].mxu0
    %v628 = vpop.f32.mrb[0].mxu0
    %629 = vdwg.mxu0
    %v630 = vadd.f32 %v326, %v584
    %v631 = vxor.u32 %v630, 2147483648
    %v632 = vmul.f32 %v631, 1.442695
    %v633 = vpow.pop %v632
    %v634 = vadd.f32 %v633, 1.0
    %v635 = vrcp.pop %v634
    %v636 = vmul.f32 1.0, %v635
    %v637 = vadd.f32 %v328, %v586
    %v638 = vxor.u32 %v637, 2147483648
    %v639 = vmul.f32 %v638, 1.442695
    %v640 = vpow.pop %v639
    %v641 = vadd.f32 %v640, 1.0
    %v642 = vrcp.pop %v641
    %v643 = vmul.f32 1.0, %v642
    %v644 = vmul.f32 %v636, %v625
    %v645 = vadd.f32 %v367, %v644
    %v646 = vtanh.pop %v645
    %v647 = vsub.f32 1.0, %v643
    %v648 = vmul.f32 %v647, %v646
    %v649 = vmul.f32 %v643, %v109
    %v650 = vadd.f32 %v648, %v649
    %651 = vst [vmem:[#allocation2] sm:$0x1] %v650
    %s652 = sld [smem:[#allocation4 + $0x1]]
    %s653 = scalar_lea.vmem [#allocation5], %s652
    %v654 = vld [vmem:[%s653] sm:$0x1]
    %v655 = vmax.f32 %v654, 0.0
    %v656 = vpack.c.bf16 %v655, %v655
    %v657 = vld [vmem:[#allocation10] sm:$0xff]
    %v658 = vld [vmem:[#allocation10 + $0x8] sm:$0xf]
    %v659 = vld [vmem:[#allocation10 + $0xc] sm:$0xff]
    %v660 = vld [vmem:[#allocation10 + $0x14] sm:$0xf]
    %v661 = vld [vmem:[#allocation10 + $0x18] sm:$0xff]
    %v662 = vld [vmem:[#allocation10 + $0x20] sm:$0xf]
    %v663 = vld [vmem:[#allocation10 + $0x24] sm:$0xff]
    %v664 = vld [vmem:[#allocation10 + $0x2c] sm:$0xf]
    %v665 = vld [vmem:[#allocation10 + $0x30] sm:$0xff]
    %v666 = vld [vmem:[#allocation10 + $0x38] sm:$0xf]
    %v667 = vld [vmem:[#allocation10 + $0x3c] sm:$0xff]
    %v668 = vld [vmem:[#allocation10 + $0x44] sm:$0xf]
    %v669 = vld [vmem:[#allocation10 + $0x48] sm:$0xff]
    %v670 = vld [vmem:[#allocation10 + $0x50] sm:$0xf]
    %v671 = vld [vmem:[#allocation10 + $0x54] sm:$0xff]
    %v672 = vld [vmem:[#allocation10 + $0x5c] sm:$0xf]
    %v673 = vld [vmem:[#allocation10 + $0x60] sm:$0xff]
    %v674 = vld [vmem:[#allocation10 + $0x68] sm:$0xf]
    %v675 = vld [vmem:[#allocation10 + $0x6c] sm:$0xff]
    %v676 = vld [vmem:[#allocation10 + $0x74] sm:$0xf]
    %v677 = vld [vmem:[#allocation10 + $0x78] sm:$0xff]
    %v678 = vld [vmem:[#allocation10 + $0x80] sm:$0xf]
    %v679 = vld [vmem:[#allocation10 + $0x84] sm:$0xff]
    %v680 = vld [vmem:[#allocation10 + $0x8c] sm:$0xf]
    %v681 = vld [vmem:[#allocation10 + $0x90] sm:$0xff]
    %v682 = vld [vmem:[#allocation10 + $0x98] sm:$0xf]
    %v683 = vld [vmem:[#allocation10 + $0x9c] sm:$0xff]
    %v684 = vld [vmem:[#allocation10 + $0xa4] sm:$0xf]
    %v685 = vld [vmem:[#allocation10 + $0xa8] sm:$0xff]
    %v686 = vld [vmem:[#allocation10 + $0xb0] sm:$0xf]
    %v687 = vld [vmem:[#allocation10 + $0xb4] sm:$0xff]
    %v688 = vld [vmem:[#allocation10 + $0xbc] sm:$0xf]
    %v721 = vunpack.c.l.b16 %v657
    %v722 = vunpack.c.h.b16 %v657
    %v723 = vunpack.c.l.b16 %v658
    %v724 = vunpack.c.l.b16 %v659
    %v725 = vunpack.c.h.b16 %v659
    %v726 = vunpack.c.l.b16 %v660
    %v727 = vunpack.c.l.b16 %v661
    %v728 = vunpack.c.h.b16 %v661
    %v729 = vunpack.c.l.b16 %v662
    %v730 = vunpack.c.l.b16 %v663
    %v731 = vunpack.c.h.b16 %v663
    %v732 = vunpack.c.l.b16 %v664
    %v733 = vunpack.c.l.b16 %v665
    %v734 = vunpack.c.h.b16 %v665
    %v735 = vunpack.c.l.b16 %v666
    %v736 = vunpack.c.l.b16 %v667
    %v737 = vunpack.c.h.b16 %v667
    %v738 = vunpack.c.l.b16 %v668
    %v739 = vunpack.c.l.b16 %v669
    %v740 = vunpack.c.h.b16 %v669
    %v741 = vunpack.c.l.b16 %v670
    %v742 = vunpack.c.l.b16 %v671
    %v743 = vunpack.c.h.b16 %v671
    %v744 = vunpack.c.l.b16 %v672
    %v745 = vunpack.c.l.b16 %v673
    %v746 = vunpack.c.h.b16 %v673
    %v747 = vunpack.c.l.b16 %v674
    %v748 = vunpack.c.l.b16 %v675
    %v749 = vunpack.c.h.b16 %v675
    %v750 = vunpack.c.l.b16 %v676
    %v751 = vunpack.c.l.b16 %v677
    %v752 = vunpack.c.h.b16 %v677
    %v753 = vunpack.c.l.b16 %v678
    %v754 = vunpack.c.l.b16 %v679
    %v755 = vunpack.c.h.b16 %v679
    %v756 = vunpack.c.l.b16 %v680
    %v757 = vunpack.c.l.b16 %v681
    %v758 = vunpack.c.h.b16 %v681
    %v759 = vunpack.c.l.b16 %v682
    %v760 = vunpack.c.l.b16 %v683
    %v761 = vunpack.c.h.b16 %v683
    %v762 = vunpack.c.l.b16 %v684
    %v763 = vunpack.c.l.b16 %v685
    %v764 = vunpack.c.h.b16 %v685
    %v765 = vunpack.c.l.b16 %v686
    %v766 = vunpack.c.l.b16 %v687
    %v767 = vunpack.c.h.b16 %v687
    %v768 = vunpack.c.l.b16 %v688
    %v769 = vpack.c.b16 %v724, %v721
    %v770 = vpack.c.b16 %v725, %v722
    %v771 = vpack.c.b16 %v726, %v723
    %v772 = vpack.c.b16 %v730, %v727
    %v773 = vpack.c.b16 %v731, %v728
    %v774 = vpack.c.b16 %v732, %v729
    %v775 = vpack.c.b16 %v736, %v733
    %v776 = vpack.c.b16 %v737, %v734
    %v777 = vpack.c.b16 %v738, %v735
    %v778 = vpack.c.b16 %v742, %v739
    %v779 = vpack.c.b16 %v743, %v740
    %v780 = vpack.c.b16 %v744, %v741
    %v781 = vpack.c.b16 %v748, %v745
    %v782 = vpack.c.b16 %v749, %v746
    %v783 = vpack.c.b16 %v750, %v747
    %v784 = vpack.c.b16 %v754, %v751
    %v785 = vpack.c.b16 %v755, %v752
    %v786 = vpack.c.b16 %v756, %v753
    %v787 = vpack.c.b16 %v760, %v757
    %v788 = vpack.c.b16 %v761, %v758
    %v789 = vpack.c.b16 %v762, %v759
    %v790 = vpack.c.b16 %v766, %v763
    %v791 = vpack.c.b16 %v767, %v764
    %v792 = vpack.c.b16 %v768, %v765
    %817 = vmatprep.subr.bf16.mxu0 %v770
    %818 = vmatpush1.bf16.msra.mxu0 %v769
    %819 = vmatprep.subr.bf16.mxu0 %v773
    %820 = vmatpush1.bf16.msra.mxu0 %v772
    %821 = vmatprep.subr.bf16.mxu0 %v776
    %822 = vmatpush1.bf16.msra.mxu0 %v775
    %823 = vmatprep.subr.bf16.mxu0 %v779
    %824 = vmatpush1.bf16.msra.mxu0 %v778
    %825 = vmatprep.subr.bf16.mxu0 %v782
    %826 = vmatpush1.bf16.msra.mxu0 %v781
    %827 = vmatprep.subr.bf16.mxu0 %v785
    %828 = vmatpush1.bf16.msra.mxu0 %v784
    %829 = vmatprep.subr.bf16.mxu0 %v788
    %830 = vmatpush1.bf16.msra.mxu0 %v787
    %831 = vmatprep.subr.bf16.mxu0 %v791
    %832 = vmatpush1.bf16.msra.mxu0 %v790
    %833 = vmatprep.subr.bf16.mxu0 0
    %834 = vmatpush1.bf16.msra.mxu0 0
    %835 = vmatprep.subr.bf16.mxu0 0
    %836 = vmatpush1.bf16.msra.mxu0 0
    %837 = vmatprep.subr.bf16.mxu0 0
    %838 = vmatpush1.bf16.msra.mxu0 0
    %839 = vmatprep.subr.bf16.mxu0 0
    %840 = vmatpush1.bf16.msra.mxu0 0
    %841 = vmatprep.subr.bf16.mxu0 0
    %842 = vmatpush1.bf16.msra.mxu0 0
    %843 = vmatprep.subr.bf16.mxu0 0
    %844 = vmatpush1.bf16.msra.mxu0 0
    %845 = vmatprep.subr.bf16.mxu0 0
    %846 = vmatpush1.bf16.msra.mxu0 0
    %847 = vmatprep.subr.bf16.mxu0 0
    %848 = vmatpush1.bf16.msra.mxu0 0
    %849 = vmatprep.mubr.bf16.mxu0 0
    %850 = vmatmul.mubr.bf16.gmra.mrb[0].mxu0 %v656
    %v851 = vpop.f32.mrb[0].mxu0
    %v852 = vadd.f32 %v279, %v851
    %v853 = vpop.f32.mrb[0].mxu0
    %v854 = vadd.f32 %v283, %v853
    %v855 = vpop.f32.mrb[0].mxu0
    %v856 = vpop.f32.mrb[0].mxu0
    %857 = vdwg.mxu0
    %858 = vmatprep.subr.bf16.mxu0 0
    %859 = vmatpush1.bf16.msra.mxu0 %v771
    %860 = vmatprep.subr.bf16.mxu0 0
    %861 = vmatpush1.bf16.msra.mxu0 %v774
    %862 = vmatprep.subr.bf16.mxu0 0
    %863 = vmatpush1.bf16.msra.mxu0 %v777
    %864 = vmatprep.subr.bf16.mxu0 0
    %865 = vmatpush1.bf16.msra.mxu0 %v780
    %866 = vmatprep.subr.bf16.mxu0 0
    %867 = vmatpush1.bf16.msra.mxu0 %v783
    %868 = vmatprep.subr.bf16.mxu0 0
    %869 = vmatpush1.bf16.msra.mxu0 %v786
    %870 = vmatprep.subr.bf16.mxu0 0
    %871 = vmatpush1.bf16.msra.mxu0 %v789
    %872 = vmatprep.subr.bf16.mxu0 0
    %873 = vmatpush1.bf16.msra.mxu0 %v792
    %874 = vmatprep.subr.bf16.mxu0 0
    %875 = vmatpush1.bf16.msra.mxu0 0
    %876 = vmatprep.subr.bf16.mxu0 0
    %877 = vmatpush1.bf16.msra.mxu0 0
    %878 = vmatprep.subr.bf16.mxu0 0
    %879 = vmatpush1.bf16.msra.mxu0 0
    %880 = vmatprep.subr.bf16.mxu0 0
    %881 = vmatpush1.bf16.msra.mxu0 0
    %882 = vmatprep.subr.bf16.mxu0 0
    %883 = vmatpush1.bf16.msra.mxu0 0
    %884 = vmatprep.subr.bf16.mxu0 0
    %885 = vmatpush1.bf16.msra.mxu0 0
    %886 = vmatprep.subr.bf16.mxu0 0
    %887 = vmatpush1.bf16.msra.mxu0 0
    %888 = vmatprep.subr.bf16.mxu0 0
    %889 = vmatpush1.bf16.msra.mxu0 0
    %890 = vmatprep.mubr.bf16.mxu0 0
    %891 = vmatmul.mubr.bf16.gmra.mrb[0].mxu0 %v656
    %v892 = vpop.f32.mrb[0].mxu0
    %v893 = vadd.f32 %v287, %v892
    %v894 = vpop.f32.mrb[0].mxu0
    %v895 = vpop.f32.mrb[0].mxu0
    %v896 = vpop.f32.mrb[0].mxu0
    %897 = vdwg.mxu0
    %v898 = vpack.c.bf16 %v650, %v650
    %v899 = vld [vmem:[#allocation11] sm:$0xff]
    %v900 = vld [vmem:[#allocation11 + $0x8] sm:$0xf]
    %v901 = vld [vmem:[#allocation11 + $0xc] sm:$0xff]
    %v902 = vld [vmem:[#allocation11 + $0x14] sm:$0xf]
    %v903 = vld [vmem:[#allocation11 + $0x18] sm:$0xff]
    %v904 = vld [vmem:[#allocation11 + $0x20] sm:$0xf]
    %v905 = vld [vmem:[#allocation11 + $0x24] sm:$0xff]
    %v906 = vld [vmem:[#allocation11 + $0x2c] sm:$0xf]
    %v907 = vld [vmem:[#allocation11 + $0x30] sm:$0xff]
    %v908 = vld [vmem:[#allocation11 + $0x38] sm:$0xf]
    %v909 = vld [vmem:[#allocation11 + $0x3c] sm:$0xff]
    %v910 = vld [vmem:[#allocation11 + $0x44] sm:$0xf]
    %v911 = vld [vmem:[#allocation11 + $0x48] sm:$0xff]
    %v912 = vld [vmem:[#allocation11 + $0x50] sm:$0xf]
    %v913 = vld [vmem:[#allocation11 + $0x54] sm:$0xff]
    %v914 = vld [vmem:[#allocation11 + $0x5c] sm:$0xf]
    %v915 = vld [vmem:[#allocation11 + $0x60] sm:$0xff]
    %v916 = vld [vmem:[#allocation11 + $0x68] sm:$0xf]
    %v917 = vld [vmem:[#allocation11 + $0x6c] sm:$0xff]
    %v918 = vld [vmem:[#allocation11 + $0x74] sm:$0xf]
    %v919 = vld [vmem:[#allocation11 + $0x78] sm:$0xff]
    %v920 = vld [vmem:[#allocation11 + $0x80] sm:$0xf]
    %v921 = vld [vmem:[#allocation11 + $0x84] sm:$0xff]
    %v922 = vld [vmem:[#allocation11 + $0x8c] sm:$0xf]
    %v923 = vld [vmem:[#allocation11 + $0x90] sm:$0xff]
    %v924 = vld [vmem:[#allocation11 + $0x98] sm:$0xf]
    %v925 = vld [vmem:[#allocation11 + $0x9c] sm:$0xff]
    %v926 = vld [vmem:[#allocation11 + $0xa4] sm:$0xf]
    %v927 = vld [vmem:[#allocation11 + $0xa8] sm:$0xff]
    %v928 = vld [vmem:[#allocation11 + $0xb0] sm:$0xf]
    %v929 = vld [vmem:[#allocation11 + $0xb4] sm:$0xff]
    %v930 = vld [vmem:[#allocation11 + $0xbc] sm:$0xf]
    %v963 = vunpack.c.l.b16 %v899
    %v964 = vunpack.c.h.b16 %v899
    %v965 = vunpack.c.l.b16 %v900
    %v966 = vunpack.c.l.b16 %v901
    %v967 = vunpack.c.h.b16 %v901
    %v968 = vunpack.c.l.b16 %v902
    %v969 = vunpack.c.l.b16 %v903
    %v970 = vunpack.c.h.b16 %v903
    %v971 = vunpack.c.l.b16 %v904
    %v972 = vunpack.c.l.b16 %v905
    %v973 = vunpack.c.h.b16 %v905
    %v974 = vunpack.c.l.b16 %v906
    %v975 = vunpack.c.l.b16 %v907
    %v976 = vunpack.c.h.b16 %v907
    %v977 = vunpack.c.l.b16 %v908
    %v978 = vunpack.c.l.b16 %v909
    %v979 = vunpack.c.h.b16 %v909
    %v980 = vunpack.c.l.b16 %v910
    %v981 = vunpack.c.l.b16 %v911
    %v982 = vunpack.c.h.b16 %v911
    %v983 = vunpack.c.l.b16 %v912
    %v984 = vunpack.c.l.b16 %v913
    %v985 = vunpack.c.h.b16 %v913
    %v986 = vunpack.c.l.b16 %v914
    %v987 = vunpack.c.l.b16 %v915
    %v988 = vunpack.c.h.b16 %v915
    %v989 = vunpack.c.l.b16 %v916
    %v990 = vunpack.c.l.b16 %v917
    %v991 = vunpack.c.h.b16 %v917
    %v992 = vunpack.c.l.b16 %v918
    %v993 = vunpack.c.l.b16 %v919
    %v994 = vunpack.c.h.b16 %v919
    %v995 = vunpack.c.l.b16 %v920
    %v996 = vunpack.c.l.b16 %v921
    %v997 = vunpack.c.h.b16 %v921
    %v998 = vunpack.c.l.b16 %v922
    %v999 = vunpack.c.l.b16 %v923
    %v1000 = vunpack.c.h.b16 %v923
    %v1001 = vunpack.c.l.b16 %v924
    %v1002 = vunpack.c.l.b16 %v925
    %v1003 = vunpack.c.h.b16 %v925
    %v1004 = vunpack.c.l.b16 %v926
    %v1005 = vunpack.c.l.b16 %v927
    %v1006 = vunpack.c.h.b16 %v927
    %v1007 = vunpack.c.l.b16 %v928
    %v1008 = vunpack.c.l.b16 %v929
    %v1009 = vunpack.c.h.b16 %v929
    %v1010 = vunpack.c.l.b16 %v930
    %v1011 = vpack.c.b16 %v966, %v963
    %v1012 = vpack.c.b16 %v967, %v964
    %v1013 = vpack.c.b16 %v968, %v965
    %v1014 = vpack.c.b16 %v972, %v969
    %v1015 = vpack.c.b16 %v973, %v970
    %v1016 = vpack.c.b16 %v974, %v971
    %v1017 = vpack.c.b16 %v978, %v975
    %v1018 = vpack.c.b16 %v979, %v976
    %v1019 = vpack.c.b16 %v980, %v977
    %v1020 = vpack.c.b16 %v984, %v981
    %v1021 = vpack.c.b16 %v985, %v982
    %v1022 = vpack.c.b16 %v986, %v983
    %v1023 = vpack.c.b16 %v990, %v987
    %v1024 = vpack.c.b16 %v991, %v988
    %v1025 = vpack.c.b16 %v992, %v989
    %v1026 = vpack.c.b16 %v996, %v993
    %v1027 = vpack.c.b16 %v997, %v994
    %v1028 = vpack.c.b16 %v998, %v995
    %v1029 = vpack.c.b16 %v1002, %v999
    %v1030 = vpack.c.b16 %v1003, %v1000
    %v1031 = vpack.c.b16 %v1004, %v1001
    %v1032 = vpack.c.b16 %v1008, %v1005
    %v1033 = vpack.c.b16 %v1009, %v1006
    %v1034 = vpack.c.b16 %v1010, %v1007
    %1059 = vmatprep.subr.bf16.mxu0 %v1012
    %1060 = vmatpush1.bf16.msra.mxu0 %v1011
    %1061 = vmatprep.subr.bf16.mxu0 %v1015
    %1062 = vmatpush1.bf16.msra.mxu0 %v1014
    %1063 = vmatprep.subr.bf16.mxu0 %v1018
    %1064 = vmatpush1.bf16.msra.mxu0 %v1017
    %1065 = vmatprep.subr.bf16.mxu0 %v1021
    %1066 = vmatpush1.bf16.msra.mxu0 %v1020
    %1067 = vmatprep.subr.bf16.mxu0 %v1024
    %1068 = vmatpush1.bf16.msra.mxu0 %v1023
    %1069 = vmatprep.subr.bf16.mxu0 %v1027
    %1070 = vmatpush1.bf16.msra.mxu0 %v1026
    %1071 = vmatprep.subr.bf16.mxu0 %v1030
    %1072 = vmatpush1.bf16.msra.mxu0 %v1029
    %1073 = vmatprep.subr.bf16.mxu0 %v1033
    %1074 = vmatpush1.bf16.msra.mxu0 %v1032
    %1075 = vmatprep.subr.bf16.mxu0 0
    %1076 = vmatpush1.bf16.msra.mxu0 0
    %1077 = vmatprep.subr.bf16.mxu0 0
    %1078 = vmatpush1.bf16.msra.mxu0 0
    %1079 = vmatprep.subr.bf16.mxu0 0
    %1080 = vmatpush1.bf16.msra.mxu0 0
    %1081 = vmatprep.subr.bf16.mxu0 0
    %1082 = vmatpush1.bf16.msra.mxu0 0
    %1083 = vmatprep.subr.bf16.mxu0 0
    %1084 = vmatpush1.bf16.msra.mxu0 0
    %1085 = vmatprep.subr.bf16.mxu0 0
    %1086 = vmatpush1.bf16.msra.mxu0 0
    %1087 = vmatprep.subr.bf16.mxu0 0
    %1088 = vmatpush1.bf16.msra.mxu0 0
    %1089 = vmatprep.subr.bf16.mxu0 0
    %1090 = vmatpush1.bf16.msra.mxu0 0
    %1091 = vmatprep.mubr.bf16.mxu0 0
    %1092 = vmatmul.mubr.bf16.gmra.mrb[0].mxu0 %v898
    %v1093 = vpop.f32.mrb[0].mxu0
    %v1094 = vadd.f32 %v537, %v1093
    %v1095 = vpop.f32.mrb[0].mxu0
    %v1096 = vadd.f32 %v541, %v1095
    %v1097 = vpop.f32.mrb[0].mxu0
    %v1098 = vpop.f32.mrb[0].mxu0
    %1099 = vdwg.mxu0
    %1100 = vmatprep.subr.bf16.mxu0 0
    %1101 = vmatpush1.bf16.msra.mxu0 %v1013
    %1102 = vmatprep.subr.bf16.mxu0 0
    %1103 = vmatpush1.bf16.msra.mxu0 %v1016
    %1104 = vmatprep.subr.bf16.mxu0 0
    %1105 = vmatpush1.bf16.msra.mxu0 %v1019
    %1106 = vmatprep.subr.bf16.mxu0 0
    %1107 = vmatpush1.bf16.msra.mxu0 %v1022
    %1108 = vmatprep.subr.bf16.mxu0 0
    %1109 = vmatpush1.bf16.msra.mxu0 %v1025
    %1110 = vmatprep.subr.bf16.mxu0 0
    %1111 = vmatpush1.bf16.msra.mxu0 %v1028
    %1112 = vmatprep.subr.bf16.mxu0 0
    %1113 = vmatpush1.bf16.msra.mxu0 %v1031
    %1114 = vmatprep.subr.bf16.mxu0 0
    %1115 = vmatpush1.bf16.msra.mxu0 %v1034
    %1116 = vmatprep.subr.bf16.mxu0 0
    %1117 = vmatpush1.bf16.msra.mxu0 0
    %1118 = vmatprep.subr.bf16.mxu0 0
    %1119 = vmatpush1.bf16.msra.mxu0 0
    %1120 = vmatprep.subr.bf16.mxu0 0
    %1121 = vmatpush1.bf16.msra.mxu0 0
    %1122 = vmatprep.subr.bf16.mxu0 0
    %1123 = vmatpush1.bf16.msra.mxu0 0
    %1124 = vmatprep.subr.bf16.mxu0 0
    %1125 = vmatpush1.bf16.msra.mxu0 0
    %1126 = vmatprep.subr.bf16.mxu0 0
    %1127 = vmatpush1.bf16.msra.mxu0 0
    %1128 = vmatprep.subr.bf16.mxu0 0
    %1129 = vmatpush1.bf16.msra.mxu0 0
    %1130 = vmatprep.subr.bf16.mxu0 0
    %1131 = vmatpush1.bf16.msra.mxu0 0
    %1132 = vmatprep.mubr.bf16.mxu0 0
    %1133 = vmatmul.mubr.bf16.gmra.mrb[0].mxu0 %v898
    %v1134 = vpop.f32.mrb[0].mxu0
    %v1135 = vadd.f32 %v545, %v1134
    %v1136 = vpop.f32.mrb[0].mxu0
    %v1137 = vpop.f32.mrb[0].mxu0
    %v1138 = vpop.f32.mrb[0].mxu0
    %1139 = vdwg.mxu0
    %v1140 = vadd.f32 %v852, %v1094
    %v1141 = vxor.u32 %v1140, 2147483648
    %v1142 = vmul.f32 %v1141, 1.442695
    %v1143 = vpow.pop %v1142
    %v1144 = vadd.f32 %v1143, 1.0
    %v1145 = vrcp.pop %v1144
    %v1146 = vmul.f32 1.0, %v1145
    %v1147 = vadd.f32 %v854, %v1096
    %v1148 = vxor.u32 %v1147, 2147483648
    %v1149 = vmul.f32 %v1148, 1.442695
    %v1150 = vpow.pop %v1149
    %v1151 = vadd.f32 %v1150, 1.0
    %v1152 = vrcp.pop %v1151
    %v1153 = vmul.f32 1.0, %v1152
    %v1154 = vmul.f32 %v1146, %v1135
    %v1155 = vadd.f32 %v893, %v1154
    %v1156 = vtanh.pop %v1155
    %v1157 = vsub.f32 1.0, %v1153
    %v1158 = vmul.f32 %v1157, %v1156
    %v1159 = vmul.f32 %v1153, %v650
    %v1160 = vadd.f32 %v1158, %v1159
    %1161 = vst [vmem:[#allocation2 + $0x1] sm:$0x1] %v1160
    %s1162 = sld [smem:[#allocation4 + $0x2]]
    %s1163 = scalar_lea.vmem [#allocation5], %s1162
    %v1164 = vld [vmem:[%s1163] sm:$0x1]
    %v1165 = vmax.f32 %v1164, 0.0
    %v1166 = vpack.c.bf16 %v1165, %v1165
    %v1167 = vld [vmem:[#allocation10] sm:$0xff]
    %v1168 = vld [vmem:[#allocation10 + $0x8] sm:$0xf]
    %v1169 = vld [vmem:[#allocation10 + $0xc] sm:$0xff]
    %v1170 = vld [vmem:[#allocation10 + $0x14] sm:$0xf]
    %v1171 = vld [vmem:[#allocation10 + $0x18] sm:$0xff]
    %v1172 = vld [vmem:[#allocation10 + $0x20] sm:$0xf]
    %v1173 = vld [vmem:[#allocation10 + $0x24] sm:$0xff]
    %v1174 = vld [vmem:[#allocation10 + $0x2c] sm:$0xf]
    %v1175 = vld [vmem:[#allocation10 + $0x30] sm:$0xff]
    %v1176 = vld [vmem:[#allocation10 + $0x38] sm:$0xf]
    %v1177 = vld [vmem:[#allocation10 + $0x3c] sm:$0xff]
    %v1178 = vld [vmem:[#allocation10 + $0x44] sm:$0xf]
    %v1179 = vld [vmem:[#allocation10 + $0x48] sm:$0xff]
    %v1180 = vld [vmem:[#allocation10 + $0x50] sm:$0xf]
    %v1181 = vld [vmem:[#allocation10 + $0x54] sm:$0xff]
    %v1182 = vld [vmem:[#allocation10 + $0x5c] sm:$0xf]
    %v1183 = vld [vmem:[#allocation10 + $0x60] sm:$0xff]
    %v1184 = vld [vmem:[#allocation10 + $0x68] sm:$0xf]
    %v1185 = vld [vmem:[#allocation10 + $0x6c] sm:$0xff]
    %v1186 = vld [vmem:[#allocation10 + $0x74] sm:$0xf]
    %v1187 = vld [vmem:[#allocation10 + $0x78] sm:$0xff]
    %v1188 = vld [vmem:[#allocation10 + $0x80] sm:$0xf]
    %v1189 = vld [vmem:[#allocation10 + $0x84] sm:$0xff]
    %v1190 = vld [vmem:[#allocation10 + $0x8c] sm:$0xf]
    %v1191 = vld [vmem:[#allocation10 + $0x90] sm:$0xff]
    %v1192 = vld [vmem:[#allocation10 + $0x98] sm:$0xf]
    %v1193 = vld [vmem:[#allocation10 + $0x9c] sm:$0xff]
    %v1194 = vld [vmem:[#allocation10 + $0xa4] sm:$0xf]
    %v1195 = vld [vmem:[#allocation10 + $0xa8] sm:$0xff]
    %v1196 = vld [vmem:[#allocation10 + $0xb0] sm:$0xf]
    %v1197 = vld [vmem:[#allocation10 + $0xb4] sm:$0xff]
    %v1198 = vld [vmem:[#allocation10 + $0xbc] sm:$0xf]
    %v1231 = vunpack.c.l.b16 %v1167
    %v1232 = vunpack.c.h.b16 %v1167
    %v1233 = vunpack.c.l.b16 %v1168
    %v1234 = vunpack.c.l.b16 %v1169
    %v1235 = vunpack.c.h.b16 %v1169
    %v1236 = vunpack.c.l.b16 %v1170
    %v1237 = vunpack.c.l.b16 %v1171
    %v1238 = vunpack.c.h.b16 %v1171
    %v1239 = vunpack.c.l.b16 %v1172
    %v1240 = vunpack.c.l.b16 %v1173
    %v1241 = vunpack.c.h.b16 %v1173
    %v1242 = vunpack.c.l.b16 %v1174
    %v1243 = vunpack.c.l.b16 %v1175
    %v1244 = vunpack.c.h.b16 %v1175
    %v1245 = vunpack.c.l.b16 %v1176
    %v1246 = vunpack.c.l.b16 %v1177
    %v1247 = vunpack.c.h.b16 %v1177
    %v1248 = vunpack.c.l.b16 %v1178
    %v1249 = vunpack.c.l.b16 %v1179
    %v1250 = vunpack.c.h.b16 %v1179
    %v1251 = vunpack.c.l.b16 %v1180
    %v1252 = vunpack.c.l.b16 %v1181
    %v1253 = vunpack.c.h.b16 %v1181
    %v1254 = vunpack.c.l.b16 %v1182
    %v1255 = vunpack.c.l.b16 %v1183
    %v1256 = vunpack.c.h.b16 %v1183
    %v1257 = vunpack.c.l.b16 %v1184
    %v1258 = vunpack.c.l.b16 %v1185
    %v1259 = vunpack.c.h.b16 %v1185
    %v1260 = vunpack.c.l.b16 %v1186
    %v1261 = vunpack.c.l.b16 %v1187
    %v1262 = vunpack.c.h.b16 %v1187
    %v1263 = vunpack.c.l.b16 %v1188
    %v1264 = vunpack.c.l.b16 %v1189
    %v1265 = vunpack.c.h.b16 %v1189
    %v1266 = vunpack.c.l.b16 %v1190
    %v1267 = vunpack.c.l.b16 %v1191
    %v1268 = vunpack.c.h.b16 %v1191
    %v1269 = vunpack.c.l.b16 %v1192
    %v1270 = vunpack.c.l.b16 %v1193
    %v1271 = vunpack.c.h.b16 %v1193
    %v1272 = vunpack.c.l.b16 %v1194
    %v1273 = vunpack.c.l.b16 %v1195
    %v1274 = vunpack.c.h.b16 %v1195
    %v1275 = vunpack.c.l.b16 %v1196
    %v1276 = vunpack.c.l.b16 %v1197
    %v1277 = vunpack.c.h.b16 %v1197
    %v1278 = vunpack.c.l.b16 %v1198
    %v1279 = vpack.c.b16 %v1234, %v1231
    %v1280 = vpack.c.b16 %v1235, %v1232
    %v1281 = vpack.c.b16 %v1236, %v1233
    %v1282 = vpack.c.b16 %v1240, %v1237
    %v1283 = vpack.c.b16 %v1241, %v1238
    %v1284 = vpack.c.b16 %v1242, %v1239
    %v1285 = vpack.c.b16 %v1246, %v1243
    %v1286 = vpack.c.b16 %v1247, %v1244
    %v1287 = vpack.c.b16 %v1248, %v1245
    %v1288 = vpack.c.b16 %v1252, %v1249
    %v1289 = vpack.c.b16 %v1253, %v1250
    %v1290 = vpack.c.b16 %v1254, %v1251
    %v1291 = vpack.c.b16 %v1258, %v1255
    %v1292 = vpack.c.b16 %v1259, %v1256
    %v1293 = vpack.c.b16 %v1260, %v1257
    %v1294 = vpack.c.b16 %v1264, %v1261
    %v1295 = vpack.c.b16 %v1265, %v1262
    %v1296 = vpack.c.b16 %v1266, %v1263
    %v1297 = vpack.c.b16 %v1270, %v1267
    %v1298 = vpack.c.b16 %v1271, %v1268
    %v1299 = vpack.c.b16 %v1272, %v1269
    %v1300 = vpack.c.b16 %v1276, %v1273
    %v1301 = vpack.c.b16 %v1277, %v1274
    %v1302 = vpack.c.b16 %v1278, %v1275
    %1327 = vmatprep.subr.bf16.mxu0 %v1280
    %1328 = vmatpush1.bf16.msra.mxu0 %v1279
    %1329 = vmatprep.subr.bf16.mxu0 %v1283
    %1330 = vmatpush1.bf16.msra.mxu0 %v1282
    %1331 = vmatprep.subr.bf16.mxu0 %v1286
    %1332 = vmatpush1.bf16.msra.mxu0 %v1285
    %1333 = vmatprep.subr.bf16.mxu0 %v1289
    %1334 = vmatpush1.bf16.msra.mxu0 %v1288
    %1335 = vmatprep.subr.bf16.mxu0 %v1292
    %1336 = vmatpush1.bf16.msra.mxu0 %v1291
    %1337 = vmatprep.subr.bf16.mxu0 %v1295
    %1338 = vmatpush1.bf16.msra.mxu0 %v1294
    %1339 = vmatprep.subr.bf16.mxu0 %v1298
    %1340 = vmatpush1.bf16.msra.mxu0 %v1297
    %1341 = vmatprep.subr.bf16.mxu0 %v1301
    %1342 = vmatpush1.bf16.msra.mxu0 %v1300
    %1343 = vmatprep.subr.bf16.mxu0 0
    %1344 = vmatpush1.bf16.msra.mxu0 0
    %1345 = vmatprep.subr.bf16.mxu0 0
    %1346 = vmatpush1.bf16.msra.mxu0 0
    %1347 = vmatprep.subr.bf16.mxu0 0
    %1348 = vmatpush1.bf16.msra.mxu0 0
    %1349 = vmatprep.subr.bf16.mxu0 0
    %1350 = vmatpush1.bf16.msra.mxu0 0
    %1351 = vmatprep.subr.bf16.mxu0 0
    %1352 = vmatpush1.bf16.msra.mxu0 0
    %1353 = vmatprep.subr.bf16.mxu0 0
    %1354 = vmatpush1.bf16.msra.mxu0 0
    %1355 = vmatprep.subr.bf16.mxu0 0
    %1356 = vmatpush1.bf16.msra.mxu0 0
    %1357 = vmatprep.subr.bf16.mxu0 0
    %1358 = vmatpush1.bf16.msra.mxu0 0
    %1359 = vmatprep.mubr.bf16.mxu0 0
    %1360 = vmatmul.mubr.bf16.gmra.mrb[0].mxu0 %v1166
    %v1361 = vpop.f32.mrb[0].mxu0
    %v1362 = vadd.f32 %v279, %v1361
    %v1363 = vpop.f32.mrb[0].mxu0
    %v1364 = vadd.f32 %v283, %v1363
    %v1365 = vpop.f32.mrb[0].mxu0
    %v1366 = vpop.f32.mrb[0].mxu0
    %1367 = vdwg.mxu0
    %1368 = vmatprep.subr.bf16.mxu0 0
    %1369 = vmatpush1.bf16.msra.mxu0 %v1281
    %1370 = vmatprep.subr.bf16.mxu0 0
    %1371 = vmatpush1.bf16.msra.mxu0 %v1284
    %1372 = vmatprep.subr.bf16.mxu0 0
    %1373 = vmatpush1.bf16.msra.mxu0 %v1287
    %1374 = vmatprep.subr.bf16.mxu0 0
    %1375 = vmatpush1.bf16.msra.mxu0 %v1290
    %1376 = vmatprep.subr.bf16.mxu0 0
    %1377 = vmatpush1.bf16.msra.mxu0 %v1293
    %1378 = vmatprep.subr.bf16.mxu0 0
    %1379 = vmatpush1.bf16.msra.mxu0 %v1296
    %1380 = vmatprep.subr.bf16.mxu0 0
    %1381 = vmatpush1.bf16.msra.mxu0 %v1299
    %1382 = vmatprep.subr.bf16.mxu0 0
    %1383 = vmatpush1.bf16.msra.mxu0 %v1302
    %1384 = vmatprep.subr.bf16.mxu0 0
    %1385 = vmatpush1.bf16.msra.mxu0 0
    %1386 = vmatprep.subr.bf16.mxu0 0
    %1387 = vmatpush1.bf16.msra.mxu0 0
    %1388 = vmatprep.subr.bf16.mxu0 0
    %1389 = vmatpush1.bf16.msra.mxu0 0
    %1390 = vmatprep.subr.bf16.mxu0 0
    %1391 = vmatpush1.bf16.msra.mxu0 0
    %1392 = vmatprep.subr.bf16.mxu0 0
    %1393 = vmatpush1.bf16.msra.mxu0 0
    %1394 = vmatprep.subr.bf16.mxu0 0
    %1395 = vmatpush1.bf16.msra.mxu0 0
    %1396 = vmatprep.subr.bf16.mxu0 0
    %1397 = vmatpush1.bf16.msra.mxu0 0
    %1398 = vmatprep.subr.bf16.mxu0 0
    %1399 = vmatpush1.bf16.msra.mxu0 0
    %1400 = vmatprep.mubr.bf16.mxu0 0
    %1401 = vmatmul.mubr.bf16.gmra.mrb[0].mxu0 %v1166
    %v1402 = vpop.f32.mrb[0].mxu0
    %v1403 = vadd.f32 %v287, %v1402
    %v1404 = vpop.f32.mrb[0].mxu0
    %v1405 = vpop.f32.mrb[0].mxu0
    %v1406 = vpop.f32.mrb[0].mxu0
    %1407 = vdwg.mxu0
    %v1408 = vpack.c.bf16 %v1160, %v1160
    %v1409 = vld [vmem:[#allocation11] sm:$0xff]
    %v1410 = vld [vmem:[#allocation11 + $0x8] sm:$0xf]
    %v1411 = vld [vmem:[#allocation11 + $0xc] sm:$0xff]
    %v1412 = vld [vmem:[#allocation11 + $0x14] sm:$0xf]
    %v1413 = vld [vmem:[#allocation11 + $0x18] sm:$0xff]
    %v1414 = vld [vmem:[#allocation11 + $0x20] sm:$0xf]
    %v1415 = vld [vmem:[#allocation11 + $0x24] sm:$0xff]
    %v1416 = vld [vmem:[#allocation11 + $0x2c] sm:$0xf]
    %v1417 = vld [vmem:[#allocation11 + $0x30] sm:$0xff]
    %v1418 = vld [vmem:[#allocation11 + $0x38] sm:$0xf]
    %v1419 = vld [vmem:[#allocation11 + $0x3c] sm:$0xff]
    %v1420 = vld [vmem:[#allocation11 + $0x44] sm:$0xf]
    %v1421 = vld [vmem:[#allocation11 + $0x48] sm:$0xff]
    %v1422 = vld [vmem:[#allocation11 + $0x50] sm:$0xf]
    %v1423 = vld [vmem:[#allocation11 + $0x54] sm:$0xff]
    %v1424 = vld [vmem:[#allocation11 + $0x5c] sm:$0xf]
    %v1425 = vld [vmem:[#allocation11 + $0x60] sm:$0xff]
    %v1426 = vld [vmem:[#allocation11 + $0x68] sm:$0xf]
    %v1427 = vld [vmem:[#allocation11 + $0x6c] sm:$0xff]
    %v1428 = vld [vmem:[#allocation11 + $0x74] sm:$0xf]
    %v1429 = vld [vmem:[#allocation11 + $0x78] sm:$0xff]
    %v1430 = vld [vmem:[#allocation11 + $0x80] sm:$0xf]
    %v1431 = vld [vmem:[#allocation11 + $0x84] sm:$0xff]
    %v1432 = vld [vmem:[#allocation11 + $0x8c] sm:$0xf]
    %v1433 = vld [vmem:[#allocation11 + $0x90] sm:$0xff]
    %v1434 = vld [vmem:[#allocation11 + $0x98] sm:$0xf]
    %v1435 = vld [vmem:[#allocation11 + $0x9c] sm:$0xff]
    %v1436 = vld [vmem:[#allocation11 + $0xa4] sm:$0xf]
    %v1437 = vld [vmem:[#allocation11 + $0xa8] sm:$0xff]
    %v1438 = vld [vmem:[#allocation11 + $0xb0] sm:$0xf]
    %v1439 = vld [vmem:[#allocation11 + $0xb4] sm:$0xff]
    %v1440 = vld [vmem:[#allocation11 + $0xbc] sm:$0xf]
    %v1473 = vunpack.c.l.b16 %v1409
    %v1474 = vunpack.c.h.b16 %v1409
    %v1475 = vunpack.c.l.b16 %v1410
    %v1476 = vunpack.c.l.b16 %v1411
    %v1477 = vunpack.c.h.b16 %v1411
    %v1478 = vunpack.c.l.b16 %v1412
    %v1479 = vunpack.c.l.b16 %v1413
    %v1480 = vunpack.c.h.b16 %v1413
    %v1481 = vunpack.c.l.b16 %v1414
    %v1482 = vunpack.c.l.b16 %v1415
    %v1483 = vunpack.c.h.b16 %v1415
    %v1484 = vunpack.c.l.b16 %v1416
    %v1485 = vunpack.c.l.b16 %v1417
    %v1486 = vunpack.c.h.b16 %v1417
    %v1487 = vunpack.c.l.b16 %v1418
    %v1488 = vunpack.c.l.b16 %v1419
    %v1489 = vunpack.c.h.b16 %v1419
    %v1490 = vunpack.c.l.b16 %v1420
    %v1491 = vunpack.c.l.b16 %v1421
    %v1492 = vunpack.c.h.b16 %v1421
    %v1493 = vunpack.c.l.b16 %v1422
    %v1494 = vunpack.c.l.b16 %v1423
    %v1495 = vunpack.c.h.b16 %v1423
    %v1496 = vunpack.c.l.b16 %v1424
    %v1497 = vunpack.c.l.b16 %v1425
    %v1498 = vunpack.c.h.b16 %v1425
    %v1499 = vunpack.c.l.b16 %v1426
    %v1500 = vunpack.c.l.b16 %v1427
    %v1501 = vunpack.c.h.b16 %v1427
    %v1502 = vunpack.c.l.b16 %v1428
    %v1503 = vunpack.c.l.b16 %v1429
    %v1504 = vunpack.c.h.b16 %v1429
    %v1505 = vunpack.c.l.b16 %v1430
    %v1506 = vunpack.c.l.b16 %v1431
    %v1507 = vunpack.c.h.b16 %v1431
    %v1508 = vunpack.c.l.b16 %v1432
    %v1509 = vunpack.c.l.b16 %v1433
    %v1510 = vunpack.c.h.b16 %v1433
    %v1511 = vunpack.c.l.b16 %v1434
    %v1512 = vunpack.c.l.b16 %v1435
    %v1513 = vunpack.c.h.b16 %v1435
    %v1514 = vunpack.c.l.b16 %v1436
    %v1515 = vunpack.c.l.b16 %v1437
    %v1516 = vunpack.c.h.b16 %v1437
    %v1517 = vunpack.c.l.b16 %v1438
    %v1518 = vunpack.c.l.b16 %v1439
    %v1519 = vunpack.c.h.b16 %v1439
    %v1520 = vunpack.c.l.b16 %v1440
    %v1521 = vpack.c.b16 %v1476, %v1473
    %v1522 = vpack.c.b16 %v1477, %v1474
    %v1523 = vpack.c.b16 %v1478, %v1475
    %v1524 = vpack.c.b16 %v1482, %v1479
    %v1525 = vpack.c.b16 %v1483, %v1480
    %v1526 = vpack.c.b16 %v1484, %v1481
    %v1527 = vpack.c.b16 %v1488, %v1485
    %v1528 = vpack.c.b16 %v1489, %v1486
    %v1529 = vpack.c.b16 %v1490, %v1487
    %v1530 = vpack.c.b16 %v1494, %v1491
    %v1531 = vpack.c.b16 %v1495, %v1492
    %v1532 = vpack.c.b16 %v1496, %v1493
    %v1533 = vpack.c.b16 %v1500, %v1497
    %v1534 = vpack.c.b16 %v1501, %v1498
    %v1535 = vpack.c.b16 %v1502, %v1499
    %v1536 = vpack.c.b16 %v1506, %v1503
    %v1537 = vpack.c.b16 %v1507, %v1504
    %v1538 = vpack.c.b16 %v1508, %v1505
    %v1539 = vpack.c.b16 %v1512, %v1509
    %v1540 = vpack.c.b16 %v1513, %v1510
    %v1541 = vpack.c.b16 %v1514, %v1511
    %v1542 = vpack.c.b16 %v1518, %v1515
    %v1543 = vpack.c.b16 %v1519, %v1516
    %v1544 = vpack.c.b16 %v1520, %v1517
    %1569 = vmatprep.subr.bf16.mxu0 %v1522
    %1570 = vmatpush1.bf16.msra.mxu0 %v1521
    %1571 = vmatprep.subr.bf16.mxu0 %v1525
    %1572 = vmatpush1.bf16.msra.mxu0 %v1524
    %1573 = vmatprep.subr.bf16.mxu0 %v1528
    %1574 = vmatpush1.bf16.msra.mxu0 %v1527
    %1575 = vmatprep.subr.bf16.mxu0 %v1531
    %1576 = vmatpush1.bf16.msra.mxu0 %v1530
    %1577 = vmatprep.subr.bf16.mxu0 %v1534
    %1578 = vmatpush1.bf16.msra.mxu0 %v1533
    %1579 = vmatprep.subr.bf16.mxu0 %v1537
    %1580 = vmatpush1.bf16.msra.mxu0 %v1536
    %1581 = vmatprep.subr.bf16.mxu0 %v1540
    %1582 = vmatpush1.bf16.msra.mxu0 %v1539
    %1583 = vmatprep.subr.bf16.mxu0 %v1543
    %1584 = vmatpush1.bf16.msra.mxu0 %v1542
    %1585 = vmatprep.subr.bf16.mxu0 0
    %1586 = vmatpush1.bf16.msra.mxu0 0
    %1587 = vmatprep.subr.bf16.mxu0 0
    %1588 = vmatpush1.bf16.msra.mxu0 0
    %1589 = vmatprep.subr.bf16.mxu0 0
    %1590 = vmatpush1.bf16.msra.mxu0 0
    %1591 = vmatprep.subr.bf16.mxu0 0
    %1592 = vmatpush1.bf16.msra.mxu0 0
    %1593 = vmatprep.subr.bf16.mxu0 0
    %1594 = vmatpush1.bf16.msra.mxu0 0
    %1595 = vmatprep.subr.bf16.mxu0 0
    %1596 = vmatpush1.bf16.msra.mxu0 0
    %1597 = vmatprep.subr.bf16.mxu0 0
    %1598 = vmatpush1.bf16.msra.mxu0 0
    %1599 = vmatprep.subr.bf16.mxu0 0
    %1600 = vmatpush1.bf16.msra.mxu0 0
    %1601 = vmatprep.mubr.bf16.mxu0 0
    %1602 = vmatmul.mubr.bf16.gmra.mrb[0].mxu0 %v1408
    %v1603 = vpop.f32.mrb[0].mxu0
    %v1604 = vadd.f32 %v537, %v1603
    %v1605 = vpop.f32.mrb[0].mxu0
    %v1606 = vadd.f32 %v541, %v1605
    %v1607 = vpop.f32.mrb[0].mxu0
    %v1608 = vpop.f32.mrb[0].mxu0
    %1609 = vdwg.mxu0
    %1610 = vmatprep.subr.bf16.mxu0 0
    %1611 = vmatpush1.bf16.msra.mxu0 %v1523
    %1612 = vmatprep.subr.bf16.mxu0 0
    %1613 = vmatpush1.bf16.msra.mxu0 %v1526
    %1614 = vmatprep.subr.bf16.mxu0 0
    %1615 = vmatpush1.bf16.msra.mxu0 %v1529
    %1616 = vmatprep.subr.bf16.mxu0 0
    %1617 = vmatpush1.bf16.msra.mxu0 %v1532
    %1618 = vmatprep.subr.bf16.mxu0 0
    %1619 = vmatpush1.bf16.msra.mxu0 %v1535
    %1620 = vmatprep.subr.bf16.mxu0 0
    %1621 = vmatpush1.bf16.msra.mxu0 %v1538
    %1622 = vmatprep.subr.bf16.mxu0 0
    %1623 = vmatpush1.bf16.msra.mxu0 %v1541
    %1624 = vmatprep.subr.bf16.mxu0 0
    %1625 = vmatpush1.bf16.msra.mxu0 %v1544
    %1626 = vmatprep.subr.bf16.mxu0 0
    %1627 = vmatpush1.bf16.msra.mxu0 0
    %1628 = vmatprep.subr.bf16.mxu0 0
    %1629 = vmatpush1.bf16.msra.mxu0 0
    %1630 = vmatprep.subr.bf16.mxu0 0
    %1631 = vmatpush1.bf16.msra.mxu0 0
    %1632 = vmatprep.subr.bf16.mxu0 0
    %1633 = vmatpush1.bf16.msra.mxu0 0
    %1634 = vmatprep.subr.bf16.mxu0 0
    %1635 = vmatpush1.bf16.msra.mxu0 0
    %1636 = vmatprep.subr.bf16.mxu0 0
    %1637 = vmatpush1.bf16.msra.mxu0 0
    %1638 = vmatprep.subr.bf16.mxu0 0
    %1639 = vmatpush1.bf16.msra.mxu0 0
    %1640 = vmatprep.subr.bf16.mxu0 0
    %1641 = vmatpush1.bf16.msra.mxu0 0
    %1642 = vmatprep.mubr.bf16.mxu0 0
    %1643 = vmatmul.mubr.bf16.gmra.mrb[0].mxu0 %v1408
    %v1644 = vpop.f32.mrb[0].mxu0
    %v1645 = vadd.f32 %v545, %v1644
    %v1646 = vpop.f32.mrb[0].mxu0
    %v1647 = vpop.f32.mrb[0].mxu0
    %v1648 = vpop.f32.mrb[0].mxu0
    %1649 = vdwg.mxu0
    %v1650 = vadd.f32 %v1362, %v1604
    %v1651 = vxor.u32 %v1650, 2147483648
    %v1652 = vmul.f32 %v1651, 1.442695
    %v1653 = vpow.pop %v1652
    %v1654 = vadd.f32 %v1653, 1.0
    %v1655 = vrcp.pop %v1654
    %v1656 = vmul.f32 1.0, %v1655
    %v1657 = vadd.f32 %v1364, %v1606
    %v1658 = vxor.u32 %v1657, 2147483648
    %v1659 = vmul.f32 %v1658, 1.442695
    %v1660 = vpow.pop %v1659
    %v1661 = vadd.f32 %v1660, 1.0
    %v1662 = vrcp.pop %v1661
    %v1663 = vmul.f32 1.0, %v1662
    %v1664 = vmul.f32 %v1656, %v1645
    %v1665 = vadd.f32 %v1403, %v1664
    %v1666 = vtanh.pop %v1665
    %v1667 = vsub.f32 1.0, %v1663
    %v1668 = vmul.f32 %v1667, %v1666
    %v1669 = vmul.f32 %v1663, %v1160
    %v1670 = vadd.f32 %v1668, %v1669
    %1671 = vst [vmem:[#allocation2 + $0x2] sm:$0x1] %v1670
    %s1672 = sld [smem:[#allocation4 + $0x3]]
    %s1673 = scalar_lea.vmem [#allocation5], %s1672
    %v1674 = vld [vmem:[%s1673] sm:$0x1]
    %v1675 = vmax.f32 %v1674, 0.0
    %v1676 = vpack.c.bf16 %v1675, %v1675
    %v1677 = vld [vmem:[#allocation10] sm:$0xff]
    %v1678 = vld [vmem:[#allocation10 + $0x8] sm:$0xf]
    %v1679 = vld [vmem:[#allocation10 + $0xc] sm:$0xff]
    %v1680 = vld [vmem:[#allocation10 + $0x14] sm:$0xf]
    %v1681 = vld [vmem:[#allocation10 + $0x18] sm:$0xff]
    %v1682 = vld [vmem:[#allocation10 + $0x20] sm:$0xf]
    %v1683 = vld [vmem:[#allocation10 + $0x24] sm:$0xff]
    %v1684 = vld [vmem:[#allocation10 + $0x2c] sm:$0xf]
    %v1685 = vld [vmem:[#allocation10 + $0x30] sm:$0xff]
    %v1686 = vld [vmem:[#allocation10 + $0x38] sm:$0xf]
    %v1687 = vld [vmem:[#allocation10 + $0x3c] sm:$0xff]
    %v1688 = vld [vmem:[#allocation10 + $0x44] sm:$0xf]
    %v1689 = vld [vmem:[#allocation10 + $0x48] sm:$0xff]
    %v1690 = vld [vmem:[#allocation10 + $0x50] sm:$0xf]
    %v1691 = vld [vmem:[#allocation10 + $0x54] sm:$0xff]
    %v1692 = vld [vmem:[#allocation10 + $0x5c] sm:$0xf]
    %v1693 = vld [vmem:[#allocation10 + $0x60] sm:$0xff]
    %v1694 = vld [vmem:[#allocation10 + $0x68] sm:$0xf]
    %v1695 = vld [vmem:[#allocation10 + $0x6c] sm:$0xff]
    %v1696 = vld [vmem:[#allocation10 + $0x74] sm:$0xf]
    %v1697 = vld [vmem:[#allocation10 + $0x78] sm:$0xff]
    %v1698 = vld [vmem:[#allocation10 + $0x80] sm:$0xf]
    %v1699 = vld [vmem:[#allocation10 + $0x84] sm:$0xff]
    %v1700 = vld [vmem:[#allocation10 + $0x8c] sm:$0xf]
    %v1701 = vld [vmem:[#allocation10 + $0x90] sm:$0xff]
    %v1702 = vld [vmem:[#allocation10 + $0x98] sm:$0xf]
    %v1703 = vld [vmem:[#allocation10 + $0x9c] sm:$0xff]
    %v1704 = vld [vmem:[#allocation10 + $0xa4] sm:$0xf]
    %v1705 = vld [vmem:[#allocation10 + $0xa8] sm:$0xff]
    %v1706 = vld [vmem:[#allocation10 + $0xb0] sm:$0xf]
    %v1707 = vld [vmem:[#allocation10 + $0xb4] sm:$0xff]
    %v1708 = vld [vmem:[#allocation10 + $0xbc] sm:$0xf]
    %v1741 = vunpack.c.l.b16 %v1677
    %v1742 = vunpack.c.h.b16 %v1677
    %v1743 = vunpack.c.l.b16 %v1678
    %v1744 = vunpack.c.l.b16 %v1679
    %v1745 = vunpack.c.h.b16 %v1679
    %v1746 = vunpack.c.l.b16 %v1680
    %v1747 = vunpack.c.l.b16 %v1681
    %v1748 = vunpack.c.h.b16 %v1681
    %v1749 = vunpack.c.l.b16 %v1682
    %v1750 = vunpack.c.l.b16 %v1683
    %v1751 = vunpack.c.h.b16 %v1683
    %v1752 = vunpack.c.l.b16 %v1684
    %v1753 = vunpack.c.l.b16 %v1685
    %v1754 = vunpack.c.h.b16 %v1685
    %v1755 = vunpack.c.l.b16 %v1686
    %v1756 = vunpack.c.l.b16 %v1687
    %v1757 = vunpack.c.h.b16 %v1687
    %v1758 = vunpack.c.l.b16 %v1688
    %v1759 = vunpack.c.l.b16 %v1689
    %v1760 = vunpack.c.h.b16 %v1689
    %v1761 = vunpack.c.l.b16 %v1690
    %v1762 = vunpack.c.l.b16 %v1691
    %v1763 = vunpack.c.h.b16 %v1691
    %v1764 = vunpack.c.l.b16 %v1692
    %v1765 = vunpack.c.l.b16 %v1693
    %v1766 = vunpack.c.h.b16 %v1693
    %v1767 = vunpack.c.l.b16 %v1694
    %v1768 = vunpack.c.l.b16 %v1695
    %v1769 = vunpack.c.h.b16 %v1695
    %v1770 = vunpack.c.l.b16 %v1696
    %v1771 = vunpack.c.l.b16 %v1697
    %v1772 = vunpack.c.h.b16 %v1697
    %v1773 = vunpack.c.l.b16 %v1698
    %v1774 = vunpack.c.l.b16 %v1699
    %v1775 = vunpack.c.h.b16 %v1699
    %v1776 = vunpack.c.l.b16 %v1700
    %v1777 = vunpack.c.l.b16 %v1701
    %v1778 = vunpack.c.h.b16 %v1701
    %v1779 = vunpack.c.l.b16 %v1702
    %v1780 = vunpack.c.l.b16 %v1703
    %v1781 = vunpack.c.h.b16 %v1703
    %v1782 = vunpack.c.l.b16 %v1704
    %v1783 = vunpack.c.l.b16 %v1705
    %v1784 = vunpack.c.h.b16 %v1705
    %v1785 = vunpack.c.l.b16 %v1706
    %v1786 = vunpack.c.l.b16 %v1707
    %v1787 = vunpack.c.h.b16 %v1707
    %v1788 = vunpack.c.l.b16 %v1708
    %v1789 = vpack.c.b16 %v1744, %v1741
    %v1790 = vpack.c.b16 %v1745, %v1742
    %v1791 = vpack.c.b16 %v1746, %v1743
    %v1792 = vpack.c.b16 %v1750, %v1747
    %v1793 = vpack.c.b16 %v1751, %v1748
    %v1794 = vpack.c.b16 %v1752, %v1749
    %v1795 = vpack.c.b16 %v1756, %v1753
    %v1796 = vpack.c.b16 %v1757, %v1754
    %v1797 = vpack.c.b16 %v1758, %v1755
    %v1798 = vpack.c.b16 %v1762, %v1759
    %v1799 = vpack.c.b16 %v1763, %v1760
    %v1800 = vpack.c.b16 %v1764, %v1761
    %v1801 = vpack.c.b16 %v1768, %v1765
    %v1802 = vpack.c.b16 %v1769, %v1766
    %v1803 = vpack.c.b16 %v1770, %v1767
    %v1804 = vpack.c.b16 %v1774, %v1771
    %v1805 = vpack.c.b16 %v1775, %v1772
    %v1806 = vpack.c.b16 %v1776, %v1773
    %v1807 = vpack.c.b16 %v1780, %v1777
    %v1808 = vpack.c.b16 %v1781, %v1778
    %v1809 = vpack.c.b16 %v1782, %v1779
    %v1810 = vpack.c.b16 %v1786, %v1783
    %v1811 = vpack.c.b16 %v1787, %v1784
    %v1812 = vpack.c.b16 %v1788, %v1785
    %1837 = vmatprep.subr.bf16.mxu0 %v1790
    %1838 = vmatpush1.bf16.msra.mxu0 %v1789
    %1839 = vmatprep.subr.bf16.mxu0 %v1793
    %1840 = vmatpush1.bf16.msra.mxu0 %v1792
    %1841 = vmatprep.subr.bf16.mxu0 %v1796
    %1842 = vmatpush1.bf16.msra.mxu0 %v1795
    %1843 = vmatprep.subr.bf16.mxu0 %v1799
    %1844 = vmatpush1.bf16.msra.mxu0 %v1798
    %1845 = vmatprep.subr.bf16.mxu0 %v1802
    %1846 = vmatpush1.bf16.msra.mxu0 %v1801
    %1847 = vmatprep.subr.bf16.mxu0 %v1805
    %1848 = vmatpush1.bf16.msra.mxu0 %v1804
    %1849 = vmatprep.subr.bf16.mxu0 %v1808
    %1850 = vmatpush1.bf16.msra.mxu0 %v1807
    %1851 = vmatprep.subr.bf16.mxu0 %v1811
    %1852 = vmatpush1.bf16.msra.mxu0 %v1810
    %1853 = vmatprep.subr.bf16.mxu0 0
    %1854 = vmatpush1.bf16.msra.mxu0 0
    %1855 = vmatprep.subr.bf16.mxu0 0
    %1856 = vmatpush1.bf16.msra.mxu0 0
    %1857 = vmatprep.subr.bf16.mxu0 0
    %1858 = vmatpush1.bf16.msra.mxu0 0
    %1859 = vmatprep.subr.bf16.mxu0 0
    %1860 = vmatpush1.bf16.msra.mxu0 0
    %1861 = vmatprep.subr.bf16.mxu0 0
    %1862 = vmatpush1.bf16.msra.mxu0 0
    %1863 = vmatprep.subr.bf16.mxu0 0
    %1864 = vmatpush1.bf16.msra.mxu0 0
    %1865 = vmatprep.subr.bf16.mxu0 0
    %1866 = vmatpush1.bf16.msra.mxu0 0
    %1867 = vmatprep.subr.bf16.mxu0 0
    %1868 = vmatpush1.bf16.msra.mxu0 0
    %1869 = vmatprep.mubr.bf16.mxu0 0
    %1870 = vmatmul.mubr.bf16.gmra.mrb[0].mxu0 %v1676
    %v1871 = vpop.f32.mrb[0].mxu0
    %v1872 = vadd.f32 %v279, %v1871
    %v1873 = vpop.f32.mrb[0].mxu0
    %v1874 = vadd.f32 %v283, %v1873
    %v1875 = vpop.f32.mrb[0].mxu0
    %v1876 = vpop.f32.mrb[0].mxu0
    %1877 = vdwg.mxu0
    %1878 = vmatprep.subr.bf16.mxu0 0
    %1879 = vmatpush1.bf16.msra.mxu0 %v1791
    %1880 = vmatprep.subr.bf16.mxu0 0
    %1881 = vmatpush1.bf16.msra.mxu0 %v1794
    %1882 = vmatprep.subr.bf16.mxu0 0
    %1883 = vmatpush1.bf16.msra.mxu0 %v1797
    %1884 = vmatprep.subr.bf16.mxu0 0
    %1885 = vmatpush1.bf16.msra.mxu0 %v1800
    %1886 = vmatprep.subr.bf16.mxu0 0
    %1887 = vmatpush1.bf16.msra.mxu0 %v1803
    %1888 = vmatprep.subr.bf16.mxu0 0
    %1889 = vmatpush1.bf16.msra.mxu0 %v1806
    %1890 = vmatprep.subr.bf16.mxu0 0
    %1891 = vmatpush1.bf16.msra.mxu0 %v1809
    %1892 = vmatprep.subr.bf16.mxu0 0
    %1893 = vmatpush1.bf16.msra.mxu0 %v1812
    %1894 = vmatprep.subr.bf16.mxu0 0
    %1895 = vmatpush1.bf16.msra.mxu0 0
    %1896 = vmatprep.subr.bf16.mxu0 0
    %1897 = vmatpush1.bf16.msra.mxu0 0
    %1898 = vmatprep.subr.bf16.mxu0 0
    %1899 = vmatpush1.bf16.msra.mxu0 0
    %1900 = vmatprep.subr.bf16.mxu0 0
    %1901 = vmatpush1.bf16.msra.mxu0 0
    %1902 = vmatprep.subr.bf16.mxu0 0
    %1903 = vmatpush1.bf16.msra.mxu0 0
    %1904 = vmatprep.subr.bf16.mxu0 0
    %1905 = vmatpush1.bf16.msra.mxu0 0
    %1906 = vmatprep.subr.bf16.mxu0 0
    %1907 = vmatpush1.bf16.msra.mxu0 0
    %1908 = vmatprep.subr.bf16.mxu0 0
    %1909 = vmatpush1.bf16.msra.mxu0 0
    %1910 = vmatprep.mubr.bf16.mxu0 0
    %1911 = vmatmul.mubr.bf16.gmra.mrb[0].mxu0 %v1676
    %v1912 = vpop.f32.mrb[0].mxu0
    %v1913 = vadd.f32 %v287, %v1912
    %v1914 = vpop.f32.mrb[0].mxu0
    %v1915 = vpop.f32.mrb[0].mxu0
    %v1916 = vpop.f32.mrb[0].mxu0
    %1917 = vdwg.mxu0
    %v1918 = vpack.c.bf16 %v1670, %v1670
    %v1919 = vld [vmem:[#allocation11] sm:$0xff]
    %v1920 = vld [vmem:[#allocation11 + $0x8] sm:$0xf]
    %v1921 = vld [vmem:[#allocation11 + $0xc] sm:$0xff]
    %v1922 = vld [vmem:[#allocation11 + $0x14] sm:$0xf]
    %v1923 = vld [vmem:[#allocation11 + $0x18] sm:$0xff]
    %v1924 = vld [vmem:[#allocation11 + $0x20] sm:$0xf]
    %v1925 = vld [vmem:[#allocation11 + $0x24] sm:$0xff]
    %v1926 = vld [vmem:[#allocation11 + $0x2c] sm:$0xf]
    %v1927 = vld [vmem:[#allocation11 + $0x30] sm:$0xff]
    %v1928 = vld [vmem:[#allocation11 + $0x38] sm:$0xf]
    %v1929 = vld [vmem:[#allocation11 + $0x3c] sm:$0xff]
    %v1930 = vld [vmem:[#allocation11 + $0x44] sm:$0xf]
    %v1931 = vld [vmem:[#allocation11 + $0x48] sm:$0xff]
    %v1932 = vld [vmem:[#allocation11 + $0x50] sm:$0xf]
    %v1933 = vld [vmem:[#allocation11 + $0x54] sm:$0xff]
    %v1934 = vld [vmem:[#allocation11 + $0x5c] sm:$0xf]
    %v1935 = vld [vmem:[#allocation11 + $0x60] sm:$0xff]
    %v1936 = vld [vmem:[#allocation11 + $0x68] sm:$0xf]
    %v1937 = vld [vmem:[#allocation11 + $0x6c] sm:$0xff]
    %v1938 = vld [vmem:[#allocation11 + $0x74] sm:$0xf]
    %v1939 = vld [vmem:[#allocation11 + $0x78] sm:$0xff]
    %v1940 = vld [vmem:[#allocation11 + $0x80] sm:$0xf]
    %v1941 = vld [vmem:[#allocation11 + $0x84] sm:$0xff]
    %v1942 = vld [vmem:[#allocation11 + $0x8c] sm:$0xf]
    %v1943 = vld [vmem:[#allocation11 + $0x90] sm:$0xff]
    %v1944 = vld [vmem:[#allocation11 + $0x98] sm:$0xf]
    %v1945 = vld [vmem:[#allocation11 + $0x9c] sm:$0xff]
    %v1946 = vld [vmem:[#allocation11 + $0xa4] sm:$0xf]
    %v1947 = vld [vmem:[#allocation11 + $0xa8] sm:$0xff]
    %v1948 = vld [vmem:[#allocation11 + $0xb0] sm:$0xf]
    %v1949 = vld [vmem:[#allocation11 + $0xb4] sm:$0xff]
    %v1950 = vld [vmem:[#allocation11 + $0xbc] sm:$0xf]
    %v1983 = vunpack.c.l.b16 %v1919
    %v1984 = vunpack.c.h.b16 %v1919
    %v1985 = vunpack.c.l.b16 %v1920
    %v1986 = vunpack.c.l.b16 %v1921
    %v1987 = vunpack.c.h.b16 %v1921
    %v1988 = vunpack.c.l.b16 %v1922
    %v1989 = vunpack.c.l.b16 %v1923
    %v1990 = vunpack.c.h.b16 %v1923
    %v1991 = vunpack.c.l.b16 %v1924
    %v1992 = vunpack.c.l.b16 %v1925
    %v1993 = vunpack.c.h.b16 %v1925
    %v1994 = vunpack.c.l.b16 %v1926
    %v1995 = vunpack.c.l.b16 %v1927
    %v1996 = vunpack.c.h.b16 %v1927
    %v1997 = vunpack.c.l.b16 %v1928
    %v1998 = vunpack.c.l.b16 %v1929
    %v1999 = vunpack.c.h.b16 %v1929
    %v2000 = vunpack.c.l.b16 %v1930
    %v2001 = vunpack.c.l.b16 %v1931
    %v2002 = vunpack.c.h.b16 %v1931
    %v2003 = vunpack.c.l.b16 %v1932
    %v2004 = vunpack.c.l.b16 %v1933
    %v2005 = vunpack.c.h.b16 %v1933
    %v2006 = vunpack.c.l.b16 %v1934
    %v2007 = vunpack.c.l.b16 %v1935
    %v2008 = vunpack.c.h.b16 %v1935
    %v2009 = vunpack.c.l.b16 %v1936
    %v2010 = vunpack.c.l.b16 %v1937
    %v2011 = vunpack.c.h.b16 %v1937
    %v2012 = vunpack.c.l.b16 %v1938
    %v2013 = vunpack.c.l.b16 %v1939
    %v2014 = vunpack.c.h.b16 %v1939
    %v2015 = vunpack.c.l.b16 %v1940
    %v2016 = vunpack.c.l.b16 %v1941
    %v2017 = vunpack.c.h.b16 %v1941
    %v2018 = vunpack.c.l.b16 %v1942
    %v2019 = vunpack.c.l.b16 %v1943
    %v2020 = vunpack.c.h.b16 %v1943
    %v2021 = vunpack.c.l.b16 %v1944
    %v2022 = vunpack.c.l.b16 %v1945
    %v2023 = vunpack.c.h.b16 %v1945
    %v2024 = vunpack.c.l.b16 %v1946
    %v2025 = vunpack.c.l.b16 %v1947
    %v2026 = vunpack.c.h.b16 %v1947
    %v2027 = vunpack.c.l.b16 %v1948
    %v2028 = vunpack.c.l.b16 %v1949
    %v2029 = vunpack.c.h.b16 %v1949
    %v2030 = vunpack.c.l.b16 %v1950
    %v2031 = vpack.c.b16 %v1986, %v1983
    %v2032 = vpack.c.b16 %v1987, %v1984
    %v2033 = vpack.c.b16 %v1988, %v1985
    %v2034 = vpack.c.b16 %v1992, %v1989
    %v2035 = vpack.c.b16 %v1993, %v1990
    %v2036 = vpack.c.b16 %v1994, %v1991
    %v2037 = vpack.c.b16 %v1998, %v1995
    %v2038 = vpack.c.b16 %v1999, %v1996
    %v2039 = vpack.c.b16 %v2000, %v1997
    %v2040 = vpack.c.b16 %v2004, %v2001
    %v2041 = vpack.c.b16 %v2005, %v2002
    %v2042 = vpack.c.b16 %v2006, %v2003
    %v2043 = vpack.c.b16 %v2010, %v2007
    %v2044 = vpack.c.b16 %v2011, %v2008
    %v2045 = vpack.c.b16 %v2012, %v2009
    %v2046 = vpack.c.b16 %v2016, %v2013
    %v2047 = vpack.c.b16 %v2017, %v2014
    %v2048 = vpack.c.b16 %v2018, %v2015
    %v2049 = vpack.c.b16 %v2022, %v2019
    %v2050 = vpack.c.b16 %v2023, %v2020
    %v2051 = vpack.c.b16 %v2024, %v2021
    %v2052 = vpack.c.b16 %v2028, %v2025
    %v2053 = vpack.c.b16 %v2029, %v2026
    %v2054 = vpack.c.b16 %v2030, %v2027
    %2079 = vmatprep.subr.bf16.mxu0 %v2032
    %2080 = vmatpush1.bf16.msra.mxu0 %v2031
    %2081 = vmatprep.subr.bf16.mxu0 %v2035
    %2082 = vmatpush1.bf16.msra.mxu0 %v2034
    %2083 = vmatprep.subr.bf16.mxu0 %v2038
    %2084 = vmatpush1.bf16.msra.mxu0 %v2037
    %2085 = vmatprep.subr.bf16.mxu0 %v2041
    %2086 = vmatpush1.bf16.msra.mxu0 %v2040
    %2087 = vmatprep.subr.bf16.mxu0 %v2044
    %2088 = vmatpush1.bf16.msra.mxu0 %v2043
    %2089 = vmatprep.subr.bf16.mxu0 %v2047
    %2090 = vmatpush1.bf16.msra.mxu0 %v2046
    %2091 = vmatprep.subr.bf16.mxu0 %v2050
    %2092 = vmatpush1.bf16.msra.mxu0 %v2049
    %2093 = vmatprep.subr.bf16.mxu0 %v2053
    %2094 = vmatpush1.bf16.msra.mxu0 %v2052
    %2095 = vmatprep.subr.bf16.mxu0 0
    %2096 = vmatpush1.bf16.msra.mxu0 0
    %2097 = vmatprep.subr.bf16.mxu0 0
    %2098 = vmatpush1.bf16.msra.mxu0 0
    %2099 = vmatprep.subr.bf16.mxu0 0
    %2100 = vmatpush1.bf16.msra.mxu0 0
    %2101 = vmatprep.subr.bf16.mxu0 0
    %2102 = vmatpush1.bf16.msra.mxu0 0
    %2103 = vmatprep.subr.bf16.mxu0 0
    %2104 = vmatpush1.bf16.msra.mxu0 0
    %2105 = vmatprep.subr.bf16.mxu0 0
    %2106 = vmatpush1.bf16.msra.mxu0 0
    %2107 = vmatprep.subr.bf16.mxu0 0
    %2108 = vmatpush1.bf16.msra.mxu0 0
    %2109 = vmatprep.subr.bf16.mxu0 0
    %2110 = vmatpush1.bf16.msra.mxu0 0
    %2111 = vmatprep.mubr.bf16.mxu0 0
    %2112 = vmatmul.mubr.bf16.gmra.mrb[0].mxu0 %v1918
    %v2113 = vpop.f32.mrb[0].mxu0
    %v2114 = vadd.f32 %v537, %v2113
    %v2115 = vpop.f32.mrb[0].mxu0
    %v2116 = vadd.f32 %v541, %v2115
    %v2117 = vpop.f32.mrb[0].mxu0
    %v2118 = vpop.f32.mrb[0].mxu0
    %2119 = vdwg.mxu0
    %2120 = vmatprep.subr.bf16.mxu0 0
    %2121 = vmatpush1.bf16.msra.mxu0 %v2033
    %2122 = vmatprep.subr.bf16.mxu0 0
    %2123 = vmatpush1.bf16.msra.mxu0 %v2036
    %2124 = vmatprep.subr.bf16.mxu0 0
    %2125 = vmatpush1.bf16.msra.mxu0 %v2039
    %2126 = vmatprep.subr.bf16.mxu0 0
    %2127 = vmatpush1.bf16.msra.mxu0 %v2042
    %2128 = vmatprep.subr.bf16.mxu0 0
    %2129 = vmatpush1.bf16.msra.mxu0 %v2045
    %2130 = vmatprep.subr.bf16.mxu0 0
    %2131 = vmatpush1.bf16.msra.mxu0 %v2048
    %2132 = vmatprep.subr.bf16.mxu0 0
    %2133 = vmatpush1.bf16.msra.mxu0 %v2051
    %2134 = vmatprep.subr.bf16.mxu0 0
    %2135 = vmatpush1.bf16.msra.mxu0 %v2054
    %2136 = vmatprep.subr.bf16.mxu0 0
    %2137 = vmatpush1.bf16.msra.mxu0 0
    %2138 = vmatprep.subr.bf16.mxu0 0
    %2139 = vmatpush1.bf16.msra.mxu0 0
    %2140 = vmatprep.subr.bf16.mxu0 0
    %2141 = vmatpush1.bf16.msra.mxu0 0
    %2142 = vmatprep.subr.bf16.mxu0 0
    %2143 = vmatpush1.bf16.msra.mxu0 0
    %2144 = vmatprep.subr.bf16.mxu0 0
    %2145 = vmatpush1.bf16.msra.mxu0 0
    %2146 = vmatprep.subr.bf16.mxu0 0
    %2147 = vmatpush1.bf16.msra.mxu0 0
    %2148 = vmatprep.subr.bf16.mxu0 0
    %2149 = vmatpush1.bf16.msra.mxu0 0
    %2150 = vmatprep.subr.bf16.mxu0 0
    %2151 = vmatpush1.bf16.msra.mxu0 0
    %2152 = vmatprep.mubr.bf16.mxu0 0
    %2153 = vmatmul.mubr.bf16.gmra.mrb[0].mxu0 %v1918
    %v2154 = vpop.f32.mrb[0].mxu0
    %v2155 = vadd.f32 %v545, %v2154
    %v2156 = vpop.f32.mrb[0].mxu0
    %v2157 = vpop.f32.mrb[0].mxu0
    %v2158 = vpop.f32.mrb[0].mxu0
    %2159 = vdwg.mxu0
    %v2160 = vadd.f32 %v1872, %v2114
    %v2161 = vxor.u32 %v2160, 2147483648
    %v2162 = vmul.f32 %v2161, 1.442695
    %v2163 = vpow.pop %v2162
    %v2164 = vadd.f32 %v2163, 1.0
    %v2165 = vrcp.pop %v2164
    %v2166 = vmul.f32 1.0, %v2165
    %v2167 = vadd.f32 %v1874, %v2116
    %v2168 = vxor.u32 %v2167, 2147483648
    %v2169 = vmul.f32 %v2168, 1.442695
    %v2170 = vpow.pop %v2169
    %v2171 = vadd.f32 %v2170, 1.0
    %v2172 = vrcp.pop %v2171
    %v2173 = vmul.f32 1.0, %v2172
    %v2174 = vmul.f32 %v2166, %v2155
    %v2175 = vadd.f32 %v1913, %v2174
    %v2176 = vtanh.pop %v2175
    %v2177 = vsub.f32 1.0, %v2173
    %v2178 = vmul.f32 %v2177, %v2176
    %v2179 = vmul.f32 %v2173, %v1670
    %v2180 = vadd.f32 %v2178, %v2179
    %2181 = vst [vmem:[#allocation2 + $0x3] sm:$0x1] %v2180
    %s2182 = sld [smem:[#allocation4 + $0x4]]
    %s2183 = scalar_lea.vmem [#allocation5], %s2182
    %v2184 = vld [vmem:[%s2183] sm:$0x1]
    %v2185 = vmax.f32 %v2184, 0.0
    %v2186 = vpack.c.bf16 %v2185, %v2185
    %v2187 = vld [vmem:[#allocation10] sm:$0xff]
    %v2188 = vld [vmem:[#allocation10 + $0x8] sm:$0xf]
    %v2189 = vld [vmem:[#allocation10 + $0xc] sm:$0xff]
    %v2190 = vld [vmem:[#allocation10 + $0x14] sm:$0xf]
    %v2191 = vld [vmem:[#allocation10 + $0x18] sm:$0xff]
    %v2192 = vld [vmem:[#allocation10 + $0x20] sm:$0xf]
    %v2193 = vld [vmem:[#allocation10 + $0x24] sm:$0xff]
    %v2194 = vld [vmem:[#allocation10 + $0x2c] sm:$0xf]
    %v2195 = vld [vmem:[#allocation10 + $0x30] sm:$0xff]
    %v2196 = vld [vmem:[#allocation10 + $0x38] sm:$0xf]
    %v2197 = vld [vmem:[#allocation10 + $0x3c] sm:$0xff]
    %v2198 = vld [vmem:[#allocation10 + $0x44] sm:$0xf]
    %v2199 = vld [vmem:[#allocation10 + $0x48] sm:$0xff]
    %v2200 = vld [vmem:[#allocation10 + $0x50] sm:$0xf]
    %v2201 = vld [vmem:[#allocation10 + $0x54] sm:$0xff]
    %v2202 = vld [vmem:[#allocation10 + $0x5c] sm:$0xf]
    %v2203 = vld [vmem:[#allocation10 + $0x60] sm:$0xff]
    %v2204 = vld [vmem:[#allocation10 + $0x68] sm:$0xf]
    %v2205 = vld [vmem:[#allocation10 + $0x6c] sm:$0xff]
    %v2206 = vld [vmem:[#allocation10 + $0x74] sm:$0xf]
    %v2207 = vld [vmem:[#allocation10 + $0x78] sm:$0xff]
    %v2208 = vld [vmem:[#allocation10 + $0x80] sm:$0xf]
    %v2209 = vld [vmem:[#allocation10 + $0x84] sm:$0xff]
    %v2210 = vld [vmem:[#allocation10 + $0x8c] sm:$0xf]
    %v2211 = vld [vmem:[#allocation10 + $0x90] sm:$0xff]
    %v2212 = vld [vmem:[#allocation10 + $0x98] sm:$0xf]
    %v2213 = vld [vmem:[#allocation10 + $0x9c] sm:$0xff]
    %v2214 = vld [vmem:[#allocation10 + $0xa4] sm:$0xf]
    %v2215 = vld [vmem:[#allocation10 + $0xa8] sm:$0xff]
    %v2216 = vld [vmem:[#allocation10 + $0xb0] sm:$0xf]
    %v2217 = vld [vmem:[#allocation10 + $0xb4] sm:$0xff]
    %v2218 = vld [vmem:[#allocation10 + $0xbc] sm:$0xf]
    %v2251 = vunpack.c.l.b16 %v2187
    %v2252 = vunpack.c.h.b16 %v2187
    %v2253 = vunpack.c.l.b16 %v2188
    %v2254 = vunpack.c.l.b16 %v2189
    %v2255 = vunpack.c.h.b16 %v2189
    %v2256 = vunpack.c.l.b16 %v2190
    %v2257 = vunpack.c.l.b16 %v2191
    %v2258 = vunpack.c.h.b16 %v2191
    %v2259 = vunpack.c.l.b16 %v2192
    %v2260 = vunpack.c.l.b16 %v2193
    %v2261 = vunpack.c.h.b16 %v2193
    %v2262 = vunpack.c.l.b16 %v2194
    %v2263 = vunpack.c.l.b16 %v2195
    %v2264 = vunpack.c.h.b16 %v2195
    %v2265 = vunpack.c.l.b16 %v2196
    %v2266 = vunpack.c.l.b16 %v2197
    %v2267 = vunpack.c.h.b16 %v2197
    %v2268 = vunpack.c.l.b16 %v2198
    %v2269 = vunpack.c.l.b16 %v2199
    %v2270 = vunpack.c.h.b16 %v2199
    %v2271 = vunpack.c.l.b16 %v2200
    %v2272 = vunpack.c.l.b16 %v2201
    %v2273 = vunpack.c.h.b16 %v2201
    %v2274 = vunpack.c.l.b16 %v2202
    %v2275 = vunpack.c.l.b16 %v2203
    %v2276 = vunpack.c.h.b16 %v2203
    %v2277 = vunpack.c.l.b16 %v2204
    %v2278 = vunpack.c.l.b16 %v2205
    %v2279 = vunpack.c.h.b16 %v2205
    %v2280 = vunpack.c.l.b16 %v2206
    %v2281 = vunpack.c.l.b16 %v2207
    %v2282 = vunpack.c.h.b16 %v2207
    %v2283 = vunpack.c.l.b16 %v2208
    %v2284 = vunpack.c.l.b16 %v2209
    %v2285 = vunpack.c.h.b16 %v2209
    %v2286 = vunpack.c.l.b16 %v2210
    %v2287 = vunpack.c.l.b16 %v2211
    %v2288 = vunpack.c.h.b16 %v2211
    %v2289 = vunpack.c.l.b16 %v2212
    %v2290 = vunpack.c.l.b16 %v2213
    %v2291 = vunpack.c.h.b16 %v2213
    %v2292 = vunpack.c.l.b16 %v2214
    %v2293 = vunpack.c.l.b16 %v2215
    %v2294 = vunpack.c.h.b16 %v2215
    %v2295 = vunpack.c.l.b16 %v2216
    %v2296 = vunpack.c.l.b16 %v2217
    %v2297 = vunpack.c.h.b16 %v2217
    %v2298 = vunpack.c.l.b16 %v2218
    %v2299 = vpack.c.b16 %v2254, %v2251
    %v2300 = vpack.c.b16 %v2255, %v2252
    %v2301 = vpack.c.b16 %v2256, %v2253
    %v2302 = vpack.c.b16 %v2260, %v2257
    %v2303 = vpack.c.b16 %v2261, %v2258
    %v2304 = vpack.c.b16 %v2262, %v2259
    %v2305 = vpack.c.b16 %v2266, %v2263
    %v2306 = vpack.c.b16 %v2267, %v2264
    %v2307 = vpack.c.b16 %v2268, %v2265
    %v2308 = vpack.c.b16 %v2272, %v2269
    %v2309 = vpack.c.b16 %v2273, %v2270
    %v2310 = vpack.c.b16 %v2274, %v2271
    %v2311 = vpack.c.b16 %v2278, %v2275
    %v2312 = vpack.c.b16 %v2279, %v2276
    %v2313 = vpack.c.b16 %v2280, %v2277
    %v2314 = vpack.c.b16 %v2284, %v2281
    %v2315 = vpack.c.b16 %v2285, %v2282
    %v2316 = vpack.c.b16 %v2286, %v2283
    %v2317 = vpack.c.b16 %v2290, %v2287
    %v2318 = vpack.c.b16 %v2291, %v2288
    %v2319 = vpack.c.b16 %v2292, %v2289
    %v2320 = vpack.c.b16 %v2296, %v2293
    %v2321 = vpack.c.b16 %v2297, %v2294
    %v2322 = vpack.c.b16 %v2298, %v2295
    %2347 = vmatprep.subr.bf16.mxu0 %v2300
    %2348 = vmatpush1.bf16.msra.mxu0 %v2299
    %2349 = vmatprep.subr.bf16.mxu0 %v2303
    %2350 = vmatpush1.bf16.msra.mxu0 %v2302
    %2351 = vmatprep.subr.bf16.mxu0 %v2306
    %2352 = vmatpush1.bf16.msra.mxu0 %v2305
    %2353 = vmatprep.subr.bf16.mxu0 %v2309
    %2354 = vmatpush1.bf16.msra.mxu0 %v2308
    %2355 = vmatprep.subr.bf16.mxu0 %v2312
    %2356 = vmatpush1.bf16.msra.mxu0 %v2311
    %2357 = vmatprep.subr.bf16.mxu0 %v2315
    %2358 = vmatpush1.bf16.msra.mxu0 %v2314
    %2359 = vmatprep.subr.bf16.mxu0 %v2318
    %2360 = vmatpush1.bf16.msra.mxu0 %v2317
    %2361 = vmatprep.subr.bf16.mxu0 %v2321
    %2362 = vmatpush1.bf16.msra.mxu0 %v2320
    %2363 = vmatprep.subr.bf16.mxu0 0
    %2364 = vmatpush1.bf16.msra.mxu0 0
    %2365 = vmatprep.subr.bf16.mxu0 0
    %2366 = vmatpush1.bf16.msra.mxu0 0
    %2367 = vmatprep.subr.bf16.mxu0 0
    %2368 = vmatpush1.bf16.msra.mxu0 0
    %2369 = vmatprep.subr.bf16.mxu0 0
    %2370 = vmatpush1.bf16.msra.mxu0 0
    %2371 = vmatprep.subr.bf16.mxu0 0
    %2372 = vmatpush1.bf16.msra.mxu0 0
    %2373 = vmatprep.subr.bf16.mxu0 0
    %2374 = vmatpush1.bf16.msra.mxu0 0
    %2375 = vmatprep.subr.bf16.mxu0 0
    %2376 = vmatpush1.bf16.msra.mxu0 0
    %2377 = vmatprep.subr.bf16.mxu0 0
    %2378 = vmatpush1.bf16.msra.mxu0 0
    %2379 = vmatprep.mubr.bf16.mxu0 0
    %2380 = vmatmul.mubr.bf16.gmra.mrb[0].mxu0 %v2186
    %v2381 = vpop.f32.mrb[0].mxu0
    %v2382 = vadd.f32 %v279, %v2381
    %v2383 = vpop.f32.mrb[0].mxu0
    %v2384 = vadd.f32 %v283, %v2383
    %v2385 = vpop.f32.mrb[0].mxu0
    %v2386 = vpop.f32.mrb[0].mxu0
    %2387 = vdwg.mxu0
    %2388 = vmatprep.subr.bf16.mxu0 0
    %2389 = vmatpush1.bf16.msra.mxu0 %v2301
    %2390 = vmatprep.subr.bf16.mxu0 0
    %2391 = vmatpush1.bf16.msra.mxu0 %v2304
    %2392 = vmatprep.subr.bf16.mxu0 0
    %2393 = vmatpush1.bf16.msra.mxu0 %v2307
    %2394 = vmatprep.subr.bf16.mxu0 0
    %2395 = vmatpush1.bf16.msra.mxu0 %v2310
    %2396 = vmatprep.subr.bf16.mxu0 0
    %2397 = vmatpush1.bf16.msra.mxu0 %v2313
    %2398 = vmatprep.subr.bf16.mxu0 0
    %2399 = vmatpush1.bf16.msra.mxu0 %v2316
    %2400 = vmatprep.subr.bf16.mxu0 0
    %2401 = vmatpush1.bf16.msra.mxu0 %v2319
    %2402 = vmatprep.subr.bf16.mxu0 0
    %2403 = vmatpush1.bf16.msra.mxu0 %v2322
    %2404 = vmatprep.subr.bf16.mxu0 0
    %2405 = vmatpush1.bf16.msra.mxu0 0
    %2406 = vmatprep.subr.bf16.mxu0 0
    %2407 = vmatpush1.bf16.msra.mxu0 0
    %2408 = vmatprep.subr.bf16.mxu0 0
    %2409 = vmatpush1.bf16.msra.mxu0 0
    %2410 = vmatprep.subr.bf16.mxu0 0
    %2411 = vmatpush1.bf16.msra.mxu0 0
    %2412 = vmatprep.subr.bf16.mxu0 0
    %2413 = vmatpush1.bf16.msra.mxu0 0
    %2414 = vmatprep.subr.bf16.mxu0 0
    %2415 = vmatpush1.bf16.msra.mxu0 0
    %2416 = vmatprep.subr.bf16.mxu0 0
    %2417 = vmatpush1.bf16.msra.mxu0 0
    %2418 = vmatprep.subr.bf16.mxu0 0
    %2419 = vmatpush1.bf16.msra.mxu0 0
    %2420 = vmatprep.mubr.bf16.mxu0 0
    %2421 = vmatmul.mubr.bf16.gmra.mrb[0].mxu0 %v2186
    %v2422 = vpop.f32.mrb[0].mxu0
    %v2423 = vadd.f32 %v287, %v2422
    %v2424 = vpop.f32.mrb[0].mxu0
    %v2425 = vpop.f32.mrb[0].mxu0
    %v2426 = vpop.f32.mrb[0].mxu0
    %2427 = vdwg.mxu0
    %v2428 = vpack.c.bf16 %v2180, %v2180
    %v2429 = vld [vmem:[#allocation11] sm:$0xff]
    %v2430 = vld [vmem:[#allocation11 + $0x8] sm:$0xf]
    %v2431 = vld [vmem:[#allocation11 + $0xc] sm:$0xff]
    %v2432 = vld [vmem:[#allocation11 + $0x14] sm:$0xf]
    %v2433 = vld [vmem:[#allocation11 + $0x18] sm:$0xff]
    %v2434 = vld [vmem:[#allocation11 + $0x20] sm:$0xf]
    %v2435 = vld [vmem:[#allocation11 + $0x24] sm:$0xff]
    %v2436 = vld [vmem:[#allocation11 + $0x2c] sm:$0xf]
    %v2437 = vld [vmem:[#allocation11 + $0x30] sm:$0xff]
    %v2438 = vld [vmem:[#allocation11 + $0x38] sm:$0xf]
    %v2439 = vld [vmem:[#allocation11 + $0x3c] sm:$0xff]
    %v2440 = vld [vmem:[#allocation11 + $0x44] sm:$0xf]
    %v2441 = vld [vmem:[#allocation11 + $0x48] sm:$0xff]
    %v2442 = vld [vmem:[#allocation11 + $0x50] sm:$0xf]
    %v2443 = vld [vmem:[#allocation11 + $0x54] sm:$0xff]
    %v2444 = vld [vmem:[#allocation11 + $0x5c] sm:$0xf]
    %v2445 = vld [vmem:[#allocation11 + $0x60] sm:$0xff]
    %v2446 = vld [vmem:[#allocation11 + $0x68] sm:$0xf]
    %v2447 = vld [vmem:[#allocation11 + $0x6c] sm:$0xff]
    %v2448 = vld [vmem:[#allocation11 + $0x74] sm:$0xf]
    %v2449 = vld [vmem:[#allocation11 + $0x78] sm:$0xff]
    %v2450 = vld [vmem:[#allocation11 + $0x80] sm:$0xf]
    %v2451 = vld [vmem:[#allocation11 + $0x84] sm:$0xff]
    %v2452 = vld [vmem:[#allocation11 + $0x8c] sm:$0xf]
    %v2453 = vld [vmem:[#allocation11 + $0x90] sm:$0xff]
    %v2454 = vld [vmem:[#allocation11 + $0x98] sm:$0xf]
    %v2455 = vld [vmem:[#allocation11 + $0x9c] sm:$0xff]
    %v2456 = vld [vmem:[#allocation11 + $0xa4] sm:$0xf]
    %v2457 = vld [vmem:[#allocation11 + $0xa8] sm:$0xff]
    %v2458 = vld [vmem:[#allocation11 + $0xb0] sm:$0xf]
    %v2459 = vld [vmem:[#allocation11 + $0xb4] sm:$0xff]
    %v2460 = vld [vmem:[#allocation11 + $0xbc] sm:$0xf]
    %v2493 = vunpack.c.l.b16 %v2429
    %v2494 = vunpack.c.h.b16 %v2429
    %v2495 = vunpack.c.l.b16 %v2430
    %v2496 = vunpack.c.l.b16 %v2431
    %v2497 = vunpack.c.h.b16 %v2431
    %v2498 = vunpack.c.l.b16 %v2432
    %v2499 = vunpack.c.l.b16 %v2433
    %v2500 = vunpack.c.h.b16 %v2433
    %v2501 = vunpack.c.l.b16 %v2434
    %v2502 = vunpack.c.l.b16 %v2435
    %v2503 = vunpack.c.h.b16 %v2435
    %v2504 = vunpack.c.l.b16 %v2436
    %v2505 = vunpack.c.l.b16 %v2437
    %v2506 = vunpack.c.h.b16 %v2437
    %v2507 = vunpack.c.l.b16 %v2438
    %v2508 = vunpack.c.l.b16 %v2439
    %v2509 = vunpack.c.h.b16 %v2439
    %v2510 = vunpack.c.l.b16 %v2440
    %v2511 = vunpack.c.l.b16 %v2441
    %v2512 = vunpack.c.h.b16 %v2441
    %v2513 = vunpack.c.l.b16 %v2442
    %v2514 = vunpack.c.l.b16 %v2443
    %v2515 = vunpack.c.h.b16 %v2443
    %v2516 = vunpack.c.l.b16 %v2444
    %v2517 = vunpack.c.l.b16 %v2445
    %v2518 = vunpack.c.h.b16 %v2445
    %v2519 = vunpack.c.l.b16 %v2446
    %v2520 = vunpack.c.l.b16 %v2447
    %v2521 = vunpack.c.h.b16 %v2447
    %v2522 = vunpack.c.l.b16 %v2448
    %v2523 = vunpack.c.l.b16 %v2449
    %v2524 = vunpack.c.h.b16 %v2449
    %v2525 = vunpack.c.l.b16 %v2450
    %v2526 = vunpack.c.l.b16 %v2451
    %v2527 = vunpack.c.h.b16 %v2451
    %v2528 = vunpack.c.l.b16 %v2452
    %v2529 = vunpack.c.l.b16 %v2453
    %v2530 = vunpack.c.h.b16 %v2453
    %v2531 = vunpack.c.l.b16 %v2454
    %v2532 = vunpack.c.l.b16 %v2455
    %v2533 = vunpack.c.h.b16 %v2455
    %v2534 = vunpack.c.l.b16 %v2456
    %v2535 = vunpack.c.l.b16 %v2457
    %v2536 = vunpack.c.h.b16 %v2457
    %v2537 = vunpack.c.l.b16 %v2458
    %v2538 = vunpack.c.l.b16 %v2459
    %v2539 = vunpack.c.h.b16 %v2459
    %v2540 = vunpack.c.l.b16 %v2460
    %v2541 = vpack.c.b16 %v2496, %v2493
    %v2542 = vpack.c.b16 %v2497, %v2494
    %v2543 = vpack.c.b16 %v2498, %v2495
    %v2544 = vpack.c.b16 %v2502, %v2499
    %v2545 = vpack.c.b16 %v2503, %v2500
    %v2546 = vpack.c.b16 %v2504, %v2501
    %v2547 = vpack.c.b16 %v2508, %v2505
    %v2548 = vpack.c.b16 %v2509, %v2506
    %v2549 = vpack.c.b16 %v2510, %v2507
    %v2550 = vpack.c.b16 %v2514, %v2511
    %v2551 = vpack.c.b16 %v2515, %v2512
    %v2552 = vpack.c.b16 %v2516, %v2513
    %v2553 = vpack.c.b16 %v2520, %v2517
    %v2554 = vpack.c.b16 %v2521, %v2518
    %v2555 = vpack.c.b16 %v2522, %v2519
    %v2556 = vpack.c.b16 %v2526, %v2523
    %v2557 = vpack.c.b16 %v2527, %v2524
    %v2558 = vpack.c.b16 %v2528, %v2525
    %v2559 = vpack.c.b16 %v2532, %v2529
    %v2560 = vpack.c.b16 %v2533, %v2530
    %v2561 = vpack.c.b16 %v2534, %v2531
    %v2562 = vpack.c.b16 %v2538, %v2535
    %v2563 = vpack.c.b16 %v2539, %v2536
    %v2564 = vpack.c.b16 %v2540, %v2537
    %2589 = vmatprep.subr.bf16.mxu0 %v2542
    %2590 = vmatpush1.bf16.msra.mxu0 %v2541
    %2591 = vmatprep.subr.bf16.mxu0 %v2545
    %2592 = vmatpush1.bf16.msra.mxu0 %v2544
    %2593 = vmatprep.subr.bf16.mxu0 %v2548
    %2594 = vmatpush1.bf16.msra.mxu0 %v2547
    %2595 = vmatprep.subr.bf16.mxu0 %v2551
    %2596 = vmatpush1.bf16.msra.mxu0 %v2550
    %2597 = vmatprep.subr.bf16.mxu0 %v2554
    %2598 = vmatpush1.bf16.msra.mxu0 %v2553
    %2599 = vmatprep.subr.bf16.mxu0 %v2557
    %2600 = vmatpush1.bf16.msra.mxu0 %v2556
    %2601 = vmatprep.subr.bf16.mxu0 %v2560
    %2602 = vmatpush1.bf16.msra.mxu0 %v2559
    %2603 = vmatprep.subr.bf16.mxu0 %v2563
    %2604 = vmatpush1.bf16.msra.mxu0 %v2562
    %2605 = vmatprep.subr.bf16.mxu0 0
    %2606 = vmatpush1.bf16.msra.mxu0 0
    %2607 = vmatprep.subr.bf16.mxu0 0
    %2608 = vmatpush1.bf16.msra.mxu0 0
    %2609 = vmatprep.subr.bf16.mxu0 0
    %2610 = vmatpush1.bf16.msra.mxu0 0
    %2611 = vmatprep.subr.bf16.mxu0 0
    %2612 = vmatpush1.bf16.msra.mxu0 0
    %2613 = vmatprep.subr.bf16.mxu0 0
    %2614 = vmatpush1.bf16.msra.mxu0 0
    %2615 = vmatprep.subr.bf16.mxu0 0
    %2616 = vmatpush1.bf16.msra.mxu0 0
    %2617 = vmatprep.subr.bf16.mxu0 0
    %2618 = vmatpush1.bf16.msra.mxu0 0
    %2619 = vmatprep.subr.bf16.mxu0 0
    %2620 = vmatpush1.bf16.msra.mxu0 0
    %2621 = vmatprep.mubr.bf16.mxu0 0
    %2622 = vmatmul.mubr.bf16.gmra.mrb[0].mxu0 %v2428
    %v2623 = vpop.f32.mrb[0].mxu0
    %v2624 = vadd.f32 %v537, %v2623
    %v2625 = vpop.f32.mrb[0].mxu0
    %v2626 = vadd.f32 %v541, %v2625
    %v2627 = vpop.f32.mrb[0].mxu0
    %v2628 = vpop.f32.mrb[0].mxu0
    %2629 = vdwg.mxu0
    %2630 = vmatprep.subr.bf16.mxu0 0
    %2631 = vmatpush1.bf16.msra.mxu0 %v2543
    %2632 = vmatprep.subr.bf16.mxu0 0
    %2633 = vmatpush1.bf16.msra.mxu0 %v2546
    %2634 = vmatprep.subr.bf16.mxu0 0
    %2635 = vmatpush1.bf16.msra.mxu0 %v2549
    %2636 = vmatprep.subr.bf16.mxu0 0
    %2637 = vmatpush1.bf16.msra.mxu0 %v2552
    %2638 = vmatprep.subr.bf16.mxu0 0
    %2639 = vmatpush1.bf16.msra.mxu0 %v2555
    %2640 = vmatprep.subr.bf16.mxu0 0
    %2641 = vmatpush1.bf16.msra.mxu0 %v2558
    %2642 = vmatprep.subr.bf16.mxu0 0
    %2643 = vmatpush1.bf16.msra.mxu0 %v2561
    %2644 = vmatprep.subr.bf16.mxu0 0
    %2645 = vmatpush1.bf16.msra.mxu0 %v2564
    %2646 = vmatprep.subr.bf16.mxu0 0
    %2647 = vmatpush1.bf16.msra.mxu0 0
    %2648 = vmatprep.subr.bf16.mxu0 0
    %2649 = vmatpush1.bf16.msra.mxu0 0
    %2650 = vmatprep.subr.bf16.mxu0 0
    %2651 = vmatpush1.bf16.msra.mxu0 0
    %2652 = vmatprep.subr.bf16.mxu0 0
    %2653 = vmatpush1.bf16.msra.mxu0 0
    %2654 = vmatprep.subr.bf16.mxu0 0
    %2655 = vmatpush1.bf16.msra.mxu0 0
    %2656 = vmatprep.subr.bf16.mxu0 0
    %2657 = vmatpush1.bf16.msra.mxu0 0
    %2658 = vmatprep.subr.bf16.mxu0 0
    %2659 = vmatpush1.bf16.msra.mxu0 0
    %2660 = vmatprep.subr.bf16.mxu0 0
    %2661 = vmatpush1.bf16.msra.mxu0 0
    %2662 = vmatprep.mubr.bf16.mxu0 0
    %2663 = vmatmul.mubr.bf16.gmra.mrb[0].mxu0 %v2428
    %v2664 = vpop.f32.mrb[0].mxu0
    %v2665 = vadd.f32 %v545, %v2664
    %v2666 = vpop.f32.mrb[0].mxu0
    %v2667 = vpop.f32.mrb[0].mxu0
    %v2668 = vpop.f32.mrb[0].mxu0
    %2669 = vdwg.mxu0
    %v2670 = vadd.f32 %v2382, %v2624
    %v2671 = vxor.u32 %v2670, 2147483648
    %v2672 = vmul.f32 %v2671, 1.442695
    %v2673 = vpow.pop %v2672
    %v2674 = vadd.f32 %v2673, 1.0
    %v2675 = vrcp.pop %v2674
    %v2676 = vmul.f32 1.0, %v2675
    %v2677 = vadd.f32 %v2384, %v2626
    %v2678 = vxor.u32 %v2677, 2147483648
    %v2679 = vmul.f32 %v2678, 1.442695
    %v2680 = vpow.pop %v2679
    %v2681 = vadd.f32 %v2680, 1.0
    %v2682 = vrcp.pop %v2681
    %v2683 = vmul.f32 1.0, %v2682
    %v2684 = vmul.f32 %v2676, %v2665
    %v2685 = vadd.f32 %v2423, %v2684
    %v2686 = vtanh.pop %v2685
    %v2687 = vsub.f32 1.0, %v2683
    %v2688 = vmul.f32 %v2687, %v2686
    %v2689 = vmul.f32 %v2683, %v2180
    %v2690 = vadd.f32 %v2688, %v2689
    %2691 = vst [vmem:[#allocation2 + $0x4] sm:$0x1] %v2690
    %s2692 = sld [smem:[#allocation4 + $0x5]]
    %s2693 = scalar_lea.vmem [#allocation5], %s2692
    %v2694 = vld [vmem:[%s2693] sm:$0x1]
    %v2695 = vmax.f32 %v2694, 0.0
    %v2696 = vpack.c.bf16 %v2695, %v2695
    %v2697 = vld [vmem:[#allocation10] sm:$0xff]
    %v2698 = vld [vmem:[#allocation10 + $0x8] sm:$0xf]
    %v2699 = vld [vmem:[#allocation10 + $0xc] sm:$0xff]
    %v2700 = vld [vmem:[#allocation10 + $0x14] sm:$0xf]
    %v2701 = vld [vmem:[#allocation10 + $0x18] sm:$0xff]
    %v2702 = vld [vmem:[#allocation10 + $0x20] sm:$0xf]
    %v2703 = vld [vmem:[#allocation10 + $0x24] sm:$0xff]
    %v2704 = vld [vmem:[#allocation10 + $0x2c] sm:$0xf]
    %v2705 = vld [vmem:[#allocation10 + $0x30] sm:$0xff]
    %v2706 = vld [vmem:[#allocation10 + $0x38] sm:$0xf]
    %v2707 = vld [vmem:[#allocation10 + $0x3c] sm:$0xff]
    %v2708 = vld [vmem:[#allocation10 + $0x44] sm:$0xf]
    %v2709 = vld [vmem:[#allocation10 + $0x48] sm:$0xff]
    %v2710 = vld [vmem:[#allocation10 + $0x50] sm:$0xf]
    %v2711 = vld [vmem:[#allocation10 + $0x54] sm:$0xff]
    %v2712 = vld [vmem:[#allocation10 + $0x5c] sm:$0xf]
    %v2713 = vld [vmem:[#allocation10 + $0x60] sm:$0xff]
    %v2714 = vld [vmem:[#allocation10 + $0x68] sm:$0xf]
    %v2715 = vld [vmem:[#allocation10 + $0x6c] sm:$0xff]
    %v2716 = vld [vmem:[#allocation10 + $0x74] sm:$0xf]
    %v2717 = vld [vmem:[#allocation10 + $0x78] sm:$0xff]
    %v2718 = vld [vmem:[#allocation10 + $0x80] sm:$0xf]
    %v2719 = vld [vmem:[#allocation10 + $0x84] sm:$0xff]
    %v2720 = vld [vmem:[#allocation10 + $0x8c] sm:$0xf]
    %v2721 = vld [vmem:[#allocation10 + $0x90] sm:$0xff]
    %v2722 = vld [vmem:[#allocation10 + $0x98] sm:$0xf]
    %v2723 = vld [vmem:[#allocation10 + $0x9c] sm:$0xff]
    %v2724 = vld [vmem:[#allocation10 + $0xa4] sm:$0xf]
    %v2725 = vld [vmem:[#allocation10 + $0xa8] sm:$0xff]
    %v2726 = vld [vmem:[#allocation10 + $0xb0] sm:$0xf]
    %v2727 = vld [vmem:[#allocation10 + $0xb4] sm:$0xff]
    %v2728 = vld [vmem:[#allocation10 + $0xbc] sm:$0xf]
    %v2761 = vunpack.c.l.b16 %v2697
    %v2762 = vunpack.c.h.b16 %v2697
    %v2763 = vunpack.c.l.b16 %v2698
    %v2764 = vunpack.c.l.b16 %v2699
    %v2765 = vunpack.c.h.b16 %v2699
    %v2766 = vunpack.c.l.b16 %v2700
    %v2767 = vunpack.c.l.b16 %v2701
    %v2768 = vunpack.c.h.b16 %v2701
    %v2769 = vunpack.c.l.b16 %v2702
    %v2770 = vunpack.c.l.b16 %v2703
    %v2771 = vunpack.c.h.b16 %v2703
    %v2772 = vunpack.c.l.b16 %v2704
    %v2773 = vunpack.c.l.b16 %v2705
    %v2774 = vunpack.c.h.b16 %v2705
    %v2775 = vunpack.c.l.b16 %v2706
    %v2776 = vunpack.c.l.b16 %v2707
    %v2777 = vunpack.c.h.b16 %v2707
    %v2778 = vunpack.c.l.b16 %v2708
    %v2779 = vunpack.c.l.b16 %v2709
    %v2780 = vunpack.c.h.b16 %v2709
    %v2781 = vunpack.c.l.b16 %v2710
    %v2782 = vunpack.c.l.b16 %v2711
    %v2783 = vunpack.c.h.b16 %v2711
    %v2784 = vunpack.c.l.b16 %v2712
    %v2785 = vunpack.c.l.b16 %v2713
    %v2786 = vunpack.c.h.b16 %v2713
    %v2787 = vunpack.c.l.b16 %v2714
    %v2788 = vunpack.c.l.b16 %v2715
    %v2789 = vunpack.c.h.b16 %v2715
    %v2790 = vunpack.c.l.b16 %v2716
    %v2791 = vunpack.c.l.b16 %v2717
    %v2792 = vunpack.c.h.b16 %v2717
    %v2793 = vunpack.c.l.b16 %v2718
    %v2794 = vunpack.c.l.b16 %v2719
    %v2795 = vunpack.c.h.b16 %v2719
    %v2796 = vunpack.c.l.b16 %v2720
    %v2797 = vunpack.c.l.b16 %v2721
    %v2798 = vunpack.c.h.b16 %v2721
    %v2799 = vunpack.c.l.b16 %v2722
    %v2800 = vunpack.c.l.b16 %v2723
    %v2801 = vunpack.c.h.b16 %v2723
    %v2802 = vunpack.c.l.b16 %v2724
    %v2803 = vunpack.c.l.b16 %v2725
    %v2804 = vunpack.c.h.b16 %v2725
    %v2805 = vunpack.c.l.b16 %v2726
    %v2806 = vunpack.c.l.b16 %v2727
    %v2807 = vunpack.c.h.b16 %v2727
    %v2808 = vunpack.c.l.b16 %v2728
    %v2809 = vpack.c.b16 %v2764, %v2761
    %v2810 = vpack.c.b16 %v2765, %v2762
    %v2811 = vpack.c.b16 %v2766, %v2763
    %v2812 = vpack.c.b16 %v2770, %v2767
    %v2813 = vpack.c.b16 %v2771, %v2768
    %v2814 = vpack.c.b16 %v2772, %v2769
    %v2815 = vpack.c.b16 %v2776, %v2773
    %v2816 = vpack.c.b16 %v2777, %v2774
    %v2817 = vpack.c.b16 %v2778, %v2775
    %v2818 = vpack.c.b16 %v2782, %v2779
    %v2819 = vpack.c.b16 %v2783, %v2780
    %v2820 = vpack.c.b16 %v2784, %v2781
    %v2821 = vpack.c.b16 %v2788, %v2785
    %v2822 = vpack.c.b16 %v2789, %v2786
    %v2823 = vpack.c.b16 %v2790, %v2787
    %v2824 = vpack.c.b16 %v2794, %v2791
    %v2825 = vpack.c.b16 %v2795, %v2792
    %v2826 = vpack.c.b16 %v2796, %v2793
    %v2827 = vpack.c.b16 %v2800, %v2797
    %v2828 = vpack.c.b16 %v2801, %v2798
    %v2829 = vpack.c.b16 %v2802, %v2799
    %v2830 = vpack.c.b16 %v2806, %v2803
    %v2831 = vpack.c.b16 %v2807, %v2804
    %v2832 = vpack.c.b16 %v2808, %v2805
    %2857 = vmatprep.subr.bf16.mxu0 %v2810
    %2858 = vmatpush1.bf16.msra.mxu0 %v2809
    %2859 = vmatprep.subr.bf16.mxu0 %v2813
    %2860 = vmatpush1.bf16.msra.mxu0 %v2812
    %2861 = vmatprep.subr.bf16.mxu0 %v2816
    %2862 = vmatpush1.bf16.msra.mxu0 %v2815
    %2863 = vmatprep.subr.bf16.mxu0 %v2819
    %2864 = vmatpush1.bf16.msra.mxu0 %v2818
    %2865 = vmatprep.subr.bf16.mxu0 %v2822
    %2866 = vmatpush1.bf16.msra.mxu0 %v2821
    %2867 = vmatprep.subr.bf16.mxu0 %v2825
    %2868 = vmatpush1.bf16.msra.mxu0 %v2824
    %2869 = vmatprep.subr.bf16.mxu0 %v2828
    %2870 = vmatpush1.bf16.msra.mxu0 %v2827
    %2871 = vmatprep.subr.bf16.mxu0 %v2831
    %2872 = vmatpush1.bf16.msra.mxu0 %v2830
    %2873 = vmatprep.subr.bf16.mxu0 0
    %2874 = vmatpush1.bf16.msra.mxu0 0
    %2875 = vmatprep.subr.bf16.mxu0 0
    %2876 = vmatpush1.bf16.msra.mxu0 0
    %2877 = vmatprep.subr.bf16.mxu0 0
    %2878 = vmatpush1.bf16.msra.mxu0 0
    %2879 = vmatprep.subr.bf16.mxu0 0
    %2880 = vmatpush1.bf16.msra.mxu0 0
    %2881 = vmatprep.subr.bf16.mxu0 0
    %2882 = vmatpush1.bf16.msra.mxu0 0
    %2883 = vmatprep.subr.bf16.mxu0 0
    %2884 = vmatpush1.bf16.msra.mxu0 0
    %2885 = vmatprep.subr.bf16.mxu0 0
    %2886 = vmatpush1.bf16.msra.mxu0 0
    %2887 = vmatprep.subr.bf16.mxu0 0
    %2888 = vmatpush1.bf16.msra.mxu0 0
    %2889 = vmatprep.mubr.bf16.mxu0 0
    %2890 = vmatmul.mubr.bf16.gmra.mrb[0].mxu0 %v2696
    %v2891 = vpop.f32.mrb[0].mxu0
    %v2892 = vadd.f32 %v279, %v2891
    %v2893 = vpop.f32.mrb[0].mxu0
    %v2894 = vadd.f32 %v283, %v2893
    %v2895 = vpop.f32.mrb[0].mxu0
    %v2896 = vpop.f32.mrb[0].mxu0
    %2897 = vdwg.mxu0
    %2898 = vmatprep.subr.bf16.mxu0 0
    %2899 = vmatpush1.bf16.msra.mxu0 %v2811
    %2900 = vmatprep.subr.bf16.mxu0 0
    %2901 = vmatpush1.bf16.msra.mxu0 %v2814
    %2902 = vmatprep.subr.bf16.mxu0 0
    %2903 = vmatpush1.bf16.msra.mxu0 %v2817
    %2904 = vmatprep.subr.bf16.mxu0 0
    %2905 = vmatpush1.bf16.msra.mxu0 %v2820
    %2906 = vmatprep.subr.bf16.mxu0 0
    %2907 = vmatpush1.bf16.msra.mxu0 %v2823
    %2908 = vmatprep.subr.bf16.mxu0 0
    %2909 = vmatpush1.bf16.msra.mxu0 %v2826
    %2910 = vmatprep.subr.bf16.mxu0 0
    %2911 = vmatpush1.bf16.msra.mxu0 %v2829
    %2912 = vmatprep.subr.bf16.mxu0 0
    %2913 = vmatpush1.bf16.msra.mxu0 %v2832
    %2914 = vmatprep.subr.bf16.mxu0 0
    %2915 = vmatpush1.bf16.msra.mxu0 0
    %2916 = vmatprep.subr.bf16.mxu0 0
    %2917 = vmatpush1.bf16.msra.mxu0 0
    %2918 = vmatprep.subr.bf16.mxu0 0
    %2919 = vmatpush1.bf16.msra.mxu0 0
    %2920 = vmatprep.subr.bf16.mxu0 0
    %2921 = vmatpush1.bf16.msra.mxu0 0
    %2922 = vmatprep.subr.bf16.mxu0 0
    %2923 = vmatpush1.bf16.msra.mxu0 0
    %2924 = vmatprep.subr.bf16.mxu0 0
    %2925 = vmatpush1.bf16.msra.mxu0 0
    %2926 = vmatprep.subr.bf16.mxu0 0
    %2927 = vmatpush1.bf16.msra.mxu0 0
    %2928 = vmatprep.subr.bf16.mxu0 0
    %2929 = vmatpush1.bf16.msra.mxu0 0
    %2930 = vmatprep.mubr.bf16.mxu0 0
    %2931 = vmatmul.mubr.bf16.gmra.mrb[0].mxu0 %v2696
    %v2932 = vpop.f32.mrb[0].mxu0
    %v2933 = vadd.f32 %v287, %v2932
    %v2934 = vpop.f32.mrb[0].mxu0
    %v2935 = vpop.f32.mrb[0].mxu0
    %v2936 = vpop.f32.mrb[0].mxu0
    %2937 = vdwg.mxu0
    %v2938 = vpack.c.bf16 %v2690, %v2690
    %v2939 = vld [vmem:[#allocation11] sm:$0xff]
    %v2940 = vld [vmem:[#allocation11 + $0x8] sm:$0xf]
    %v2941 = vld [vmem:[#allocation11 + $0xc] sm:$0xff]
    %v2942 = vld [vmem:[#allocation11 + $0x14] sm:$0xf]
    %v2943 = vld [vmem:[#allocation11 + $0x18] sm:$0xff]
    %v2944 = vld [vmem:[#allocation11 + $0x20] sm:$0xf]
    %v2945 = vld [vmem:[#allocation11 + $0x24] sm:$0xff]
    %v2946 = vld [vmem:[#allocation11 + $0x2c] sm:$0xf]
    %v2947 = vld [vmem:[#allocation11 + $0x30] sm:$0xff]
    %v2948 = vld [vmem:[#allocation11 + $0x38] sm:$0xf]
    %v2949 = vld [vmem:[#allocation11 + $0x3c] sm:$0xff]
    %v2950 = vld [vmem:[#allocation11 + $0x44] sm:$0xf]
    %v2951 = vld [vmem:[#allocation11 + $0x48] sm:$0xff]
    %v2952 = vld [vmem:[#allocation11 + $0x50] sm:$0xf]
    %v2953 = vld [vmem:[#allocation11 + $0x54] sm:$0xff]
    %v2954 = vld [vmem:[#allocation11 + $0x5c] sm:$0xf]
    %v2955 = vld [vmem:[#allocation11 + $0x60] sm:$0xff]
    %v2956 = vld [vmem:[#allocation11 + $0x68] sm:$0xf]
    %v2957 = vld [vmem:[#allocation11 + $0x6c] sm:$0xff]
    %v2958 = vld [vmem:[#allocation11 + $0x74] sm:$0xf]
    %v2959 = vld [vmem:[#allocation11 + $0x78] sm:$0xff]
    %v2960 = vld [vmem:[#allocation11 + $0x80] sm:$0xf]
    %v2961 = vld [vmem:[#allocation11 + $0x84] sm:$0xff]
    %v2962 = vld [vmem:[#allocation11 + $0x8c] sm:$0xf]
    %v2963 = vld [vmem:[#allocation11 + $0x90] sm:$0xff]
    %v2964 = vld [vmem:[#allocation11 + $0x98] sm:$0xf]
    %v2965 = vld [vmem:[#allocation11 + $0x9c] sm:$0xff]
    %v2966 = vld [vmem:[#allocation11 + $0xa4] sm:$0xf]
    %v2967 = vld [vmem:[#allocation11 + $0xa8] sm:$0xff]
    %v2968 = vld [vmem:[#allocation11 + $0xb0] sm:$0xf]
    %v2969 = vld [vmem:[#allocation11 + $0xb4] sm:$0xff]
    %v2970 = vld [vmem:[#allocation11 + $0xbc] sm:$0xf]
    %v3003 = vunpack.c.l.b16 %v2939
    %v3004 = vunpack.c.h.b16 %v2939
    %v3005 = vunpack.c.l.b16 %v2940
    %v3006 = vunpack.c.l.b16 %v2941
    %v3007 = vunpack.c.h.b16 %v2941
    %v3008 = vunpack.c.l.b16 %v2942
    %v3009 = vunpack.c.l.b16 %v2943
    %v3010 = vunpack.c.h.b16 %v2943
    %v3011 = vunpack.c.l.b16 %v2944
    %v3012 = vunpack.c.l.b16 %v2945
    %v3013 = vunpack.c.h.b16 %v2945
    %v3014 = vunpack.c.l.b16 %v2946
    %v3015 = vunpack.c.l.b16 %v2947
    %v3016 = vunpack.c.h.b16 %v2947
    %v3017 = vunpack.c.l.b16 %v2948
    %v3018 = vunpack.c.l.b16 %v2949
    %v3019 = vunpack.c.h.b16 %v2949
    %v3020 = vunpack.c.l.b16 %v2950
    %v3021 = vunpack.c.l.b16 %v2951
    %v3022 = vunpack.c.h.b16 %v2951
    %v3023 = vunpack.c.l.b16 %v2952
    %v3024 = vunpack.c.l.b16 %v2953
    %v3025 = vunpack.c.h.b16 %v2953
    %v3026 = vunpack.c.l.b16 %v2954
    %v3027 = vunpack.c.l.b16 %v2955
    %v3028 = vunpack.c.h.b16 %v2955
    %v3029 = vunpack.c.l.b16 %v2956
    %v3030 = vunpack.c.l.b16 %v2957
    %v3031 = vunpack.c.h.b16 %v2957
    %v3032 = vunpack.c.l.b16 %v2958
    %v3033 = vunpack.c.l.b16 %v2959
    %v3034 = vunpack.c.h.b16 %v2959
    %v3035 = vunpack.c.l.b16 %v2960
    %v3036 = vunpack.c.l.b16 %v2961
    %v3037 = vunpack.c.h.b16 %v2961
    %v3038 = vunpack.c.l.b16 %v2962
    %v3039 = vunpack.c.l.b16 %v2963
    %v3040 = vunpack.c.h.b16 %v2963
    %v3041 = vunpack.c.l.b16 %v2964
    %v3042 = vunpack.c.l.b16 %v2965
    %v3043 = vunpack.c.h.b16 %v2965
    %v3044 = vunpack.c.l.b16 %v2966
    %v3045 = vunpack.c.l.b16 %v2967
    %v3046 = vunpack.c.h.b16 %v2967
    %v3047 = vunpack.c.l.b16 %v2968
    %v3048 = vunpack.c.l.b16 %v2969
    %v3049 = vunpack.c.h.b16 %v2969
    %v3050 = vunpack.c.l.b16 %v2970
    %v3051 = vpack.c.b16 %v3006, %v3003
    %v3052 = vpack.c.b16 %v3007, %v3004
    %v3053 = vpack.c.b16 %v3008, %v3005
    %v3054 = vpack.c.b16 %v3012, %v3009
    %v3055 = vpack.c.b16 %v3013, %v3010
    %v3056 = vpack.c.b16 %v3014, %v3011
    %v3057 = vpack.c.b16 %v3018, %v3015
    %v3058 = vpack.c.b16 %v3019, %v3016
    %v3059 = vpack.c.b16 %v3020, %v3017
    %v3060 = vpack.c.b16 %v3024, %v3021
    %v3061 = vpack.c.b16 %v3025, %v3022
    %v3062 = vpack.c.b16 %v3026, %v3023
    %v3063 = vpack.c.b16 %v3030, %v3027
    %v3064 = vpack.c.b16 %v3031, %v3028
    %v3065 = vpack.c.b16 %v3032, %v3029
    %v3066 = vpack.c.b16 %v3036, %v3033
    %v3067 = vpack.c.b16 %v3037, %v3034
    %v3068 = vpack.c.b16 %v3038, %v3035
    %v3069 = vpack.c.b16 %v3042, %v3039
    %v3070 = vpack.c.b16 %v3043, %v3040
    %v3071 = vpack.c.b16 %v3044, %v3041
    %v3072 = vpack.c.b16 %v3048, %v3045
    %v3073 = vpack.c.b16 %v3049, %v3046
    %v3074 = vpack.c.b16 %v3050, %v3047
    %3099 = vmatprep.subr.bf16.mxu0 %v3052
    %3100 = vmatpush1.bf16.msra.mxu0 %v3051
    %3101 = vmatprep.subr.bf16.mxu0 %v3055
    %3102 = vmatpush1.bf16.msra.mxu0 %v3054
    %3103 = vmatprep.subr.bf16.mxu0 %v3058
    %3104 = vmatpush1.bf16.msra.mxu0 %v3057
    %3105 = vmatprep.subr.bf16.mxu0 %v3061
    %3106 = vmatpush1.bf16.msra.mxu0 %v3060
    %3107 = vmatprep.subr.bf16.mxu0 %v3064
    %3108 = vmatpush1.bf16.msra.mxu0 %v3063
    %3109 = vmatprep.subr.bf16.mxu0 %v3067
    %3110 = vmatpush1.bf16.msra.mxu0 %v3066
    %3111 = vmatprep.subr.bf16.mxu0 %v3070
    %3112 = vmatpush1.bf16.msra.mxu0 %v3069
    %3113 = vmatprep.subr.bf16.mxu0 %v3073
    %3114 = vmatpush1.bf16.msra.mxu0 %v3072
    %3115 = vmatprep.subr.bf16.mxu0 0
    %3116 = vmatpush1.bf16.msra.mxu0 0
    %3117 = vmatprep.subr.bf16.mxu0 0
    %3118 = vmatpush1.bf16.msra.mxu0 0
    %3119 = vmatprep.subr.bf16.mxu0 0
    %3120 = vmatpush1.bf16.msra.mxu0 0
    %3121 = vmatprep.subr.bf16.mxu0 0
    %3122 = vmatpush1.bf16.msra.mxu0 0
    %3123 = vmatprep.subr.bf16.mxu0 0
    %3124 = vmatpush1.bf16.msra.mxu0 0
    %3125 = vmatprep.subr.bf16.mxu0 0
    %3126 = vmatpush1.bf16.msra.mxu0 0
    %3127 = vmatprep.subr.bf16.mxu0 0
    %3128 = vmatpush1.bf16.msra.mxu0 0
    %3129 = vmatprep.subr.bf16.mxu0 0
    %3130 = vmatpush1.bf16.msra.mxu0 0
    %3131 = vmatprep.mubr.bf16.mxu0 0
    %3132 = vmatmul.mubr.bf16.gmra.mrb[0].mxu0 %v2938
    %v3133 = vpop.f32.mrb[0].mxu0
    %v3134 = vadd.f32 %v537, %v3133
    %v3135 = vpop.f32.mrb[0].mxu0
    %v3136 = vadd.f32 %v541, %v3135
    %v3137 = vpop.f32.mrb[0].mxu0
    %v3138 = vpop.f32.mrb[0].mxu0
    %3139 = vdwg.mxu0
    %3140 = vmatprep.subr.bf16.mxu0 0
    %3141 = vmatpush1.bf16.msra.mxu0 %v3053
    %3142 = vmatprep.subr.bf16.mxu0 0
    %3143 = vmatpush1.bf16.msra.mxu0 %v3056
    %3144 = vmatprep.subr.bf16.mxu0 0
    %3145 = vmatpush1.bf16.msra.mxu0 %v3059
    %3146 = vmatprep.subr.bf16.mxu0 0
    %3147 = vmatpush1.bf16.msra.mxu0 %v3062
    %3148 = vmatprep.subr.bf16.mxu0 0
    %3149 = vmatpush1.bf16.msra.mxu0 %v3065
    %3150 = vmatprep.subr.bf16.mxu0 0
    %3151 = vmatpush1.bf16.msra.mxu0 %v3068
    %3152 = vmatprep.subr.bf16.mxu0 0
    %3153 = vmatpush1.bf16.msra.mxu0 %v3071
    %3154 = vmatprep.subr.bf16.mxu0 0
    %3155 = vmatpush1.bf16.msra.mxu0 %v3074
    %3156 = vmatprep.subr.bf16.mxu0 0
    %3157 = vmatpush1.bf16.msra.mxu0 0
    %3158 = vmatprep.subr.bf16.mxu0 0
    %3159 = vmatpush1.bf16.msra.mxu0 0
    %3160 = vmatprep.subr.bf16.mxu0 0
    %3161 = vmatpush1.bf16.msra.mxu0 0
    %3162 = vmatprep.subr.bf16.mxu0 0
    %3163 = vmatpush1.bf16.msra.mxu0 0
    %3164 = vmatprep.subr.bf16.mxu0 0
    %3165 = vmatpush1.bf16.msra.mxu0 0
    %3166 = vmatprep.subr.bf16.mxu0 0
    %3167 = vmatpush1.bf16.msra.mxu0 0
    %3168 = vmatprep.subr.bf16.mxu0 0
    %3169 = vmatpush1.bf16.msra.mxu0 0
    %3170 = vmatprep.subr.bf16.mxu0 0
    %3171 = vmatpush1.bf16.msra.mxu0 0
    %3172 = vmatprep.mubr.bf16.mxu0 0
    %3173 = vmatmul.mubr.bf16.gmra.mrb[0].mxu0 %v2938
    %v3174 = vpop.f32.mrb[0].mxu0
    %v3175 = vadd.f32 %v545, %v3174
    %v3176 = vpop.f32.mrb[0].mxu0
    %v3177 = vpop.f32.mrb[0].mxu0
    %v3178 = vpop.f32.mrb[0].mxu0
    %3179 = vdwg.mxu0
    %v3180 = vadd.f32 %v2892, %v3134
    %v3181 = vxor.u32 %v3180, 2147483648
    %v3182 = vmul.f32 %v3181, 1.442695
    %v3183 = vpow.pop %v3182
    %v3184 = vadd.f32 %v3183, 1.0
    %v3185 = vrcp.pop %v3184
    %v3186 = vmul.f32 1.0, %v3185
    %v3187 = vadd.f32 %v2894, %v3136
    %v3188 = vxor.u32 %v3187, 2147483648
    %v3189 = vmul.f32 %v3188, 1.442695
    %v3190 = vpow.pop %v3189
    %v3191 = vadd.f32 %v3190, 1.0
    %v3192 = vrcp.pop %v3191
    %v3193 = vmul.f32 1.0, %v3192
    %v3194 = vmul.f32 %v3186, %v3175
    %v3195 = vadd.f32 %v2933, %v3194
    %v3196 = vtanh.pop %v3195
    %v3197 = vsub.f32 1.0, %v3193
    %v3198 = vmul.f32 %v3197, %v3196
    %v3199 = vmul.f32 %v3193, %v2690
    %v3200 = vadd.f32 %v3198, %v3199
    %3201 = vst [vmem:[#allocation2 + $0x5] sm:$0x1] %v3200
    %s3202 = sld [smem:[#allocation4 + $0x6]]
    %s3203 = scalar_lea.vmem [#allocation5], %s3202
    %v3204 = vld [vmem:[%s3203] sm:$0x1]
    %v3205 = vmax.f32 %v3204, 0.0
    %v3206 = vpack.c.bf16 %v3205, %v3205
    %v3207 = vld [vmem:[#allocation10] sm:$0xff]
    %v3208 = vld [vmem:[#allocation10 + $0x8] sm:$0xf]
    %v3209 = vld [vmem:[#allocation10 + $0xc] sm:$0xff]
    %v3210 = vld [vmem:[#allocation10 + $0x14] sm:$0xf]
    %v3211 = vld [vmem:[#allocation10 + $0x18] sm:$0xff]
    %v3212 = vld [vmem:[#allocation10 + $0x20] sm:$0xf]
    %v3213 = vld [vmem:[#allocation10 + $0x24] sm:$0xff]
    %v3214 = vld [vmem:[#allocation10 + $0x2c] sm:$0xf]
    %v3215 = vld [vmem:[#allocation10 + $0x30] sm:$0xff]
    %v3216 = vld [vmem:[#allocation10 + $0x38] sm:$0xf]
    %v3217 = vld [vmem:[#allocation10 + $0x3c] sm:$0xff]
    %v3218 = vld [vmem:[#allocation10 + $0x44] sm:$0xf]
    %v3219 = vld [vmem:[#allocation10 + $0x48] sm:$0xff]
    %v3220 = vld [vmem:[#allocation10 + $0x50] sm:$0xf]
    %v3221 = vld [vmem:[#allocation10 + $0x54] sm:$0xff]
    %v3222 = vld [vmem:[#allocation10 + $0x5c] sm:$0xf]
    %v3223 = vld [vmem:[#allocation10 + $0x60] sm:$0xff]
    %v3224 = vld [vmem:[#allocation10 + $0x68] sm:$0xf]
    %v3225 = vld [vmem:[#allocation10 + $0x6c] sm:$0xff]
    %v3226 = vld [vmem:[#allocation10 + $0x74] sm:$0xf]
    %v3227 = vld [vmem:[#allocation10 + $0x78] sm:$0xff]
    %v3228 = vld [vmem:[#allocation10 + $0x80] sm:$0xf]
    %v3229 = vld [vmem:[#allocation10 + $0x84] sm:$0xff]
    %v3230 = vld [vmem:[#allocation10 + $0x8c] sm:$0xf]
    %v3231 = vld [vmem:[#allocation10 + $0x90] sm:$0xff]
    %v3232 = vld [vmem:[#allocation10 + $0x98] sm:$0xf]
    %v3233 = vld [vmem:[#allocation10 + $0x9c] sm:$0xff]
    %v3234 = vld [vmem:[#allocation10 + $0xa4] sm:$0xf]
    %v3235 = vld [vmem:[#allocation10 + $0xa8] sm:$0xff]
    %v3236 = vld [vmem:[#allocation10 + $0xb0] sm:$0xf]
    %v3237 = vld [vmem:[#allocation10 + $0xb4] sm:$0xff]
    %v3238 = vld [vmem:[#allocation10 + $0xbc] sm:$0xf]
    %v3271 = vunpack.c.l.b16 %v3207
    %v3272 = vunpack.c.h.b16 %v3207
    %v3273 = vunpack.c.l.b16 %v3208
    %v3274 = vunpack.c.l.b16 %v3209
    %v3275 = vunpack.c.h.b16 %v3209
    %v3276 = vunpack.c.l.b16 %v3210
    %v3277 = vunpack.c.l.b16 %v3211
    %v3278 = vunpack.c.h.b16 %v3211
    %v3279 = vunpack.c.l.b16 %v3212
    %v3280 = vunpack.c.l.b16 %v3213
    %v3281 = vunpack.c.h.b16 %v3213
    %v3282 = vunpack.c.l.b16 %v3214
    %v3283 = vunpack.c.l.b16 %v3215
    %v3284 = vunpack.c.h.b16 %v3215
    %v3285 = vunpack.c.l.b16 %v3216
    %v3286 = vunpack.c.l.b16 %v3217
    %v3287 = vunpack.c.h.b16 %v3217
    %v3288 = vunpack.c.l.b16 %v3218
    %v3289 = vunpack.c.l.b16 %v3219
    %v3290 = vunpack.c.h.b16 %v3219
    %v3291 = vunpack.c.l.b16 %v3220
    %v3292 = vunpack.c.l.b16 %v3221
    %v3293 = vunpack.c.h.b16 %v3221
    %v3294 = vunpack.c.l.b16 %v3222
    %v3295 = vunpack.c.l.b16 %v3223
    %v3296 = vunpack.c.h.b16 %v3223
    %v3297 = vunpack.c.l.b16 %v3224
    %v3298 = vunpack.c.l.b16 %v3225
    %v3299 = vunpack.c.h.b16 %v3225
    %v3300 = vunpack.c.l.b16 %v3226
    %v3301 = vunpack.c.l.b16 %v3227
    %v3302 = vunpack.c.h.b16 %v3227
    %v3303 = vunpack.c.l.b16 %v3228
    %v3304 = vunpack.c.l.b16 %v3229
    %v3305 = vunpack.c.h.b16 %v3229
    %v3306 = vunpack.c.l.b16 %v3230
    %v3307 = vunpack.c.l.b16 %v3231
    %v3308 = vunpack.c.h.b16 %v3231
    %v3309 = vunpack.c.l.b16 %v3232
    %v3310 = vunpack.c.l.b16 %v3233
    %v3311 = vunpack.c.h.b16 %v3233
    %v3312 = vunpack.c.l.b16 %v3234
    %v3313 = vunpack.c.l.b16 %v3235
    %v3314 = vunpack.c.h.b16 %v3235
    %v3315 = vunpack.c.l.b16 %v3236
    %v3316 = vunpack.c.l.b16 %v3237
    %v3317 = vunpack.c.h.b16 %v3237
    %v3318 = vunpack.c.l.b16 %v3238
    %v3319 = vpack.c.b16 %v3274, %v3271
    %v3320 = vpack.c.b16 %v3275, %v3272
    %v3321 = vpack.c.b16 %v3276, %v3273
    %v3322 = vpack.c.b16 %v3280, %v3277
    %v3323 = vpack.c.b16 %v3281, %v3278
    %v3324 = vpack.c.b16 %v3282, %v3279
    %v3325 = vpack.c.b16 %v3286, %v3283
    %v3326 = vpack.c.b16 %v3287, %v3284
    %v3327 = vpack.c.b16 %v3288, %v3285
    %v3328 = vpack.c.b16 %v3292, %v3289
    %v3329 = vpack.c.b16 %v3293, %v3290
    %v3330 = vpack.c.b16 %v3294, %v3291
    %v3331 = vpack.c.b16 %v3298, %v3295
    %v3332 = vpack.c.b16 %v3299, %v3296
    %v3333 = vpack.c.b16 %v3300, %v3297
    %v3334 = vpack.c.b16 %v3304, %v3301
    %v3335 = vpack.c.b16 %v3305, %v3302
    %v3336 = vpack.c.b16 %v3306, %v3303
    %v3337 = vpack.c.b16 %v3310, %v3307
    %v3338 = vpack.c.b16 %v3311, %v3308
    %v3339 = vpack.c.b16 %v3312, %v3309
    %v3340 = vpack.c.b16 %v3316, %v3313
    %v3341 = vpack.c.b16 %v3317, %v3314
    %v3342 = vpack.c.b16 %v3318, %v3315
    %3367 = vmatprep.subr.bf16.mxu0 %v3320
    %3368 = vmatpush1.bf16.msra.mxu0 %v3319
    %3369 = vmatprep.subr.bf16.mxu0 %v3323
    %3370 = vmatpush1.bf16.msra.mxu0 %v3322
    %3371 = vmatprep.subr.bf16.mxu0 %v3326
    %3372 = vmatpush1.bf16.msra.mxu0 %v3325
    %3373 = vmatprep.subr.bf16.mxu0 %v3329
    %3374 = vmatpush1.bf16.msra.mxu0 %v3328
    %3375 = vmatprep.subr.bf16.mxu0 %v3332
    %3376 = vmatpush1.bf16.msra.mxu0 %v3331
    %3377 = vmatprep.subr.bf16.mxu0 %v3335
    %3378 = vmatpush1.bf16.msra.mxu0 %v3334
    %3379 = vmatprep.subr.bf16.mxu0 %v3338
    %3380 = vmatpush1.bf16.msra.mxu0 %v3337
    %3381 = vmatprep.subr.bf16.mxu0 %v3341
    %3382 = vmatpush1.bf16.msra.mxu0 %v3340
    %3383 = vmatprep.subr.bf16.mxu0 0
    %3384 = vmatpush1.bf16.msra.mxu0 0
    %3385 = vmatprep.subr.bf16.mxu0 0
    %3386 = vmatpush1.bf16.msra.mxu0 0
    %3387 = vmatprep.subr.bf16.mxu0 0
    %3388 = vmatpush1.bf16.msra.mxu0 0
    %3389 = vmatprep.subr.bf16.mxu0 0
    %3390 = vmatpush1.bf16.msra.mxu0 0
    %3391 = vmatprep.subr.bf16.mxu0 0
    %3392 = vmatpush1.bf16.msra.mxu0 0
    %3393 = vmatprep.subr.bf16.mxu0 0
    %3394 = vmatpush1.bf16.msra.mxu0 0
    %3395 = vmatprep.subr.bf16.mxu0 0
    %3396 = vmatpush1.bf16.msra.mxu0 0
    %3397 = vmatprep.subr.bf16.mxu0 0
    %3398 = vmatpush1.bf16.msra.mxu0 0
    %3399 = vmatprep.mubr.bf16.mxu0 0
    %3400 = vmatmul.mubr.bf16.gmra.mrb[0].mxu0 %v3206
    %v3401 = vpop.f32.mrb[0].mxu0
    %v3402 = vadd.f32 %v279, %v3401
    %v3403 = vpop.f32.mrb[0].mxu0
    %v3404 = vadd.f32 %v283, %v3403
    %v3405 = vpop.f32.mrb[0].mxu0
    %v3406 = vpop.f32.mrb[0].mxu0
    %3407 = vdwg.mxu0
    %3408 = vmatprep.subr.bf16.mxu0 0
    %3409 = vmatpush1.bf16.msra.mxu0 %v3321
    %3410 = vmatprep.subr.bf16.mxu0 0
    %3411 = vmatpush1.bf16.msra.mxu0 %v3324
    %3412 = vmatprep.subr.bf16.mxu0 0
    %3413 = vmatpush1.bf16.msra.mxu0 %v3327
    %3414 = vmatprep.subr.bf16.mxu0 0
    %3415 = vmatpush1.bf16.msra.mxu0 %v3330
    %3416 = vmatprep.subr.bf16.mxu0 0
    %3417 = vmatpush1.bf16.msra.mxu0 %v3333
    %3418 = vmatprep.subr.bf16.mxu0 0
    %3419 = vmatpush1.bf16.msra.mxu0 %v3336
    %3420 = vmatprep.subr.bf16.mxu0 0
    %3421 = vmatpush1.bf16.msra.mxu0 %v3339
    %3422 = vmatprep.subr.bf16.mxu0 0
    %3423 = vmatpush1.bf16.msra.mxu0 %v3342
    %3424 = vmatprep.subr.bf16.mxu0 0
    %3425 = vmatpush1.bf16.msra.mxu0 0
    %3426 = vmatprep.subr.bf16.mxu0 0
    %3427 = vmatpush1.bf16.msra.mxu0 0
    %3428 = vmatprep.subr.bf16.mxu0 0
    %3429 = vmatpush1.bf16.msra.mxu0 0
    %3430 = vmatprep.subr.bf16.mxu0 0
    %3431 = vmatpush1.bf16.msra.mxu0 0
    %3432 = vmatprep.subr.bf16.mxu0 0
    %3433 = vmatpush1.bf16.msra.mxu0 0
    %3434 = vmatprep.subr.bf16.mxu0 0
    %3435 = vmatpush1.bf16.msra.mxu0 0
    %3436 = vmatprep.subr.bf16.mxu0 0
    %3437 = vmatpush1.bf16.msra.mxu0 0
    %3438 = vmatprep.subr.bf16.mxu0 0
    %3439 = vmatpush1.bf16.msra.mxu0 0
    %3440 = vmatprep.mubr.bf16.mxu0 0
    %3441 = vmatmul.mubr.bf16.gmra.mrb[0].mxu0 %v3206
    %v3442 = vpop.f32.mrb[0].mxu0
    %v3443 = vadd.f32 %v287, %v3442
    %v3444 = vpop.f32.mrb[0].mxu0
    %v3445 = vpop.f32.mrb[0].mxu0
    %v3446 = vpop.f32.mrb[0].mxu0
    %3447 = vdwg.mxu0
    %v3448 = vpack.c.bf16 %v3200, %v3200
    %v3449 = vld [vmem:[#allocation11] sm:$0xff]
    %v3450 = vld [vmem:[#allocation11 + $0x8] sm:$0xf]
    %v3451 = vld [vmem:[#allocation11 + $0xc] sm:$0xff]
    %v3452 = vld [vmem:[#allocation11 + $0x14] sm:$0xf]
    %v3453 = vld [vmem:[#allocation11 + $0x18] sm:$0xff]
    %v3454 = vld [vmem:[#allocation11 + $0x20] sm:$0xf]
    %v3455 = vld [vmem:[#allocation11 + $0x24] sm:$0xff]
    %v3456 = vld [vmem:[#allocation11 + $0x2c] sm:$0xf]
    %v3457 = vld [vmem:[#allocation11 + $0x30] sm:$0xff]
    %v3458 = vld [vmem:[#allocation11 + $0x38] sm:$0xf]
    %v3459 = vld [vmem:[#allocation11 + $0x3c] sm:$0xff]
    %v3460 = vld [vmem:[#allocation11 + $0x44] sm:$0xf]
    %v3461 = vld [vmem:[#allocation11 + $0x48] sm:$0xff]
    %v3462 = vld [vmem:[#allocation11 + $0x50] sm:$0xf]
    %v3463 = vld [vmem:[#allocation11 + $0x54] sm:$0xff]
    %v3464 = vld [vmem:[#allocation11 + $0x5c] sm:$0xf]
    %v3465 = vld [vmem:[#allocation11 + $0x60] sm:$0xff]
    %v3466 = vld [vmem:[#allocation11 + $0x68] sm:$0xf]
    %v3467 = vld [vmem:[#allocation11 + $0x6c] sm:$0xff]
    %v3468 = vld [vmem:[#allocation11 + $0x74] sm:$0xf]
    %v3469 = vld [vmem:[#allocation11 + $0x78] sm:$0xff]
    %v3470 = vld [vmem:[#allocation11 + $0x80] sm:$0xf]
    %v3471 = vld [vmem:[#allocation11 + $0x84] sm:$0xff]
    %v3472 = vld [vmem:[#allocation11 + $0x8c] sm:$0xf]
    %v3473 = vld [vmem:[#allocation11 + $0x90] sm:$0xff]
    %v3474 = vld [vmem:[#allocation11 + $0x98] sm:$0xf]
    %v3475 = vld [vmem:[#allocation11 + $0x9c] sm:$0xff]
    %v3476 = vld [vmem:[#allocation11 + $0xa4] sm:$0xf]
    %v3477 = vld [vmem:[#allocation11 + $0xa8] sm:$0xff]
    %v3478 = vld [vmem:[#allocation11 + $0xb0] sm:$0xf]
    %v3479 = vld [vmem:[#allocation11 + $0xb4] sm:$0xff]
    %v3480 = vld [vmem:[#allocation11 + $0xbc] sm:$0xf]
    %v3513 = vunpack.c.l.b16 %v3449
    %v3514 = vunpack.c.h.b16 %v3449
    %v3515 = vunpack.c.l.b16 %v3450
    %v3516 = vunpack.c.l.b16 %v3451
    %v3517 = vunpack.c.h.b16 %v3451
    %v3518 = vunpack.c.l.b16 %v3452
    %v3519 = vunpack.c.l.b16 %v3453
    %v3520 = vunpack.c.h.b16 %v3453
    %v3521 = vunpack.c.l.b16 %v3454
    %v3522 = vunpack.c.l.b16 %v3455
    %v3523 = vunpack.c.h.b16 %v3455
    %v3524 = vunpack.c.l.b16 %v3456
    %v3525 = vunpack.c.l.b16 %v3457
    %v3526 = vunpack.c.h.b16 %v3457
    %v3527 = vunpack.c.l.b16 %v3458
    %v3528 = vunpack.c.l.b16 %v3459
    %v3529 = vunpack.c.h.b16 %v3459
    %v3530 = vunpack.c.l.b16 %v3460
    %v3531 = vunpack.c.l.b16 %v3461
    %v3532 = vunpack.c.h.b16 %v3461
    %v3533 = vunpack.c.l.b16 %v3462
    %v3534 = vunpack.c.l.b16 %v3463
    %v3535 = vunpack.c.h.b16 %v3463
    %v3536 = vunpack.c.l.b16 %v3464
    %v3537 = vunpack.c.l.b16 %v3465
    %v3538 = vunpack.c.h.b16 %v3465
    %v3539 = vunpack.c.l.b16 %v3466
    %v3540 = vunpack.c.l.b16 %v3467
    %v3541 = vunpack.c.h.b16 %v3467
    %v3542 = vunpack.c.l.b16 %v3468
    %v3543 = vunpack.c.l.b16 %v3469
    %v3544 = vunpack.c.h.b16 %v3469
    %v3545 = vunpack.c.l.b16 %v3470
    %v3546 = vunpack.c.l.b16 %v3471
    %v3547 = vunpack.c.h.b16 %v3471
    %v3548 = vunpack.c.l.b16 %v3472
    %v3549 = vunpack.c.l.b16 %v3473
    %v3550 = vunpack.c.h.b16 %v3473
    %v3551 = vunpack.c.l.b16 %v3474
    %v3552 = vunpack.c.l.b16 %v3475
    %v3553 = vunpack.c.h.b16 %v3475
    %v3554 = vunpack.c.l.b16 %v3476
    %v3555 = vunpack.c.l.b16 %v3477
    %v3556 = vunpack.c.h.b16 %v3477
    %v3557 = vunpack.c.l.b16 %v3478
    %v3558 = vunpack.c.l.b16 %v3479
    %v3559 = vunpack.c.h.b16 %v3479
    %v3560 = vunpack.c.l.b16 %v3480
    %v3561 = vpack.c.b16 %v3516, %v3513
    %v3562 = vpack.c.b16 %v3517, %v3514
    %v3563 = vpack.c.b16 %v3518, %v3515
    %v3564 = vpack.c.b16 %v3522, %v3519
    %v3565 = vpack.c.b16 %v3523, %v3520
    %v3566 = vpack.c.b16 %v3524, %v3521
    %v3567 = vpack.c.b16 %v3528, %v3525
    %v3568 = vpack.c.b16 %v3529, %v3526
    %v3569 = vpack.c.b16 %v3530, %v3527
    %v3570 = vpack.c.b16 %v3534, %v3531
    %v3571 = vpack.c.b16 %v3535, %v3532
    %v3572 = vpack.c.b16 %v3536, %v3533
    %v3573 = vpack.c.b16 %v3540, %v3537
    %v3574 = vpack.c.b16 %v3541, %v3538
    %v3575 = vpack.c.b16 %v3542, %v3539
    %v3576 = vpack.c.b16 %v3546, %v3543
    %v3577 = vpack.c.b16 %v3547, %v3544
    %v3578 = vpack.c.b16 %v3548, %v3545
    %v3579 = vpack.c.b16 %v3552, %v3549
    %v3580 = vpack.c.b16 %v3553, %v3550
    %v3581 = vpack.c.b16 %v3554, %v3551
    %v3582 = vpack.c.b16 %v3558, %v3555
    %v3583 = vpack.c.b16 %v3559, %v3556
    %v3584 = vpack.c.b16 %v3560, %v3557
    %3609 = vmatprep.subr.bf16.mxu0 %v3562
    %3610 = vmatpush1.bf16.msra.mxu0 %v3561
    %3611 = vmatprep.subr.bf16.mxu0 %v3565
    %3612 = vmatpush1.bf16.msra.mxu0 %v3564
    %3613 = vmatprep.subr.bf16.mxu0 %v3568
    %3614 = vmatpush1.bf16.msra.mxu0 %v3567
    %3615 = vmatprep.subr.bf16.mxu0 %v3571
    %3616 = vmatpush1.bf16.msra.mxu0 %v3570
    %3617 = vmatprep.subr.bf16.mxu0 %v3574
    %3618 = vmatpush1.bf16.msra.mxu0 %v3573
    %3619 = vmatprep.subr.bf16.mxu0 %v3577
    %3620 = vmatpush1.bf16.msra.mxu0 %v3576
    %3621 = vmatprep.subr.bf16.mxu0 %v3580
    %3622 = vmatpush1.bf16.msra.mxu0 %v3579
    %3623 = vmatprep.subr.bf16.mxu0 %v3583
    %3624 = vmatpush1.bf16.msra.mxu0 %v3582
    %3625 = vmatprep.subr.bf16.mxu0 0
    %3626 = vmatpush1.bf16.msra.mxu0 0
    %3627 = vmatprep.subr.bf16.mxu0 0
    %3628 = vmatpush1.bf16.msra.mxu0 0
    %3629 = vmatprep.subr.bf16.mxu0 0
    %3630 = vmatpush1.bf16.msra.mxu0 0
    %3631 = vmatprep.subr.bf16.mxu0 0
    %3632 = vmatpush1.bf16.msra.mxu0 0
    %3633 = vmatprep.subr.bf16.mxu0 0
    %3634 = vmatpush1.bf16.msra.mxu0 0
    %3635 = vmatprep.subr.bf16.mxu0 0
    %3636 = vmatpush1.bf16.msra.mxu0 0
    %3637 = vmatprep.subr.bf16.mxu0 0
    %3638 = vmatpush1.bf16.msra.mxu0 0
    %3639 = vmatprep.subr.bf16.mxu0 0
    %3640 = vmatpush1.bf16.msra.mxu0 0
    %3641 = vmatprep.mubr.bf16.mxu0 0
    %3642 = vmatmul.mubr.bf16.gmra.mrb[0].mxu0 %v3448
    %v3643 = vpop.f32.mrb[0].mxu0
    %v3644 = vadd.f32 %v537, %v3643
    %v3645 = vpop.f32.mrb[0].mxu0
    %v3646 = vadd.f32 %v541, %v3645
    %v3647 = vpop.f32.mrb[0].mxu0
    %v3648 = vpop.f32.mrb[0].mxu0
    %3649 = vdwg.mxu0
    %3650 = vmatprep.subr.bf16.mxu0 0
    %3651 = vmatpush1.bf16.msra.mxu0 %v3563
    %3652 = vmatprep.subr.bf16.mxu0 0
    %3653 = vmatpush1.bf16.msra.mxu0 %v3566
    %3654 = vmatprep.subr.bf16.mxu0 0
    %3655 = vmatpush1.bf16.msra.mxu0 %v3569
    %3656 = vmatprep.subr.bf16.mxu0 0
    %3657 = vmatpush1.bf16.msra.mxu0 %v3572
    %3658 = vmatprep.subr.bf16.mxu0 0
    %3659 = vmatpush1.bf16.msra.mxu0 %v3575
    %3660 = vmatprep.subr.bf16.mxu0 0
    %3661 = vmatpush1.bf16.msra.mxu0 %v3578
    %3662 = vmatprep.subr.bf16.mxu0 0
    %3663 = vmatpush1.bf16.msra.mxu0 %v3581
    %3664 = vmatprep.subr.bf16.mxu0 0
    %3665 = vmatpush1.bf16.msra.mxu0 %v3584
    %3666 = vmatprep.subr.bf16.mxu0 0
    %3667 = vmatpush1.bf16.msra.mxu0 0
    %3668 = vmatprep.subr.bf16.mxu0 0
    %3669 = vmatpush1.bf16.msra.mxu0 0
    %3670 = vmatprep.subr.bf16.mxu0 0
    %3671 = vmatpush1.bf16.msra.mxu0 0
    %3672 = vmatprep.subr.bf16.mxu0 0
    %3673 = vmatpush1.bf16.msra.mxu0 0
    %3674 = vmatprep.subr.bf16.mxu0 0
    %3675 = vmatpush1.bf16.msra.mxu0 0
    %3676 = vmatprep.subr.bf16.mxu0 0
    %3677 = vmatpush1.bf16.msra.mxu0 0
    %3678 = vmatprep.subr.bf16.mxu0 0
    %3679 = vmatpush1.bf16.msra.mxu0 0
    %3680 = vmatprep.subr.bf16.mxu0 0
    %3681 = vmatpush1.bf16.msra.mxu0 0
    %3682 = vmatprep.mubr.bf16.mxu0 0
    %3683 = vmatmul.mubr.bf16.gmra.mrb[0].mxu0 %v3448
    %v3684 = vpop.f32.mrb[0].mxu0
    %v3685 = vadd.f32 %v545, %v3684
    %v3686 = vpop.f32.mrb[0].mxu0
    %v3687 = vpop.f32.mrb[0].mxu0
    %v3688 = vpop.f32.mrb[0].mxu0
    %3689 = vdwg.mxu0
    %v3690 = vadd.f32 %v3402, %v3644
    %v3691 = vxor.u32 %v3690, 2147483648
    %v3692 = vmul.f32 %v3691, 1.442695
    %v3693 = vpow.pop %v3692
    %v3694 = vadd.f32 %v3693, 1.0
    %v3695 = vrcp.pop %v3694
    %v3696 = vmul.f32 1.0, %v3695
    %v3697 = vadd.f32 %v3404, %v3646
    %v3698 = vxor.u32 %v3697, 2147483648
    %v3699 = vmul.f32 %v3698, 1.442695
    %v3700 = vpow.pop %v3699
    %v3701 = vadd.f32 %v3700, 1.0
    %v3702 = vrcp.pop %v3701
    %v3703 = vmul.f32 1.0, %v3702
    %v3704 = vmul.f32 %v3696, %v3685
    %v3705 = vadd.f32 %v3443, %v3704
    %v3706 = vtanh.pop %v3705
    %v3707 = vsub.f32 1.0, %v3703
    %v3708 = vmul.f32 %v3707, %v3706
    %v3709 = vmul.f32 %v3703, %v3200
    %v3710 = vadd.f32 %v3708, %v3709
    %3711 = vst [vmem:[#allocation2 + $0x6] sm:$0x1] %v3710
    %s3712 = sld [smem:[#allocation4 + $0x7]]
    %s3713 = scalar_lea.vmem [#allocation5], %s3712
    %v3714 = vld [vmem:[%s3713] sm:$0x1]
    %v3715 = vmax.f32 %v3714, 0.0
    %v3716 = vpack.c.bf16 %v3715, %v3715
    %v3717 = vld [vmem:[#allocation10] sm:$0xff]
    %v3718 = vld [vmem:[#allocation10 + $0x8] sm:$0xf]
    %v3719 = vld [vmem:[#allocation10 + $0xc] sm:$0xff]
    %v3720 = vld [vmem:[#allocation10 + $0x14] sm:$0xf]
    %v3721 = vld [vmem:[#allocation10 + $0x18] sm:$0xff]
    %v3722 = vld [vmem:[#allocation10 + $0x20] sm:$0xf]
    %v3723 = vld [vmem:[#allocation10 + $0x24] sm:$0xff]
    %v3724 = vld [vmem:[#allocation10 + $0x2c] sm:$0xf]
    %v3725 = vld [vmem:[#allocation10 + $0x30] sm:$0xff]
    %v3726 = vld [vmem:[#allocation10 + $0x38] sm:$0xf]
    %v3727 = vld [vmem:[#allocation10 + $0x3c] sm:$0xff]
    %v3728 = vld [vmem:[#allocation10 + $0x44] sm:$0xf]
    %v3729 = vld [vmem:[#allocation10 + $0x48] sm:$0xff]
    %v3730 = vld [vmem:[#allocation10 + $0x50] sm:$0xf]
    %v3731 = vld [vmem:[#allocation10 + $0x54] sm:$0xff]
    %v3732 = vld [vmem:[#allocation10 + $0x5c] sm:$0xf]
    %v3733 = vld [vmem:[#allocation10 + $0x60] sm:$0xff]
    %v3734 = vld [vmem:[#allocation10 + $0x68] sm:$0xf]
    %v3735 = vld [vmem:[#allocation10 + $0x6c] sm:$0xff]
    %v3736 = vld [vmem:[#allocation10 + $0x74] sm:$0xf]
    %v3737 = vld [vmem:[#allocation10 + $0x78] sm:$0xff]
    %v3738 = vld [vmem:[#allocation10 + $0x80] sm:$0xf]
    %v3739 = vld [vmem:[#allocation10 + $0x84] sm:$0xff]
    %v3740 = vld [vmem:[#allocation10 + $0x8c] sm:$0xf]
    %v3741 = vld [vmem:[#allocation10 + $0x90] sm:$0xff]
    %v3742 = vld [vmem:[#allocation10 + $0x98] sm:$0xf]
    %v3743 = vld [vmem:[#allocation10 + $0x9c] sm:$0xff]
    %v3744 = vld [vmem:[#allocation10 + $0xa4] sm:$0xf]
    %v3745 = vld [vmem:[#allocation10 + $0xa8] sm:$0xff]
    %v3746 = vld [vmem:[#allocation10 + $0xb0] sm:$0xf]
    %v3747 = vld [vmem:[#allocation10 + $0xb4] sm:$0xff]
    %v3748 = vld [vmem:[#allocation10 + $0xbc] sm:$0xf]
    %v3781 = vunpack.c.l.b16 %v3717
    %v3782 = vunpack.c.h.b16 %v3717
    %v3783 = vunpack.c.l.b16 %v3718
    %v3784 = vunpack.c.l.b16 %v3719
    %v3785 = vunpack.c.h.b16 %v3719
    %v3786 = vunpack.c.l.b16 %v3720
    %v3787 = vunpack.c.l.b16 %v3721
    %v3788 = vunpack.c.h.b16 %v3721
    %v3789 = vunpack.c.l.b16 %v3722
    %v3790 = vunpack.c.l.b16 %v3723
    %v3791 = vunpack.c.h.b16 %v3723
    %v3792 = vunpack.c.l.b16 %v3724
    %v3793 = vunpack.c.l.b16 %v3725
    %v3794 = vunpack.c.h.b16 %v3725
    %v3795 = vunpack.c.l.b16 %v3726
    %v3796 = vunpack.c.l.b16 %v3727
    %v3797 = vunpack.c.h.b16 %v3727
    %v3798 = vunpack.c.l.b16 %v3728
    %v3799 = vunpack.c.l.b16 %v3729
    %v3800 = vunpack.c.h.b16 %v3729
    %v3801 = vunpack.c.l.b16 %v3730
    %v3802 = vunpack.c.l.b16 %v3731
    %v3803 = vunpack.c.h.b16 %v3731
    %v3804 = vunpack.c.l.b16 %v3732
    %v3805 = vunpack.c.l.b16 %v3733
    %v3806 = vunpack.c.h.b16 %v3733
    %v3807 = vunpack.c.l.b16 %v3734
    %v3808 = vunpack.c.l.b16 %v3735
    %v3809 = vunpack.c.h.b16 %v3735
    %v3810 = vunpack.c.l.b16 %v3736
    %v3811 = vunpack.c.l.b16 %v3737
    %v3812 = vunpack.c.h.b16 %v3737
    %v3813 = vunpack.c.l.b16 %v3738
    %v3814 = vunpack.c.l.b16 %v3739
    %v3815 = vunpack.c.h.b16 %v3739
    %v3816 = vunpack.c.l.b16 %v3740
    %v3817 = vunpack.c.l.b16 %v3741
    %v3818 = vunpack.c.h.b16 %v3741
    %v3819 = vunpack.c.l.b16 %v3742
    %v3820 = vunpack.c.l.b16 %v3743
    %v3821 = vunpack.c.h.b16 %v3743
    %v3822 = vunpack.c.l.b16 %v3744
    %v3823 = vunpack.c.l.b16 %v3745
    %v3824 = vunpack.c.h.b16 %v3745
    %v3825 = vunpack.c.l.b16 %v3746
    %v3826 = vunpack.c.l.b16 %v3747
    %v3827 = vunpack.c.h.b16 %v3747
    %v3828 = vunpack.c.l.b16 %v3748
    %v3829 = vpack.c.b16 %v3784, %v3781
    %v3830 = vpack.c.b16 %v3785, %v3782
    %v3831 = vpack.c.b16 %v3786, %v3783
    %v3832 = vpack.c.b16 %v3790, %v3787
    %v3833 = vpack.c.b16 %v3791, %v3788
    %v3834 = vpack.c.b16 %v3792, %v3789
    %v3835 = vpack.c.b16 %v3796, %v3793
    %v3836 = vpack.c.b16 %v3797, %v3794
    %v3837 = vpack.c.b16 %v3798, %v3795
    %v3838 = vpack.c.b16 %v3802, %v3799
    %v3839 = vpack.c.b16 %v3803, %v3800
    %v3840 = vpack.c.b16 %v3804, %v3801
    %v3841 = vpack.c.b16 %v3808, %v3805
    %v3842 = vpack.c.b16 %v3809, %v3806
    %v3843 = vpack.c.b16 %v3810, %v3807
    %v3844 = vpack.c.b16 %v3814, %v3811
    %v3845 = vpack.c.b16 %v3815, %v3812
    %v3846 = vpack.c.b16 %v3816, %v3813
    %v3847 = vpack.c.b16 %v3820, %v3817
    %v3848 = vpack.c.b16 %v3821, %v3818
    %v3849 = vpack.c.b16 %v3822, %v3819
    %v3850 = vpack.c.b16 %v3826, %v3823
    %v3851 = vpack.c.b16 %v3827, %v3824
    %v3852 = vpack.c.b16 %v3828, %v3825
    %3877 = vmatprep.subr.bf16.mxu0 %v3830
    %3878 = vmatpush1.bf16.msra.mxu0 %v3829
    %3879 = vmatprep.subr.bf16.mxu0 %v3833
    %3880 = vmatpush1.bf16.msra.mxu0 %v3832
    %3881 = vmatprep.subr.bf16.mxu0 %v3836
    %3882 = vmatpush1.bf16.msra.mxu0 %v3835
    %3883 = vmatprep.subr.bf16.mxu0 %v3839
    %3884 = vmatpush1.bf16.msra.mxu0 %v3838
    %3885 = vmatprep.subr.bf16.mxu0 %v3842
    %3886 = vmatpush1.bf16.msra.mxu0 %v3841
    %3887 = vmatprep.subr.bf16.mxu0 %v3845
    %3888 = vmatpush1.bf16.msra.mxu0 %v3844
    %3889 = vmatprep.subr.bf16.mxu0 %v3848
    %3890 = vmatpush1.bf16.msra.mxu0 %v3847
    %3891 = vmatprep.subr.bf16.mxu0 %v3851
    %3892 = vmatpush1.bf16.msra.mxu0 %v3850
    %3893 = vmatprep.subr.bf16.mxu0 0
    %3894 = vmatpush1.bf16.msra.mxu0 0
    %3895 = vmatprep.subr.bf16.mxu0 0
    %3896 = vmatpush1.bf16.msra.mxu0 0
    %3897 = vmatprep.subr.bf16.mxu0 0
    %3898 = vmatpush1.bf16.msra.mxu0 0
    %3899 = vmatprep.subr.bf16.mxu0 0
    %3900 = vmatpush1.bf16.msra.mxu0 0
    %3901 = vmatprep.subr.bf16.mxu0 0
    %3902 = vmatpush1.bf16.msra.mxu0 0
    %3903 = vmatprep.subr.bf16.mxu0 0
    %3904 = vmatpush1.bf16.msra.mxu0 0
    %3905 = vmatprep.subr.bf16.mxu0 0
    %3906 = vmatpush1.bf16.msra.mxu0 0
    %3907 = vmatprep.subr.bf16.mxu0 0
    %3908 = vmatpush1.bf16.msra.mxu0 0
    %3909 = vmatprep.mubr.bf16.mxu0 0
    %3910 = vmatmul.mubr.bf16.gmra.mrb[0].mxu0 %v3716
    %v3911 = vpop.f32.mrb[0].mxu0
    %v3912 = vadd.f32 %v279, %v3911
    %v3913 = vpop.f32.mrb[0].mxu0
    %v3914 = vadd.f32 %v283, %v3913
    %v3915 = vpop.f32.mrb[0].mxu0
    %v3916 = vpop.f32.mrb[0].mxu0
    %3917 = vdwg.mxu0
    %3918 = vmatprep.subr.bf16.mxu0 0
    %3919 = vmatpush1.bf16.msra.mxu0 %v3831
    %3920 = vmatprep.subr.bf16.mxu0 0
    %3921 = vmatpush1.bf16.msra.mxu0 %v3834
    %3922 = vmatprep.subr.bf16.mxu0 0
    %3923 = vmatpush1.bf16.msra.mxu0 %v3837
    %3924 = vmatprep.subr.bf16.mxu0 0
    %3925 = vmatpush1.bf16.msra.mxu0 %v3840
    %3926 = vmatprep.subr.bf16.mxu0 0
    %3927 = vmatpush1.bf16.msra.mxu0 %v3843
    %3928 = vmatprep.subr.bf16.mxu0 0
    %3929 = vmatpush1.bf16.msra.mxu0 %v3846
    %3930 = vmatprep.subr.bf16.mxu0 0
    %3931 = vmatpush1.bf16.msra.mxu0 %v3849
    %3932 = vmatprep.subr.bf16.mxu0 0
    %3933 = vmatpush1.bf16.msra.mxu0 %v3852
    %3934 = vmatprep.subr.bf16.mxu0 0
    %3935 = vmatpush1.bf16.msra.mxu0 0
    %3936 = vmatprep.subr.bf16.mxu0 0
    %3937 = vmatpush1.bf16.msra.mxu0 0
    %3938 = vmatprep.subr.bf16.mxu0 0
    %3939 = vmatpush1.bf16.msra.mxu0 0
    %3940 = vmatprep.subr.bf16.mxu0 0
    %3941 = vmatpush1.bf16.msra.mxu0 0
    %3942 = vmatprep.subr.bf16.mxu0 0
    %3943 = vmatpush1.bf16.msra.mxu0 0
    %3944 = vmatprep.subr.bf16.mxu0 0
    %3945 = vmatpush1.bf16.msra.mxu0 0
    %3946 = vmatprep.subr.bf16.mxu0 0
    %3947 = vmatpush1.bf16.msra.mxu0 0
    %3948 = vmatprep.subr.bf16.mxu0 0
    %3949 = vmatpush1.bf16.msra.mxu0 0
    %3950 = vmatprep.mubr.bf16.mxu0 0
    %3951 = vmatmul.mubr.bf16.gmra.mrb[0].mxu0 %v3716
    %v3952 = vpop.f32.mrb[0].mxu0
    %v3953 = vadd.f32 %v287, %v3952
    %v3954 = vpop.f32.mrb[0].mxu0
    %v3955 = vpop.f32.mrb[0].mxu0
    %v3956 = vpop.f32.mrb[0].mxu0
    %3957 = vdwg.mxu0
    %v3958 = vpack.c.bf16 %v3710, %v3710
    %v3959 = vld [vmem:[#allocation11] sm:$0xff]
    %v3960 = vld [vmem:[#allocation11 + $0x8] sm:$0xf]
    %v3961 = vld [vmem:[#allocation11 + $0xc] sm:$0xff]
    %v3962 = vld [vmem:[#allocation11 + $0x14] sm:$0xf]
    %v3963 = vld [vmem:[#allocation11 + $0x18] sm:$0xff]
    %v3964 = vld [vmem:[#allocation11 + $0x20] sm:$0xf]
    %v3965 = vld [vmem:[#allocation11 + $0x24] sm:$0xff]
    %v3966 = vld [vmem:[#allocation11 + $0x2c] sm:$0xf]
    %v3967 = vld [vmem:[#allocation11 + $0x30] sm:$0xff]
    %v3968 = vld [vmem:[#allocation11 + $0x38] sm:$0xf]
    %v3969 = vld [vmem:[#allocation11 + $0x3c] sm:$0xff]
    %v3970 = vld [vmem:[#allocation11 + $0x44] sm:$0xf]
    %v3971 = vld [vmem:[#allocation11 + $0x48] sm:$0xff]
    %v3972 = vld [vmem:[#allocation11 + $0x50] sm:$0xf]
    %v3973 = vld [vmem:[#allocation11 + $0x54] sm:$0xff]
    %v3974 = vld [vmem:[#allocation11 + $0x5c] sm:$0xf]
    %v3975 = vld [vmem:[#allocation11 + $0x60] sm:$0xff]
    %v3976 = vld [vmem:[#allocation11 + $0x68] sm:$0xf]
    %v3977 = vld [vmem:[#allocation11 + $0x6c] sm:$0xff]
    %v3978 = vld [vmem:[#allocation11 + $0x74] sm:$0xf]
    %v3979 = vld [vmem:[#allocation11 + $0x78] sm:$0xff]
    %v3980 = vld [vmem:[#allocation11 + $0x80] sm:$0xf]
    %v3981 = vld [vmem:[#allocation11 + $0x84] sm:$0xff]
    %v3982 = vld [vmem:[#allocation11 + $0x8c] sm:$0xf]
    %v3983 = vld [vmem:[#allocation11 + $0x90] sm:$0xff]
    %v3984 = vld [vmem:[#allocation11 + $0x98] sm:$0xf]
    %v3985 = vld [vmem:[#allocation11 + $0x9c] sm:$0xff]
    %v3986 = vld [vmem:[#allocation11 + $0xa4] sm:$0xf]
    %v3987 = vld [vmem:[#allocation11 + $0xa8] sm:$0xff]
    %v3988 = vld [vmem:[#allocation11 + $0xb0] sm:$0xf]
    %v3989 = vld [vmem:[#allocation11 + $0xb4] sm:$0xff]
    %v3990 = vld [vmem:[#allocation11 + $0xbc] sm:$0xf]
    %v4023 = vunpack.c.l.b16 %v3959
    %v4024 = vunpack.c.h.b16 %v3959
    %v4025 = vunpack.c.l.b16 %v3960
    %v4026 = vunpack.c.l.b16 %v3961
    %v4027 = vunpack.c.h.b16 %v3961
    %v4028 = vunpack.c.l.b16 %v3962
    %v4029 = vunpack.c.l.b16 %v3963
    %v4030 = vunpack.c.h.b16 %v3963
    %v4031 = vunpack.c.l.b16 %v3964
    %v4032 = vunpack.c.l.b16 %v3965
    %v4033 = vunpack.c.h.b16 %v3965
    %v4034 = vunpack.c.l.b16 %v3966
    %v4035 = vunpack.c.l.b16 %v3967
    %v4036 = vunpack.c.h.b16 %v3967
    %v4037 = vunpack.c.l.b16 %v3968
    %v4038 = vunpack.c.l.b16 %v3969
    %v4039 = vunpack.c.h.b16 %v3969
    %v4040 = vunpack.c.l.b16 %v3970
    %v4041 = vunpack.c.l.b16 %v3971
    %v4042 = vunpack.c.h.b16 %v3971
    %v4043 = vunpack.c.l.b16 %v3972
    %v4044 = vunpack.c.l.b16 %v3973
    %v4045 = vunpack.c.h.b16 %v3973
    %v4046 = vunpack.c.l.b16 %v3974
    %v4047 = vunpack.c.l.b16 %v3975
    %v4048 = vunpack.c.h.b16 %v3975
    %v4049 = vunpack.c.l.b16 %v3976
    %v4050 = vunpack.c.l.b16 %v3977
    %v4051 = vunpack.c.h.b16 %v3977
    %v4052 = vunpack.c.l.b16 %v3978
    %v4053 = vunpack.c.l.b16 %v3979
    %v4054 = vunpack.c.h.b16 %v3979
    %v4055 = vunpack.c.l.b16 %v3980
    %v4056 = vunpack.c.l.b16 %v3981
    %v4057 = vunpack.c.h.b16 %v3981
    %v4058 = vunpack.c.l.b16 %v3982
    %v4059 = vunpack.c.l.b16 %v3983
    %v4060 = vunpack.c.h.b16 %v3983
    %v4061 = vunpack.c.l.b16 %v3984
    %v4062 = vunpack.c.l.b16 %v3985
    %v4063 = vunpack.c.h.b16 %v3985
    %v4064 = vunpack.c.l.b16 %v3986
    %v4065 = vunpack.c.l.b16 %v3987
    %v4066 = vunpack.c.h.b16 %v3987
    %v4067 = vunpack.c.l.b16 %v3988
    %v4068 = vunpack.c.l.b16 %v3989
    %v4069 = vunpack.c.h.b16 %v3989
    %v4070 = vunpack.c.l.b16 %v3990
    %v4071 = vpack.c.b16 %v4026, %v4023
    %v4072 = vpack.c.b16 %v4027, %v4024
    %v4073 = vpack.c.b16 %v4028, %v4025
    %v4074 = vpack.c.b16 %v4032, %v4029
    %v4075 = vpack.c.b16 %v4033, %v4030
    %v4076 = vpack.c.b16 %v4034, %v4031
    %v4077 = vpack.c.b16 %v4038, %v4035
    %v4078 = vpack.c.b16 %v4039, %v4036
    %v4079 = vpack.c.b16 %v4040, %v4037
    %v4080 = vpack.c.b16 %v4044, %v4041
    %v4081 = vpack.c.b16 %v4045, %v4042
    %v4082 = vpack.c.b16 %v4046, %v4043
    %v4083 = vpack.c.b16 %v4050, %v4047
    %v4084 = vpack.c.b16 %v4051, %v4048
    %v4085 = vpack.c.b16 %v4052, %v4049
    %v4086 = vpack.c.b16 %v4056, %v4053
    %v4087 = vpack.c.b16 %v4057, %v4054
    %v4088 = vpack.c.b16 %v4058, %v4055
    %v4089 = vpack.c.b16 %v4062, %v4059
    %v4090 = vpack.c.b16 %v4063, %v4060
    %v4091 = vpack.c.b16 %v4064, %v4061
    %v4092 = vpack.c.b16 %v4068, %v4065
    %v4093 = vpack.c.b16 %v4069, %v4066
    %v4094 = vpack.c.b16 %v4070, %v4067
    %4119 = vmatprep.subr.bf16.mxu0 %v4072
    %4120 = vmatpush1.bf16.msra.mxu0 %v4071
    %4121 = vmatprep.subr.bf16.mxu0 %v4075
    %4122 = vmatpush1.bf16.msra.mxu0 %v4074
    %4123 = vmatprep.subr.bf16.mxu0 %v4078
    %4124 = vmatpush1.bf16.msra.mxu0 %v4077
    %4125 = vmatprep.subr.bf16.mxu0 %v4081
    %4126 = vmatpush1.bf16.msra.mxu0 %v4080
    %4127 = vmatprep.subr.bf16.mxu0 %v4084
    %4128 = vmatpush1.bf16.msra.mxu0 %v4083
    %4129 = vmatprep.subr.bf16.mxu0 %v4087
    %4130 = vmatpush1.bf16.msra.mxu0 %v4086
    %4131 = vmatprep.subr.bf16.mxu0 %v4090
    %4132 = vmatpush1.bf16.msra.mxu0 %v4089
    %4133 = vmatprep.subr.bf16.mxu0 %v4093
    %4134 = vmatpush1.bf16.msra.mxu0 %v4092
    %4135 = vmatprep.subr.bf16.mxu0 0
    %4136 = vmatpush1.bf16.msra.mxu0 0
    %4137 = vmatprep.subr.bf16.mxu0 0
    %4138 = vmatpush1.bf16.msra.mxu0 0
    %4139 = vmatprep.subr.bf16.mxu0 0
    %4140 = vmatpush1.bf16.msra.mxu0 0
    %4141 = vmatprep.subr.bf16.mxu0 0
    %4142 = vmatpush1.bf16.msra.mxu0 0
    %4143 = vmatprep.subr.bf16.mxu0 0
    %4144 = vmatpush1.bf16.msra.mxu0 0
    %4145 = vmatprep.subr.bf16.mxu0 0
    %4146 = vmatpush1.bf16.msra.mxu0 0
    %4147 = vmatprep.subr.bf16.mxu0 0
    %4148 = vmatpush1.bf16.msra.mxu0 0
    %4149 = vmatprep.subr.bf16.mxu0 0
    %4150 = vmatpush1.bf16.msra.mxu0 0
    %4151 = vmatprep.mubr.bf16.mxu0 0
    %4152 = vmatmul.mubr.bf16.gmra.mrb[0].mxu0 %v3958
    %v4153 = vpop.f32.mrb[0].mxu0
    %v4154 = vadd.f32 %v537, %v4153
    %v4155 = vpop.f32.mrb[0].mxu0
    %v4156 = vadd.f32 %v541, %v4155
    %v4157 = vpop.f32.mrb[0].mxu0
    %v4158 = vpop.f32.mrb[0].mxu0
    %4159 = vdwg.mxu0
    %4160 = vmatprep.subr.bf16.mxu0 0
    %4161 = vmatpush1.bf16.msra.mxu0 %v4073
    %4162 = vmatprep.subr.bf16.mxu0 0
    %4163 = vmatpush1.bf16.msra.mxu0 %v4076
    %4164 = vmatprep.subr.bf16.mxu0 0
    %4165 = vmatpush1.bf16.msra.mxu0 %v4079
    %4166 = vmatprep.subr.bf16.mxu0 0
    %4167 = vmatpush1.bf16.msra.mxu0 %v4082
    %4168 = vmatprep.subr.bf16.mxu0 0
    %4169 = vmatpush1.bf16.msra.mxu0 %v4085
    %4170 = vmatprep.subr.bf16.mxu0 0
    %4171 = vmatpush1.bf16.msra.mxu0 %v4088
    %4172 = vmatprep.subr.bf16.mxu0 0
    %4173 = vmatpush1.bf16.msra.mxu0 %v4091
    %4174 = vmatprep.subr.bf16.mxu0 0
    %4175 = vmatpush1.bf16.msra.mxu0 %v4094
    %4176 = vmatprep.subr.bf16.mxu0 0
    %4177 = vmatpush1.bf16.msra.mxu0 0
    %4178 = vmatprep.subr.bf16.mxu0 0
    %4179 = vmatpush1.bf16.msra.mxu0 0
    %4180 = vmatprep.subr.bf16.mxu0 0
    %4181 = vmatpush1.bf16.msra.mxu0 0
    %4182 = vmatprep.subr.bf16.mxu0 0
    %4183 = vmatpush1.bf16.msra.mxu0 0
    %4184 = vmatprep.subr.bf16.mxu0 0
    %4185 = vmatpush1.bf16.msra.mxu0 0
    %4186 = vmatprep.subr.bf16.mxu0 0
    %4187 = vmatpush1.bf16.msra.mxu0 0
    %4188 = vmatprep.subr.bf16.mxu0 0
    %4189 = vmatpush1.bf16.msra.mxu0 0
    %4190 = vmatprep.subr.bf16.mxu0 0
    %4191 = vmatpush1.bf16.msra.mxu0 0
    %4192 = vmatprep.mubr.bf16.mxu0 0
    %4193 = vmatmul.mubr.bf16.gmra.mrb[0].mxu0 %v3958
    %v4194 = vpop.f32.mrb[0].mxu0
    %v4195 = vadd.f32 %v545, %v4194
    %v4196 = vpop.f32.mrb[0].mxu0
    %v4197 = vpop.f32.mrb[0].mxu0
    %v4198 = vpop.f32.mrb[0].mxu0
    %4199 = vdwg.mxu0
    %v4200 = vadd.f32 %v3912, %v4154
    %v4201 = vxor.u32 %v4200, 2147483648
    %v4202 = vmul.f32 %v4201, 1.442695
    %v4203 = vpow.pop %v4202
    %v4204 = vadd.f32 %v4203, 1.0
    %v4205 = vrcp.pop %v4204
    %v4206 = vmul.f32 1.0, %v4205
    %v4207 = vadd.f32 %v3914, %v4156
    %v4208 = vxor.u32 %v4207, 2147483648
    %v4209 = vmul.f32 %v4208, 1.442695
    %v4210 = vpow.pop %v4209
    %v4211 = vadd.f32 %v4210, 1.0
    %v4212 = vrcp.pop %v4211
    %v4213 = vmul.f32 1.0, %v4212
    %v4214 = vmul.f32 %v4206, %v4195
    %v4215 = vadd.f32 %v3953, %v4214
    %v4216 = vtanh.pop %v4215
    %v4217 = vsub.f32 1.0, %v4213
    %v4218 = vmul.f32 %v4217, %v4216
    %v4219 = vmul.f32 %v4213, %v3710
    %v4220 = vadd.f32 %v4218, %v4219
    %4221 = vst [vmem:[#allocation2 + $0x7] sm:$0x1] %v4220
    %4222 = vst [vmem:[#allocation15] sm:$0x1] %v4220
    %v4223 = vld [vmem:[#allocation2] sm:$0xff]
    %v4224 = vpack.c.bf16 %v4223, %v4223
    %v4225 = vld [vmem:[#allocation13] sm:$0xff]
    %v4226 = vld [vmem:[#allocation13 + $0x8] sm:$0xff]
    %v4227 = vld [vmem:[#allocation13 + $0x10] sm:$0xff]
    %v4228 = vld [vmem:[#allocation13 + $0x18] sm:$0xff]
    %v4229 = vld [vmem:[#allocation13 + $0x20] sm:$0xff]
    %v4230 = vld [vmem:[#allocation13 + $0x28] sm:$0xff]
    %v4231 = vld [vmem:[#allocation13 + $0x30] sm:$0xff]
    %v4232 = vld [vmem:[#allocation13 + $0x38] sm:$0xff]
    %v4233 = vld [vmem:[#allocation13 + $0x40] sm:$0xff]
    %v4234 = vld [vmem:[#allocation13 + $0x48] sm:$0xff]
    %v4235 = vld [vmem:[#allocation13 + $0x50] sm:$0xff]
    %v4236 = vld [vmem:[#allocation13 + $0x58] sm:$0xff]
    %v4237 = vld [vmem:[#allocation13 + $0x60] sm:$0xff]
    %v4238 = vld [vmem:[#allocation13 + $0x68] sm:$0xff]
    %v4239 = vld [vmem:[#allocation13 + $0x70] sm:$0xff]
    %v4240 = vld [vmem:[#allocation13 + $0x78] sm:$0xff]
    %v4241 = vld [vmem:[%s8] sm:$0x3]
    %v4243 = vlaneseq
    %v4244 = vshrl.u32 %v4243, 7
    %v4245 = vsub.s32 0, %v4244
    %v4246 = vrot.slane %v4241, %v4245
    %v4247 = vlaneseq
    %v4248 = vshrl.u32 %v4247, 7
    %v4249 = vsub.s32 1, %v4248
    %v4250 = vrot.slane %v4241, %v4249
    %v4269 = vunpack.c.l.b16 %v4225
    %v4270 = vunpack.c.h.b16 %v4225
    %v4271 = vunpack.c.l.b16 %v4226
    %v4272 = vunpack.c.h.b16 %v4226
    %v4273 = vunpack.c.l.b16 %v4227
    %v4274 = vunpack.c.h.b16 %v4227
    %v4275 = vunpack.c.l.b16 %v4228
    %v4276 = vunpack.c.h.b16 %v4228
    %v4277 = vunpack.c.l.b16 %v4229
    %v4278 = vunpack.c.h.b16 %v4229
    %v4279 = vunpack.c.l.b16 %v4230
    %v4280 = vunpack.c.h.b16 %v4230
    %v4281 = vunpack.c.l.b16 %v4231
    %v4282 = vunpack.c.h.b16 %v4231
    %v4283 = vunpack.c.l.b16 %v4232
    %v4284 = vunpack.c.h.b16 %v4232
    %v4285 = vunpack.c.l.b16 %v4233
    %v4286 = vunpack.c.h.b16 %v4233
    %v4287 = vunpack.c.l.b16 %v4234
    %v4288 = vunpack.c.h.b16 %v4234
    %v4289 = vunpack.c.l.b16 %v4235
    %v4290 = vunpack.c.h.b16 %v4235
    %v4291 = vunpack.c.l.b16 %v4236
    %v4292 = vunpack.c.h.b16 %v4236
    %v4293 = vunpack.c.l.b16 %v4237
    %v4294 = vunpack.c.h.b16 %v4237
    %v4295 = vunpack.c.l.b16 %v4238
    %v4296 = vunpack.c.h.b16 %v4238
    %v4297 = vunpack.c.l.b16 %v4239
    %v4298 = vunpack.c.h.b16 %v4239
    %v4299 = vunpack.c.l.b16 %v4240
    %v4300 = vunpack.c.h.b16 %v4240
    %v4301 = vpack.c.b16 %v4271, %v4269
    %v4302 = vpack.c.b16 %v4272, %v4270
    %v4303 = vpack.c.b16 %v4275, %v4273
    %v4304 = vpack.c.b16 %v4276, %v4274
    %v4305 = vpack.c.b16 %v4279, %v4277
    %v4306 = vpack.c.b16 %v4280, %v4278
    %v4307 = vpack.c.b16 %v4283, %v4281
    %v4308 = vpack.c.b16 %v4284, %v4282
    %v4309 = vpack.c.b16 %v4287, %v4285
    %v4310 = vpack.c.b16 %v4288, %v4286
    %v4311 = vpack.c.b16 %v4291, %v4289
    %v4312 = vpack.c.b16 %v4292, %v4290
    %v4313 = vpack.c.b16 %v4295, %v4293
    %v4314 = vpack.c.b16 %v4296, %v4294
    %v4315 = vpack.c.b16 %v4299, %v4297
    %v4316 = vpack.c.b16 %v4300, %v4298
    %4333 = vmatprep.subr.bf16.mxu0 %v4302
    %4334 = vmatpush1.bf16.msra.mxu0 %v4301
    %4335 = vmatprep.subr.bf16.mxu0 %v4304
    %4336 = vmatpush1.bf16.msra.mxu0 %v4303
    %4337 = vmatprep.subr.bf16.mxu0 %v4306
    %4338 = vmatpush1.bf16.msra.mxu0 %v4305
    %4339 = vmatprep.subr.bf16.mxu0 %v4308
    %4340 = vmatpush1.bf16.msra.mxu0 %v4307
    %4341 = vmatprep.subr.bf16.mxu0 %v4310
    %4342 = vmatpush1.bf16.msra.mxu0 %v4309
    %4343 = vmatprep.subr.bf16.mxu0 %v4312
    %4344 = vmatpush1.bf16.msra.mxu0 %v4311
    %4345 = vmatprep.subr.bf16.mxu0 %v4314
    %4346 = vmatpush1.bf16.msra.mxu0 %v4313
    %4347 = vmatprep.subr.bf16.mxu0 %v4316
    %4348 = vmatpush1.bf16.msra.mxu0 %v4315
    %4349 = vmatprep.subr.bf16.mxu0 0
    %4350 = vmatpush1.bf16.msra.mxu0 0
    %4351 = vmatprep.subr.bf16.mxu0 0
    %4352 = vmatpush1.bf16.msra.mxu0 0
    %4353 = vmatprep.subr.bf16.mxu0 0
    %4354 = vmatpush1.bf16.msra.mxu0 0
    %4355 = vmatprep.subr.bf16.mxu0 0
    %4356 = vmatpush1.bf16.msra.mxu0 0
    %4357 = vmatprep.subr.bf16.mxu0 0
    %4358 = vmatpush1.bf16.msra.mxu0 0
    %4359 = vmatprep.subr.bf16.mxu0 0
    %4360 = vmatpush1.bf16.msra.mxu0 0
    %4361 = vmatprep.subr.bf16.mxu0 0
    %4362 = vmatpush1.bf16.msra.mxu0 0
    %4363 = vmatprep.subr.bf16.mxu0 0
    %4364 = vmatpush1.bf16.msra.mxu0 0
    %4365 = vmatprep.mubr.bf16.mxu0 0
    %4366 = vmatmul.mubr.bf16.gmra.mrb[0].mxu0 %v4224
    %v4367 = vpop.f32.mrb[0].mxu0
    %v4368 = vadd.f32 %v4246, %v4367
    %v4369 = vpop.f32.mrb[0].mxu0
    %v4370 = vadd.f32 %v4250, %v4369
    %v4371 = vpop.f32.mrb[0].mxu0
    %v4372 = vpop.f32.mrb[0].mxu0
    %4373 = vdwg.mxu0
    %v4374 = vmax.f32 %v4368, %v4370
    %4375 = vmax.xlane.f32.xlu0 %v4374
    %v4376 = vpop.xlane.xlu0 %4375
    %v4377 = vsub.f32 %v4368, %v4376
    %v4378 = vsub.f32 %v4370, %v4376
    %v4379 = vmul.f32 %v4377, 1.442695
    %v4380 = vpow.pop %v4379
    %v4381 = vmul.f32 %v4378, 1.442695
    %v4382 = vpow.pop %v4381
    %v4383 = vadd.f32 %v4380, %v4382
    %4384 = vadd.xlane.f32.xlu0 %v4383
    %v4385 = vpop.xlane.xlu0 %4384
    %v4386 = vlog2.pop %v4385
    %v4387 = vmul.f32 %v4386, 0.6931472
    %v4388 = vadd.f32 %v4387, %v4376
    %v4389 = vsub.f32 %v4368, %v4388
    %v4390 = vsub.f32 %v4370, %v4388
    %4391 = vst [vmem:[#allocation14] sm:$0xff] %v4389
    %4392 = vst [vmem:[#allocation14 + $0x8] sm:$0xff] %v4390
    // Predicated region
    $region54: #{decoder_rnn_decode.1} parent=1 // pred_check
      _
    $region55: #{decoder_rnn_decode.1} parent=1 // pred_check_branch
      %4394 = sbr.rel (0) target = $region57
    $region56: #{decoder_rnn_decode.1} parent=1 // pred_region
      %s4396 = ssub.s32 256, 256
      %4397 = vsyncadd [#allocation7], %s4396
      %s4399 = sshll.u32 [#allocation14], 4
      %s4400 = int_to_ptr.vmem [resolvable:$true] %s4399
      %4402 = dma.vmem_to_hbm [thread:$0]  %s4400, 256, %s9, [#allocation7]
    $region57: #{decoder_rnn_decode.1} parent=1 // pred_fallthru
      _
    // Predicated region
    $region58: #{decoder_rnn_decode.1} parent=1 // pred_check
      _
    $region59: #{decoder_rnn_decode.1} parent=1 // pred_check_branch
      %4404 = sbr.rel (0) target = $region61
    $region60: #{decoder_rnn_decode.1} parent=1 // pred_region
      %s4406 = ssub.s32 16, 16
      %4407 = vsyncadd [#allocation16], %s4406
      %s4409 = sshll.u32 [#allocation15], 4
      %s4410 = int_to_ptr.vmem [resolvable:$true] %s4409
      %4412 = dma.vmem_to_hbm [thread:$0]  %s4410, 16, %s10, [#allocation16]
    $region61: #{decoder_rnn_decode.1} parent=1 // pred_fallthru
      _
    // Predicated region
    $region62: #{decoder_rnn_decode.1} parent=1 // pred_check
      _
    $region63: #{decoder_rnn_decode.1} parent=1 // pred_check_branch
      %4414 = sbr.rel (0) target = $region65
    $region64: #{decoder_rnn_decode.1} parent=1 // pred_region
      %4415 = dma.done [#allocation7], 256
    $region65: #{decoder_rnn_decode.1} parent=1 // pred_fallthru
      _
    // Predicated region
    $region66: #{decoder_rnn_decode.1} parent=1 // pred_check
      _
    $region67: #{decoder_rnn_decode.1} parent=1 // pred_check_branch
      %4417 = sbr.rel (0) target = $region69
    $region68: #{decoder_rnn_decode.1} parent=1 // pred_region
      %4418 = dma.done [#allocation16], 16
    $region69: #{decoder_rnn_decode.1} parent=1 // pred_fallthru
      _
    %4419 = vsyncpa [#allocation6], 1
    %4420 = vsyncpa [#allocation9], 1
    %4421 = vsyncpa [#allocation12], 1
    %4422 = vsyncpa [#allocation7], 1
    %4423 = vsyncpa [#allocation16], 1

</llo_original>
